<compile_context>
chip_gen: v7x
topology: tpu7x:2x2x1
jax: 0.10.0
libtpu: 0.0.40
codegen_flags: <defaults>
</compile_context>

<pallas_src>
import jax
import jax.numpy as jnp
import numpy as np
from jax.experimental import pallas as pl
from jax.experimental.pallas import tpu as pltpu


# ------------------------------ helpers ---------------------------------------
def _shift_lanes(v, off):
    """u[:, j] = v[:, j + off], zero-filled outside [0, L).  off is static."""
    if off == 0:
        return v
    rows, L = v.shape
    z = jnp.zeros((rows, abs(off)), v.dtype)
    if off > 0:
        return jnp.concatenate([v[:, off:], z], axis=1)
    return jnp.concatenate([z, v[:, : L + off]], axis=1)


def _pick_block_batch(N, C, HWp, itemsize, target_bytes=512 * 1024):
    """Batch items per grid step: ~512KB blocks, but keep >=2 grid steps."""
    per_item = max(C * HWp * itemsize, 1)
    nb = max(1, min(N, int(target_bytes // per_item)))
    if N >= 2:
        nb = min(nb, N // 2)        # >= 2 parallel steps for v7x's 2 TensorCores
    nb = max(nb, 1)
    while N % nb:
        nb -= 1
    return nb


# ------------------------------ fused kernel ----------------------------------
def _make_cbam_kernel(W, HW):
    inv_hw = 1.0 / float(HW)

    def kernel(x_ref, w1_ref, b1_ref, w2_ref, b2_ref, wc_ref, bn_ref, o_ref):
        # x_ref block: (Nb, C, HWp) bf16, lane-dense (HWp multiple of 128).
        Nb, C, HWp = x_ref.shape
        inv_c = 1.0 / float(C)

        w1 = w1_ref[...]          # (Cr, C)
        b1 = b1_ref[...]          # (Cr, 1)
        w2 = w2_ref[...]          # (C, Cr)
        b2 = b2_ref[...]          # (C, 1)

        lane = jax.lax.broadcasted_iota(jnp.int32, (1, HWp), 1)
        colpos = lane % W                                    # column within a row

        def mlp(p):               # shared MLP on a (C, 1) pooled column
            h = jnp.maximum(
                jnp.dot(w1, p, preferred_element_type=jnp.float32) + b1, 0.0)
            return jnp.dot(w2, h, preferred_element_type=jnp.float32) + b2

        def conv7x7(cmax, cmean):
            # Row-banded factorization of the 7x7 conv: the 2*7 row-shifted
            # bands are shared across all output rows and all 7 kernel
            # columns.  Zero-fill shifts implement the zero padding exactly
            # (padded lanes of cmax/cmean are 0, see below).
            rmax = [_shift_lanes(cmax, (dy - 3) * W) for dy in range(7)]
            rmean = [_shift_lanes(cmean, (dy - 3) * W) for dy in range(7)]
            acc = jnp.zeros_like(cmax)
            for dx in range(7):
                g = jnp.zeros_like(cmax)
                for dy in range(7):
                    g = g + wc_ref[dy * 7 + dx] * rmax[dy]         # in-ch 0 = max
                    g = g + wc_ref[49 + dy * 7 + dx] * rmean[dy]   # in-ch 1 = mean
                dxo = dx - 3
                gs = _shift_lanes(g, dxo)
                if dxo != 0:       # mask columns that bled across a row boundary
                    ok = jnp.logical_and(colpos + dxo >= 0, colpos + dxo < W)
                    gs = jnp.where(ok, gs, 0.0)
                acc = acc + gs
            return acc

        # Static unroll over the batch items packed into this block.
        for n in range(Nb):
            xb = x_ref[n].astype(jnp.float32)                      # (C, HWp)

            # ---------------- ChannelGate ----------------
            avg = jnp.sum(xb, axis=1, keepdims=True) * inv_hw      # (C, 1)
            if HWp != HW:          # mask padded lanes out of the max pool
                mx = jnp.max(jnp.where(lane < HW, xb, -jnp.inf),
                             axis=1, keepdims=True)
            else:
                mx = jnp.max(xb, axis=1, keepdims=True)            # (C, 1)

            cscale = jax.nn.sigmoid(mlp(avg) + mlp(mx))            # (C, 1)
            y = xb * cscale                                        # (C, HWp), on-chip

            # ---------------- SpatialGate ----------------
            # ChannelPool (max / mean over C): sublane reductions; padded
            # lanes of y are exactly 0, so cmax/cmean are 0 there, which is
            # what the zero-fill conv shifts rely on.
            cmax = jnp.max(y, axis=0, keepdims=True)               # (1, HWp)
            cmean = jnp.sum(y, axis=0, keepdims=True) * inv_c      # (1, HWp)

            conv = conv7x7(cmax, cmean)                            # (1, HWp)
            s = jax.nn.sigmoid(conv * bn_ref[0] + bn_ref[1])       # folded BN

            o_ref[n] = (y * s).astype(o_ref.dtype)                 # lane-dense store

    return kernel


# --------------------------------- wrapper -------------------------------------
def cbam_forward(x, params, io_dtype=jnp.bfloat16):
    """Fused CBAM forward.  x: (N, C, H, W); params from the torch module."""
    N, C, H, W = x.shape
    Cr = params["w1"].shape[0]
    HW = H * W
    HWp = ((HW + 127) // 128) * 128            # lane-dense padding (no-op at 16x16)

    kernel = _make_cbam_kernel(W, HW)

    x2 = x.reshape(N, C, HW).astype(io_dtype)
    if HWp != HW:
        x2 = jnp.pad(x2, ((0, 0), (0, 0), (0, HWp - HW)))

    w1 = params["w1"].astype(jnp.float32)                  # (Cr, C)
    b1 = params["b1"].reshape(Cr, 1).astype(jnp.float32)   # (Cr, 1)
    w2 = params["w2"].astype(jnp.float32)                  # (C, Cr)
    b2 = params["b2"].reshape(C, 1).astype(jnp.float32)    # (C, 1)
    wc = params["wconv"].reshape(-1).astype(jnp.float32)   # (2*7*7,) SMEM scalars
    bn = params["bn"].astype(jnp.float32)                  # (2,)     SMEM scalars

    Nb = _pick_block_batch(N, C, HWp, jnp.dtype(io_dtype).itemsize)
    grid = (N // Nb,)

    def run(single_buffer_consts):
        def const_spec(shape):
            if single_buffer_consts:
                return pl.BlockSpec(shape, lambda n: (0,) * len(shape),
                                    pipeline_mode=pl.Buffered(1))
            return pl.BlockSpec(shape, lambda n: (0,) * len(shape))

        return pl.pallas_call(
            kernel,
            out_shape=jax.ShapeDtypeStruct((N, C, HWp), io_dtype),
            grid_spec=pltpu.PrefetchScalarGridSpec(
                num_scalar_prefetch=0,
                grid=grid,
                in_specs=[
                    pl.BlockSpec((Nb, C, HWp), lambda n: (n, 0, 0)),     # x
                    const_spec((Cr, C)),                                 # w1
                    const_spec((Cr, 1)),                                 # b1
                    const_spec((C, Cr)),                                 # w2
                    const_spec((C, 1)),                                  # b2
                    pl.BlockSpec(memory_space=pltpu.MemorySpace.SMEM),   # conv w
                    pl.BlockSpec(memory_space=pltpu.MemorySpace.SMEM),   # bn
                ],
                out_specs=pl.BlockSpec((Nb, C, HWp), lambda n: (n, 0, 0)),
            ),
            compiler_params=pltpu.CompilerParams(
                dimension_semantics=("parallel",),
                vmem_limit_bytes=32 * 1024 * 1024,
            ),
        )(x2, w1, b1, w2, b2, wc, bn)

    try:
        out = run(True)
    except Exception:   # fallback if this JAX build rejects pl.Buffered(1)
        out = run(False)

    out = out[:, :, :HW].reshape(N, C, H, W)
    return out.astype(x.dtype)


# ----------------------------- pure-JAX reference ------------------------------
def cbam_reference(x, w1, b1, w2, b2, wconv, bn_scale, bn_shift):
    avg = jnp.mean(x, axis=(2, 3))
    mx = jnp.max(x, axis=(2, 3))

    def mlp(v):
        return jnp.maximum(v @ w1.T + b1, 0.0) @ w2.T + b2

    att = mlp(avg) + mlp(mx)
    y = x * jax.nn.sigmoid(att)[:, :, None, None]

    comp = jnp.concatenate(
        [jnp.max(y, axis=1, keepdims=True), jnp.mean(y, axis=1, keepdims=True)],
        axis=1)
    conv = jax.lax.conv_general_dilated(
        comp, wconv, window_strides=(1, 1), padding=((3, 3), (3, 3)),
        dimension_numbers=("NCHW", "OIHW", "NCHW"))
    z = conv * bn_scale + bn_shift
    return y * jax.nn.sigmoid(z)


if __name__ == "__main__":
    N, C, H, W = 2, 32, 16, 16          # gate_channels=32, reduction_ratio=16
    reduction_ratio = 16
    Cr = C // reduction_ratio

    key = jax.random.PRNGKey(0)
    ks = jax.random.split(key, 6)
    x = jax.random.normal(ks[0], (N, C, H, W), jnp.float32)

    # Deterministic synthetic parameters (shapes from the module's __init__)
    w1 = 0.2 * jax.random.normal(ks[1], (Cr, C), jnp.float32)     # Linear(C, C//r)
    b1 = 0.1 * jax.random.normal(ks[2], (Cr,), jnp.float32)
    w2 = 0.2 * jax.random.normal(ks[3], (C, Cr), jnp.float32)     # Linear(C//r, C)
    b2 = 0.1 * jax.random.normal(ks[4], (C,), jnp.float32)
    wconv = 0.1 * jax.random.normal(ks[5], (1, 2, 7, 7), jnp.float32)  # Conv2d(2,1,7)

    # BatchNorm2d(1) inference-mode fold: gamma=1, beta=0, mean=0, var=1
    gamma, beta, r_mean, r_var, eps = 1.0, 0.0, 0.0, 1.0, 1e-5
    bn_scale = float(gamma / np.sqrt(r_var + eps))
    bn_shift = float(beta - r_mean * bn_scale)
    bn = jnp.array([bn_scale, bn_shift], jnp.float32)

    params = dict(w1=w1, b1=b1, w2=w2, b2=b2, wconv=wconv, bn=bn)

    out = cbam_forward(x, params)              # bf16 I/O inside, f32 result out
    out = jax.block_until_ready(out)

    # Reference on the bf16-quantized input (the kernel reads x as bf16).
    x_q = x.astype(jnp.bfloat16).astype(jnp.float32)
    ref = cbam_reference(x_q, w1, b1, w2, b2, wconv, bn_scale, bn_shift)
    np.testing.assert_allclose(np.asarray(out), np.asarray(ref),
                               rtol=2e-2, atol=2e-2)
    print("KERNEL_OK")
</pallas_src>

<mosaic_0001>
module attributes {stable_mosaic.version = 11 : i64} {
  func.func @kernel(%arg0: i32, %arg1: memref<1x32x256xbf16, #tpu.memory_space<vmem>>, %arg2: memref<2x32xf32, #tpu.memory_space<vmem>>, %arg3: memref<2x1xf32, #tpu.memory_space<vmem>>, %arg4: memref<32x2xf32, #tpu.memory_space<vmem>>, %arg5: memref<32x1xf32, #tpu.memory_space<vmem>>, %arg6: memref<98xf32, #tpu.memory_space<smem>>, %arg7: memref<2xf32, #tpu.memory_space<smem>>, %arg8: memref<1x32x256xbf16, #tpu.memory_space<vmem>>) attributes {dimension_semantics = [#tpu.dimension_semantics<parallel>], iteration_bounds = array<i64: 2>, scalar_prefetch = 0 : i64, scratch_operands = 0 : i64, tpu.core_type = #tpu.core_type<tc>, window_params = [{transform_indices = @transform_0, window_bounds = array<i64: 1, 32, 256>}, {pipeline_mode = #tpu.pipeline_mode<synchronous>, transform_indices = @transform_1, window_bounds = array<i64: 2, 32>}, {pipeline_mode = #tpu.pipeline_mode<synchronous>, transform_indices = @transform_2, window_bounds = array<i64: 2, 1>}, {pipeline_mode = #tpu.pipeline_mode<synchronous>, transform_indices = @transform_3, window_bounds = array<i64: 32, 2>}, {pipeline_mode = #tpu.pipeline_mode<synchronous>, transform_indices = @transform_4, window_bounds = array<i64: 32, 1>}, {transform_indices = @transform_5, window_bounds = array<i64: 98>}, {transform_indices = @transform_6, window_bounds = array<i64: 2>}, {transform_indices = @transform_7, window_bounds = array<i64: 1, 32, 256>}]} {
    %c0 = arith.constant 0 : index
    %c0_0 = arith.constant 0 : index
    %0 = vector.load %arg2[%c0, %c0_0] : memref<2x32xf32, #tpu.memory_space<vmem>>, vector<2x32xf32>
    %c0_1 = arith.constant 0 : index
    %c0_2 = arith.constant 0 : index
    %1 = vector.load %arg3[%c0_1, %c0_2] : memref<2x1xf32, #tpu.memory_space<vmem>>, vector<2x1xf32>
    %c0_3 = arith.constant 0 : index
    %c0_4 = arith.constant 0 : index
    %2 = vector.load %arg4[%c0_3, %c0_4] : memref<32x2xf32, #tpu.memory_space<vmem>>, vector<32x2xf32>
    %c0_5 = arith.constant 0 : index
    %c0_6 = arith.constant 0 : index
    %3 = vector.load %arg5[%c0_5, %c0_6] : memref<32x1xf32, #tpu.memory_space<vmem>>, vector<32x1xf32>
    %4 = tpu.iota {dimensions = array<i32: 1>} : vector<1x256xi32>
    %c16_i32 = arith.constant 16 : i32
    %c0_i32 = arith.constant 0 : i32
    %5 = arith.cmpi eq, %c16_i32, %c0_i32 : i32
    %c1_i32 = arith.constant 1 : i32
    %6 = arith.select %5, %c1_i32, %c16_i32 : i32
    %7 = vector.broadcast %6 : i32 to vector<1x256xi32>
    %8 = arith.remsi %4, %7 : vector<1x256xi32>
    %c0_i32_7 = arith.constant 0 : i32
    %9 = vector.broadcast %c0_i32_7 : i32 to vector<1x256xi32>
    %10 = arith.cmpi ne, %8, %9 : vector<1x256xi32>
    %c0_i32_8 = arith.constant 0 : i32
    %11 = vector.broadcast %c0_i32_8 : i32 to vector<1x256xi32>
    %12 = arith.cmpi slt, %8, %11 : vector<1x256xi32>
    %c0_i32_9 = arith.constant 0 : i32
    %13 = arith.cmpi slt, %6, %c0_i32_9 : i32
    %14 = vector.broadcast %13 : i1 to vector<1x256xi1>
    %15 = vector.broadcast %14 : vector<1x256xi1> to vector<1x256xi1>
    %16 = arith.xori %12, %15 : vector<1x256xi1>
    %17 = arith.andi %16, %10 : vector<1x256xi1>
    %18 = vector.broadcast %6 : i32 to vector<1x256xi32>
    %19 = arith.addi %8, %18 : vector<1x256xi32>
    %20 = arith.select %17, %19, %8 : vector<1x256xi1>, vector<1x256xi32>
    %c0_10 = arith.constant 0 : index
    %c0_11 = arith.constant 0 : index
    %c0_12 = arith.constant 0 : index
    %21 = vector.load %arg1[%c0_10, %c0_11, %c0_12] : memref<1x32x256xbf16, #tpu.memory_space<vmem>>, vector<1x32x256xbf16>
    %22 = vector.shape_cast %21 : vector<1x32x256xbf16> to vector<32x256xbf16>
    %23 = arith.extf %22 : vector<32x256xbf16> to vector<32x256xf32>
    %cst = arith.constant dense<0.000000e+00> : vector<32xf32>
    %24 = vector.multi_reduction <add>, %23, %cst [1] : vector<32x256xf32> to vector<32xf32>
    %25 = vector.shape_cast %24 : vector<32xf32> to vector<32x1xf32>
    %cst_13 = arith.constant 3.906250e-03 : f32
    %26 = vector.broadcast %cst_13 : f32 to vector<32x1xf32>
    %27 = arith.mulf %25, %26 : vector<32x1xf32>
    %cst_14 = arith.constant dense<0xFF800000> : vector<32xf32>
    %28 = vector.multi_reduction <maximumf>, %23, %cst_14 [1] : vector<32x256xf32> to vector<32xf32>
    %29 = vector.shape_cast %28 : vector<32xf32> to vector<32x1xf32>
    %cst_15 = arith.constant dense<0.000000e+00> : vector<2x1xf32>
    %30 = tpu.matmul %0, %27, %cst_15 {dimension_numbers = #tpu.dot_dimension_numbers<[1], [0], [0], [1], [0, 0, 1, 1], [], []>} : vector<2x32xf32>, vector<32x1xf32>, vector<2x1xf32> -> vector<2x1xf32>
    %31 = arith.addf %30, %1 : vector<2x1xf32>
    %cst_16 = arith.constant 0.000000e+00 : f32
    %32 = vector.broadcast %cst_16 : f32 to vector<2x1xf32>
    %33 = arith.maximumf %31, %32 : vector<2x1xf32>
    %cst_17 = arith.constant dense<0.000000e+00> : vector<32x1xf32>
    %34 = tpu.matmul %2, %33, %cst_17 {dimension_numbers = #tpu.dot_dimension_numbers<[1], [0], [0], [1], [0, 0, 1, 1], [], []>} : vector<32x2xf32>, vector<2x1xf32>, vector<32x1xf32> -> vector<32x1xf32>
    %35 = arith.addf %34, %3 : vector<32x1xf32>
    %cst_18 = arith.constant dense<0.000000e+00> : vector<2x1xf32>
    %36 = tpu.matmul %0, %29, %cst_18 {dimension_numbers = #tpu.dot_dimension_numbers<[1], [0], [0], [1], [0, 0, 1, 1], [], []>} : vector<2x32xf32>, vector<32x1xf32>, vector<2x1xf32> -> vector<2x1xf32>
    %37 = arith.addf %36, %1 : vector<2x1xf32>
    %cst_19 = arith.constant 0.000000e+00 : f32
    %38 = vector.broadcast %cst_19 : f32 to vector<2x1xf32>
    %39 = arith.maximumf %37, %38 : vector<2x1xf32>
    %cst_20 = arith.constant dense<0.000000e+00> : vector<32x1xf32>
    %40 = tpu.matmul %2, %39, %cst_20 {dimension_numbers = #tpu.dot_dimension_numbers<[1], [0], [0], [1], [0, 0, 1, 1], [], []>} : vector<32x2xf32>, vector<2x1xf32>, vector<32x1xf32> -> vector<32x1xf32>
    %41 = arith.addf %40, %3 : vector<32x1xf32>
    %42 = arith.addf %35, %41 : vector<32x1xf32>
    %43 = arith.negf %42 : vector<32x1xf32>
    %44 = math.exp %43 : vector<32x1xf32>
    %cst_21 = arith.constant 1.000000e+00 : f32
    %45 = vector.broadcast %cst_21 : f32 to vector<32x1xf32>
    %46 = arith.addf %45, %44 : vector<32x1xf32>
    %47 = arith.divf %45, %46 : vector<32x1xf32>
    %48 = vector.broadcast %47 : vector<32x1xf32> to vector<32x256xf32>
    %49 = arith.mulf %23, %48 : vector<32x256xf32>
    %cst_22 = arith.constant dense<0xFF800000> : vector<256xf32>
    %50 = vector.multi_reduction <maximumf>, %49, %cst_22 [0] : vector<32x256xf32> to vector<256xf32>
    %51 = vector.shape_cast %50 : vector<256xf32> to vector<1x256xf32>
    %cst_23 = arith.constant dense<0.000000e+00> : vector<256xf32>
    %52 = vector.multi_reduction <add>, %49, %cst_23 [0] : vector<32x256xf32> to vector<256xf32>
    %53 = vector.shape_cast %52 : vector<256xf32> to vector<1x256xf32>
    %cst_24 = arith.constant 3.125000e-02 : f32
    %54 = vector.broadcast %cst_24 : f32 to vector<1x256xf32>
    %55 = arith.mulf %53, %54 : vector<1x256xf32>
    %cst_25 = arith.constant 0.000000e+00 : f32
    %56 = vector.broadcast %cst_25 : f32 to vector<1x48xf32>
    %57 = vector.extract_strided_slice %51 {offsets = [0, 0], sizes = [1, 208], strides = [1, 1]} : vector<1x256xf32> to vector<1x208xf32>
    %58 = tpu.concatenate %56, %57 in 1 : vector<1x48xf32>, vector<1x208xf32> -> vector<1x256xf32>
    %cst_26 = arith.constant 0.000000e+00 : f32
    %59 = vector.broadcast %cst_26 : f32 to vector<1x32xf32>
    %60 = vector.extract_strided_slice %51 {offsets = [0, 0], sizes = [1, 224], strides = [1, 1]} : vector<1x256xf32> to vector<1x224xf32>
    %61 = tpu.concatenate %59, %60 in 1 : vector<1x32xf32>, vector<1x224xf32> -> vector<1x256xf32>
    %cst_27 = arith.constant 0.000000e+00 : f32
    %62 = vector.broadcast %cst_27 : f32 to vector<1x16xf32>
    %63 = vector.extract_strided_slice %51 {offsets = [0, 0], sizes = [1, 240], strides = [1, 1]} : vector<1x256xf32> to vector<1x240xf32>
    %64 = tpu.concatenate %62, %63 in 1 : vector<1x16xf32>, vector<1x240xf32> -> vector<1x256xf32>
    %cst_28 = arith.constant 0.000000e+00 : f32
    %65 = vector.broadcast %cst_28 : f32 to vector<1x16xf32>
    %66 = vector.extract_strided_slice %51 {offsets = [0, 16], sizes = [1, 240], strides = [1, 1]} : vector<1x256xf32> to vector<1x240xf32>
    %67 = tpu.concatenate %66, %65 in 1 : vector<1x240xf32>, vector<1x16xf32> -> vector<1x256xf32>
    %cst_29 = arith.constant 0.000000e+00 : f32
    %68 = vector.broadcast %cst_29 : f32 to vector<1x32xf32>
    %69 = vector.extract_strided_slice %51 {offsets = [0, 32], sizes = [1, 224], strides = [1, 1]} : vector<1x256xf32> to vector<1x224xf32>
    %70 = tpu.concatenate %69, %68 in 1 : vector<1x224xf32>, vector<1x32xf32> -> vector<1x256xf32>
    %cst_30 = arith.constant 0.000000e+00 : f32
    %71 = vector.broadcast %cst_30 : f32 to vector<1x48xf32>
    %72 = vector.extract_strided_slice %51 {offsets = [0, 48], sizes = [1, 208], strides = [1, 1]} : vector<1x256xf32> to vector<1x208xf32>
    %73 = tpu.concatenate %72, %71 in 1 : vector<1x208xf32>, vector<1x48xf32> -> vector<1x256xf32>
    %cst_31 = arith.constant 0.000000e+00 : f32
    %74 = vector.broadcast %cst_31 : f32 to vector<1x48xf32>
    %75 = vector.extract_strided_slice %55 {offsets = [0, 0], sizes = [1, 208], strides = [1, 1]} : vector<1x256xf32> to vector<1x208xf32>
    %76 = tpu.concatenate %74, %75 in 1 : vector<1x48xf32>, vector<1x208xf32> -> vector<1x256xf32>
    %cst_32 = arith.constant 0.000000e+00 : f32
    %77 = vector.broadcast %cst_32 : f32 to vector<1x32xf32>
    %78 = vector.extract_strided_slice %55 {offsets = [0, 0], sizes = [1, 224], strides = [1, 1]} : vector<1x256xf32> to vector<1x224xf32>
    %79 = tpu.concatenate %77, %78 in 1 : vector<1x32xf32>, vector<1x224xf32> -> vector<1x256xf32>
    %cst_33 = arith.constant 0.000000e+00 : f32
    %80 = vector.broadcast %cst_33 : f32 to vector<1x16xf32>
    %81 = vector.extract_strided_slice %55 {offsets = [0, 0], sizes = [1, 240], strides = [1, 1]} : vector<1x256xf32> to vector<1x240xf32>
    %82 = tpu.concatenate %80, %81 in 1 : vector<1x16xf32>, vector<1x240xf32> -> vector<1x256xf32>
    %cst_34 = arith.constant 0.000000e+00 : f32
    %83 = vector.broadcast %cst_34 : f32 to vector<1x16xf32>
    %84 = vector.extract_strided_slice %55 {offsets = [0, 16], sizes = [1, 240], strides = [1, 1]} : vector<1x256xf32> to vector<1x240xf32>
    %85 = tpu.concatenate %84, %83 in 1 : vector<1x240xf32>, vector<1x16xf32> -> vector<1x256xf32>
    %cst_35 = arith.constant 0.000000e+00 : f32
    %86 = vector.broadcast %cst_35 : f32 to vector<1x32xf32>
    %87 = vector.extract_strided_slice %55 {offsets = [0, 32], sizes = [1, 224], strides = [1, 1]} : vector<1x256xf32> to vector<1x224xf32>
    %88 = tpu.concatenate %87, %86 in 1 : vector<1x224xf32>, vector<1x32xf32> -> vector<1x256xf32>
    %cst_36 = arith.constant 0.000000e+00 : f32
    %89 = vector.broadcast %cst_36 : f32 to vector<1x48xf32>
    %90 = vector.extract_strided_slice %55 {offsets = [0, 48], sizes = [1, 208], strides = [1, 1]} : vector<1x256xf32> to vector<1x208xf32>
    %91 = tpu.concatenate %90, %89 in 1 : vector<1x208xf32>, vector<1x48xf32> -> vector<1x256xf32>
    %cst_37 = arith.constant 0.000000e+00 : f32
    %92 = vector.broadcast %cst_37 : f32 to vector<1x256xf32>
    %cst_38 = arith.constant 0.000000e+00 : f32
    %93 = vector.broadcast %cst_38 : f32 to vector<1x256xf32>
    %c0_39 = arith.constant 0 : index
    %94 = memref.load %arg6[%c0_39] : memref<98xf32, #tpu.memory_space<smem>>
    %95 = vector.broadcast %94 : f32 to vector<1x256xf32>
    %96 = arith.mulf %95, %58 : vector<1x256xf32>
    %97 = arith.addf %93, %96 : vector<1x256xf32>
    %c49 = arith.constant 49 : index
    %98 = memref.load %arg6[%c49] : memref<98xf32, #tpu.memory_space<smem>>
    %99 = vector.broadcast %98 : f32 to vector<1x256xf32>
    %100 = arith.mulf %99, %76 : vector<1x256xf32>
    %101 = arith.addf %97, %100 : vector<1x256xf32>
    %c7 = arith.constant 7 : index
    %102 = memref.load %arg6[%c7] : memref<98xf32, #tpu.memory_space<smem>>
    %103 = vector.broadcast %102 : f32 to vector<1x256xf32>
    %104 = arith.mulf %103, %61 : vector<1x256xf32>
    %105 = arith.addf %101, %104 : vector<1x256xf32>
    %c56 = arith.constant 56 : index
    %106 = memref.load %arg6[%c56] : memref<98xf32, #tpu.memory_space<smem>>
    %107 = vector.broadcast %106 : f32 to vector<1x256xf32>
    %108 = arith.mulf %107, %79 : vector<1x256xf32>
    %109 = arith.addf %105, %108 : vector<1x256xf32>
    %c14 = arith.constant 14 : index
    %110 = memref.load %arg6[%c14] : memref<98xf32, #tpu.memory_space<smem>>
    %111 = vector.broadcast %110 : f32 to vector<1x256xf32>
    %112 = arith.mulf %111, %64 : vector<1x256xf32>
    %113 = arith.addf %109, %112 : vector<1x256xf32>
    %c63 = arith.constant 63 : index
    %114 = memref.load %arg6[%c63] : memref<98xf32, #tpu.memory_space<smem>>
    %115 = vector.broadcast %114 : f32 to vector<1x256xf32>
    %116 = arith.mulf %115, %82 : vector<1x256xf32>
    %117 = arith.addf %113, %116 : vector<1x256xf32>
    %c21 = arith.constant 21 : index
    %118 = memref.load %arg6[%c21] : memref<98xf32, #tpu.memory_space<smem>>
    %119 = vector.broadcast %118 : f32 to vector<1x256xf32>
    %120 = arith.mulf %119, %51 : vector<1x256xf32>
    %121 = arith.addf %117, %120 : vector<1x256xf32>
    %c70 = arith.constant 70 : index
    %122 = memref.load %arg6[%c70] : memref<98xf32, #tpu.memory_space<smem>>
    %123 = vector.broadcast %122 : f32 to vector<1x256xf32>
    %124 = arith.mulf %123, %55 : vector<1x256xf32>
    %125 = arith.addf %121, %124 : vector<1x256xf32>
    %c28 = arith.constant 28 : index
    %126 = memref.load %arg6[%c28] : memref<98xf32, #tpu.memory_space<smem>>
    %127 = vector.broadcast %126 : f32 to vector<1x256xf32>
    %128 = arith.mulf %127, %67 : vector<1x256xf32>
    %129 = arith.addf %125, %128 : vector<1x256xf32>
    %c77 = arith.constant 77 : index
    %130 = memref.load %arg6[%c77] : memref<98xf32, #tpu.memory_space<smem>>
    %131 = vector.broadcast %130 : f32 to vector<1x256xf32>
    %132 = arith.mulf %131, %85 : vector<1x256xf32>
    %133 = arith.addf %129, %132 : vector<1x256xf32>
    %c35 = arith.constant 35 : index
    %134 = memref.load %arg6[%c35] : memref<98xf32, #tpu.memory_space<smem>>
    %135 = vector.broadcast %134 : f32 to vector<1x256xf32>
    %136 = arith.mulf %135, %70 : vector<1x256xf32>
    %137 = arith.addf %133, %136 : vector<1x256xf32>
    %c84 = arith.constant 84 : index
    %138 = memref.load %arg6[%c84] : memref<98xf32, #tpu.memory_space<smem>>
    %139 = vector.broadcast %138 : f32 to vector<1x256xf32>
    %140 = arith.mulf %139, %88 : vector<1x256xf32>
    %141 = arith.addf %137, %140 : vector<1x256xf32>
    %c42 = arith.constant 42 : index
    %142 = memref.load %arg6[%c42] : memref<98xf32, #tpu.memory_space<smem>>
    %143 = vector.broadcast %142 : f32 to vector<1x256xf32>
    %144 = arith.mulf %143, %73 : vector<1x256xf32>
    %145 = arith.addf %141, %144 : vector<1x256xf32>
    %c91 = arith.constant 91 : index
    %146 = memref.load %arg6[%c91] : memref<98xf32, #tpu.memory_space<smem>>
    %147 = vector.broadcast %146 : f32 to vector<1x256xf32>
    %148 = arith.mulf %147, %91 : vector<1x256xf32>
    %149 = arith.addf %145, %148 : vector<1x256xf32>
    %cst_40 = arith.constant 0.000000e+00 : f32
    %150 = vector.broadcast %cst_40 : f32 to vector<1x3xf32>
    %151 = vector.extract_strided_slice %149 {offsets = [0, 0], sizes = [1, 253], strides = [1, 1]} : vector<1x256xf32> to vector<1x253xf32>
    %152 = tpu.concatenate %150, %151 in 1 : vector<1x3xf32>, vector<1x253xf32> -> vector<1x256xf32>
    %c-3_i32 = arith.constant -3 : i32
    %153 = vector.broadcast %c-3_i32 : i32 to vector<1x256xi32>
    %154 = arith.addi %20, %153 : vector<1x256xi32>
    %c0_i32_41 = arith.constant 0 : i32
    %155 = vector.broadcast %c0_i32_41 : i32 to vector<1x256xi32>
    %156 = arith.cmpi sge, %154, %155 : vector<1x256xi32>
    %c-3_i32_42 = arith.constant -3 : i32
    %157 = vector.broadcast %c-3_i32_42 : i32 to vector<1x256xi32>
    %158 = arith.addi %20, %157 : vector<1x256xi32>
    %c16_i32_43 = arith.constant 16 : i32
    %159 = vector.broadcast %c16_i32_43 : i32 to vector<1x256xi32>
    %160 = arith.cmpi slt, %158, %159 : vector<1x256xi32>
    %161 = arith.andi %156, %160 : vector<1x256xi1>
    %cst_44 = arith.constant 0.000000e+00 : f32
    %162 = vector.broadcast %cst_44 : f32 to vector<1x256xf32>
    %163 = arith.select %161, %152, %162 : vector<1x256xi1>, vector<1x256xf32>
    %164 = arith.addf %92, %163 : vector<1x256xf32>
    %cst_45 = arith.constant 0.000000e+00 : f32
    %165 = vector.broadcast %cst_45 : f32 to vector<1x256xf32>
    %c1 = arith.constant 1 : index
    %166 = memref.load %arg6[%c1] : memref<98xf32, #tpu.memory_space<smem>>
    %167 = vector.broadcast %166 : f32 to vector<1x256xf32>
    %168 = arith.mulf %167, %58 : vector<1x256xf32>
    %169 = arith.addf %165, %168 : vector<1x256xf32>
    %c50 = arith.constant 50 : index
    %170 = memref.load %arg6[%c50] : memref<98xf32, #tpu.memory_space<smem>>
    %171 = vector.broadcast %170 : f32 to vector<1x256xf32>
    %172 = arith.mulf %171, %76 : vector<1x256xf32>
    %173 = arith.addf %169, %172 : vector<1x256xf32>
    %c8 = arith.constant 8 : index
    %174 = memref.load %arg6[%c8] : memref<98xf32, #tpu.memory_space<smem>>
    %175 = vector.broadcast %174 : f32 to vector<1x256xf32>
    %176 = arith.mulf %175, %61 : vector<1x256xf32>
    %177 = arith.addf %173, %176 : vector<1x256xf32>
    %c57 = arith.constant 57 : index
    %178 = memref.load %arg6[%c57] : memref<98xf32, #tpu.memory_space<smem>>
    %179 = vector.broadcast %178 : f32 to vector<1x256xf32>
    %180 = arith.mulf %179, %79 : vector<1x256xf32>
    %181 = arith.addf %177, %180 : vector<1x256xf32>
    %c15 = arith.constant 15 : index
    %182 = memref.load %arg6[%c15] : memref<98xf32, #tpu.memory_space<smem>>
    %183 = vector.broadcast %182 : f32 to vector<1x256xf32>
    %184 = arith.mulf %183, %64 : vector<1x256xf32>
    %185 = arith.addf %181, %184 : vector<1x256xf32>
    %c64 = arith.constant 64 : index
    %186 = memref.load %arg6[%c64] : memref<98xf32, #tpu.memory_space<smem>>
    %187 = vector.broadcast %186 : f32 to vector<1x256xf32>
    %188 = arith.mulf %187, %82 : vector<1x256xf32>
    %189 = arith.addf %185, %188 : vector<1x256xf32>
    %c22 = arith.constant 22 : index
    %190 = memref.load %arg6[%c22] : memref<98xf32, #tpu.memory_space<smem>>
    %191 = vector.broadcast %190 : f32 to vector<1x256xf32>
    %192 = arith.mulf %191, %51 : vector<1x256xf32>
    %193 = arith.addf %189, %192 : vector<1x256xf32>
    %c71 = arith.constant 71 : index
    %194 = memref.load %arg6[%c71] : memref<98xf32, #tpu.memory_space<smem>>
    %195 = vector.broadcast %194 : f32 to vector<1x256xf32>
    %196 = arith.mulf %195, %55 : vector<1x256xf32>
    %197 = arith.addf %193, %196 : vector<1x256xf32>
    %c29 = arith.constant 29 : index
    %198 = memref.load %arg6[%c29] : memref<98xf32, #tpu.memory_space<smem>>
    %199 = vector.broadcast %198 : f32 to vector<1x256xf32>
    %200 = arith.mulf %199, %67 : vector<1x256xf32>
    %201 = arith.addf %197, %200 : vector<1x256xf32>
    %c78 = arith.constant 78 : index
    %202 = memref.load %arg6[%c78] : memref<98xf32, #tpu.memory_space<smem>>
    %203 = vector.broadcast %202 : f32 to vector<1x256xf32>
    %204 = arith.mulf %203, %85 : vector<1x256xf32>
    %205 = arith.addf %201, %204 : vector<1x256xf32>
    %c36 = arith.constant 36 : index
    %206 = memref.load %arg6[%c36] : memref<98xf32, #tpu.memory_space<smem>>
    %207 = vector.broadcast %206 : f32 to vector<1x256xf32>
    %208 = arith.mulf %207, %70 : vector<1x256xf32>
    %209 = arith.addf %205, %208 : vector<1x256xf32>
    %c85 = arith.constant 85 : index
    %210 = memref.load %arg6[%c85] : memref<98xf32, #tpu.memory_space<smem>>
    %211 = vector.broadcast %210 : f32 to vector<1x256xf32>
    %212 = arith.mulf %211, %88 : vector<1x256xf32>
    %213 = arith.addf %209, %212 : vector<1x256xf32>
    %c43 = arith.constant 43 : index
    %214 = memref.load %arg6[%c43] : memref<98xf32, #tpu.memory_space<smem>>
    %215 = vector.broadcast %214 : f32 to vector<1x256xf32>
    %216 = arith.mulf %215, %73 : vector<1x256xf32>
    %217 = arith.addf %213, %216 : vector<1x256xf32>
    %c92 = arith.constant 92 : index
    %218 = memref.load %arg6[%c92] : memref<98xf32, #tpu.memory_space<smem>>
    %219 = vector.broadcast %218 : f32 to vector<1x256xf32>
    %220 = arith.mulf %219, %91 : vector<1x256xf32>
    %221 = arith.addf %217, %220 : vector<1x256xf32>
    %cst_46 = arith.constant 0.000000e+00 : f32
    %222 = vector.broadcast %cst_46 : f32 to vector<1x2xf32>
    %223 = vector.extract_strided_slice %221 {offsets = [0, 0], sizes = [1, 254], strides = [1, 1]} : vector<1x256xf32> to vector<1x254xf32>
    %224 = tpu.concatenate %222, %223 in 1 : vector<1x2xf32>, vector<1x254xf32> -> vector<1x256xf32>
    %c-2_i32 = arith.constant -2 : i32
    %225 = vector.broadcast %c-2_i32 : i32 to vector<1x256xi32>
    %226 = arith.addi %20, %225 : vector<1x256xi32>
    %c0_i32_47 = arith.constant 0 : i32
    %227 = vector.broadcast %c0_i32_47 : i32 to vector<1x256xi32>
    %228 = arith.cmpi sge, %226, %227 : vector<1x256xi32>
    %c-2_i32_48 = arith.constant -2 : i32
    %229 = vector.broadcast %c-2_i32_48 : i32 to vector<1x256xi32>
    %230 = arith.addi %20, %229 : vector<1x256xi32>
    %c16_i32_49 = arith.constant 16 : i32
    %231 = vector.broadcast %c16_i32_49 : i32 to vector<1x256xi32>
    %232 = arith.cmpi slt, %230, %231 : vector<1x256xi32>
    %233 = arith.andi %228, %232 : vector<1x256xi1>
    %cst_50 = arith.constant 0.000000e+00 : f32
    %234 = vector.broadcast %cst_50 : f32 to vector<1x256xf32>
    %235 = arith.select %233, %224, %234 : vector<1x256xi1>, vector<1x256xf32>
    %236 = arith.addf %164, %235 : vector<1x256xf32>
    %cst_51 = arith.constant 0.000000e+00 : f32
    %237 = vector.broadcast %cst_51 : f32 to vector<1x256xf32>
    %c2 = arith.constant 2 : index
    %238 = memref.load %arg6[%c2] : memref<98xf32, #tpu.memory_space<smem>>
    %239 = vector.broadcast %238 : f32 to vector<1x256xf32>
    %240 = arith.mulf %239, %58 : vector<1x256xf32>
    %241 = arith.addf %237, %240 : vector<1x256xf32>
    %c51 = arith.constant 51 : index
    %242 = memref.load %arg6[%c51] : memref<98xf32, #tpu.memory_space<smem>>
    %243 = vector.broadcast %242 : f32 to vector<1x256xf32>
    %244 = arith.mulf %243, %76 : vector<1x256xf32>
    %245 = arith.addf %241, %244 : vector<1x256xf32>
    %c9 = arith.constant 9 : index
    %246 = memref.load %arg6[%c9] : memref<98xf32, #tpu.memory_space<smem>>
    %247 = vector.broadcast %246 : f32 to vector<1x256xf32>
    %248 = arith.mulf %247, %61 : vector<1x256xf32>
    %249 = arith.addf %245, %248 : vector<1x256xf32>
    %c58 = arith.constant 58 : index
    %250 = memref.load %arg6[%c58] : memref<98xf32, #tpu.memory_space<smem>>
    %251 = vector.broadcast %250 : f32 to vector<1x256xf32>
    %252 = arith.mulf %251, %79 : vector<1x256xf32>
    %253 = arith.addf %249, %252 : vector<1x256xf32>
    %c16 = arith.constant 16 : index
    %254 = memref.load %arg6[%c16] : memref<98xf32, #tpu.memory_space<smem>>
    %255 = vector.broadcast %254 : f32 to vector<1x256xf32>
    %256 = arith.mulf %255, %64 : vector<1x256xf32>
    %257 = arith.addf %253, %256 : vector<1x256xf32>
    %c65 = arith.constant 65 : index
    %258 = memref.load %arg6[%c65] : memref<98xf32, #tpu.memory_space<smem>>
    %259 = vector.broadcast %258 : f32 to vector<1x256xf32>
    %260 = arith.mulf %259, %82 : vector<1x256xf32>
    %261 = arith.addf %257, %260 : vector<1x256xf32>
    %c23 = arith.constant 23 : index
    %262 = memref.load %arg6[%c23] : memref<98xf32, #tpu.memory_space<smem>>
    %263 = vector.broadcast %262 : f32 to vector<1x256xf32>
    %264 = arith.mulf %263, %51 : vector<1x256xf32>
    %265 = arith.addf %261, %264 : vector<1x256xf32>
    %c72 = arith.constant 72 : index
    %266 = memref.load %arg6[%c72] : memref<98xf32, #tpu.memory_space<smem>>
    %267 = vector.broadcast %266 : f32 to vector<1x256xf32>
    %268 = arith.mulf %267, %55 : vector<1x256xf32>
    %269 = arith.addf %265, %268 : vector<1x256xf32>
    %c30 = arith.constant 30 : index
    %270 = memref.load %arg6[%c30] : memref<98xf32, #tpu.memory_space<smem>>
    %271 = vector.broadcast %270 : f32 to vector<1x256xf32>
    %272 = arith.mulf %271, %67 : vector<1x256xf32>
    %273 = arith.addf %269, %272 : vector<1x256xf32>
    %c79 = arith.constant 79 : index
    %274 = memref.load %arg6[%c79] : memref<98xf32, #tpu.memory_space<smem>>
    %275 = vector.broadcast %274 : f32 to vector<1x256xf32>
    %276 = arith.mulf %275, %85 : vector<1x256xf32>
    %277 = arith.addf %273, %276 : vector<1x256xf32>
    %c37 = arith.constant 37 : index
    %278 = memref.load %arg6[%c37] : memref<98xf32, #tpu.memory_space<smem>>
    %279 = vector.broadcast %278 : f32 to vector<1x256xf32>
    %280 = arith.mulf %279, %70 : vector<1x256xf32>
    %281 = arith.addf %277, %280 : vector<1x256xf32>
    %c86 = arith.constant 86 : index
    %282 = memref.load %arg6[%c86] : memref<98xf32, #tpu.memory_space<smem>>
    %283 = vector.broadcast %282 : f32 to vector<1x256xf32>
    %284 = arith.mulf %283, %88 : vector<1x256xf32>
    %285 = arith.addf %281, %284 : vector<1x256xf32>
    %c44 = arith.constant 44 : index
    %286 = memref.load %arg6[%c44] : memref<98xf32, #tpu.memory_space<smem>>
    %287 = vector.broadcast %286 : f32 to vector<1x256xf32>
    %288 = arith.mulf %287, %73 : vector<1x256xf32>
    %289 = arith.addf %285, %288 : vector<1x256xf32>
    %c93 = arith.constant 93 : index
    %290 = memref.load %arg6[%c93] : memref<98xf32, #tpu.memory_space<smem>>
    %291 = vector.broadcast %290 : f32 to vector<1x256xf32>
    %292 = arith.mulf %291, %91 : vector<1x256xf32>
    %293 = arith.addf %289, %292 : vector<1x256xf32>
    %cst_52 = arith.constant 0.000000e+00 : f32
    %294 = vector.broadcast %cst_52 : f32 to vector<1x1xf32>
    %295 = vector.extract_strided_slice %293 {offsets = [0, 0], sizes = [1, 255], strides = [1, 1]} : vector<1x256xf32> to vector<1x255xf32>
    %296 = tpu.concatenate %294, %295 in 1 : vector<1x1xf32>, vector<1x255xf32> -> vector<1x256xf32>
    %c-1_i32 = arith.constant -1 : i32
    %297 = vector.broadcast %c-1_i32 : i32 to vector<1x256xi32>
    %298 = arith.addi %20, %297 : vector<1x256xi32>
    %c0_i32_53 = arith.constant 0 : i32
    %299 = vector.broadcast %c0_i32_53 : i32 to vector<1x256xi32>
    %300 = arith.cmpi sge, %298, %299 : vector<1x256xi32>
    %c-1_i32_54 = arith.constant -1 : i32
    %301 = vector.broadcast %c-1_i32_54 : i32 to vector<1x256xi32>
    %302 = arith.addi %20, %301 : vector<1x256xi32>
    %c16_i32_55 = arith.constant 16 : i32
    %303 = vector.broadcast %c16_i32_55 : i32 to vector<1x256xi32>
    %304 = arith.cmpi slt, %302, %303 : vector<1x256xi32>
    %305 = arith.andi %300, %304 : vector<1x256xi1>
    %cst_56 = arith.constant 0.000000e+00 : f32
    %306 = vector.broadcast %cst_56 : f32 to vector<1x256xf32>
    %307 = arith.select %305, %296, %306 : vector<1x256xi1>, vector<1x256xf32>
    %308 = arith.addf %236, %307 : vector<1x256xf32>
    %cst_57 = arith.constant 0.000000e+00 : f32
    %309 = vector.broadcast %cst_57 : f32 to vector<1x256xf32>
    %c3 = arith.constant 3 : index
    %310 = memref.load %arg6[%c3] : memref<98xf32, #tpu.memory_space<smem>>
    %311 = vector.broadcast %310 : f32 to vector<1x256xf32>
    %312 = arith.mulf %311, %58 : vector<1x256xf32>
    %313 = arith.addf %309, %312 : vector<1x256xf32>
    %c52 = arith.constant 52 : index
    %314 = memref.load %arg6[%c52] : memref<98xf32, #tpu.memory_space<smem>>
    %315 = vector.broadcast %314 : f32 to vector<1x256xf32>
    %316 = arith.mulf %315, %76 : vector<1x256xf32>
    %317 = arith.addf %313, %316 : vector<1x256xf32>
    %c10 = arith.constant 10 : index
    %318 = memref.load %arg6[%c10] : memref<98xf32, #tpu.memory_space<smem>>
    %319 = vector.broadcast %318 : f32 to vector<1x256xf32>
    %320 = arith.mulf %319, %61 : vector<1x256xf32>
    %321 = arith.addf %317, %320 : vector<1x256xf32>
    %c59 = arith.constant 59 : index
    %322 = memref.load %arg6[%c59] : memref<98xf32, #tpu.memory_space<smem>>
    %323 = vector.broadcast %322 : f32 to vector<1x256xf32>
    %324 = arith.mulf %323, %79 : vector<1x256xf32>
    %325 = arith.addf %321, %324 : vector<1x256xf32>
    %c17 = arith.constant 17 : index
    %326 = memref.load %arg6[%c17] : memref<98xf32, #tpu.memory_space<smem>>
    %327 = vector.broadcast %326 : f32 to vector<1x256xf32>
    %328 = arith.mulf %327, %64 : vector<1x256xf32>
    %329 = arith.addf %325, %328 : vector<1x256xf32>
    %c66 = arith.constant 66 : index
    %330 = memref.load %arg6[%c66] : memref<98xf32, #tpu.memory_space<smem>>
    %331 = vector.broadcast %330 : f32 to vector<1x256xf32>
    %332 = arith.mulf %331, %82 : vector<1x256xf32>
    %333 = arith.addf %329, %332 : vector<1x256xf32>
    %c24 = arith.constant 24 : index
    %334 = memref.load %arg6[%c24] : memref<98xf32, #tpu.memory_space<smem>>
    %335 = vector.broadcast %334 : f32 to vector<1x256xf32>
    %336 = arith.mulf %335, %51 : vector<1x256xf32>
    %337 = arith.addf %333, %336 : vector<1x256xf32>
    %c73 = arith.constant 73 : index
    %338 = memref.load %arg6[%c73] : memref<98xf32, #tpu.memory_space<smem>>
    %339 = vector.broadcast %338 : f32 to vector<1x256xf32>
    %340 = arith.mulf %339, %55 : vector<1x256xf32>
    %341 = arith.addf %337, %340 : vector<1x256xf32>
    %c31 = arith.constant 31 : index
    %342 = memref.load %arg6[%c31] : memref<98xf32, #tpu.memory_space<smem>>
    %343 = vector.broadcast %342 : f32 to vector<1x256xf32>
    %344 = arith.mulf %343, %67 : vector<1x256xf32>
    %345 = arith.addf %341, %344 : vector<1x256xf32>
    %c80 = arith.constant 80 : index
    %346 = memref.load %arg6[%c80] : memref<98xf32, #tpu.memory_space<smem>>
    %347 = vector.broadcast %346 : f32 to vector<1x256xf32>
    %348 = arith.mulf %347, %85 : vector<1x256xf32>
    %349 = arith.addf %345, %348 : vector<1x256xf32>
    %c38 = arith.constant 38 : index
    %350 = memref.load %arg6[%c38] : memref<98xf32, #tpu.memory_space<smem>>
    %351 = vector.broadcast %350 : f32 to vector<1x256xf32>
    %352 = arith.mulf %351, %70 : vector<1x256xf32>
    %353 = arith.addf %349, %352 : vector<1x256xf32>
    %c87 = arith.constant 87 : index
    %354 = memref.load %arg6[%c87] : memref<98xf32, #tpu.memory_space<smem>>
    %355 = vector.broadcast %354 : f32 to vector<1x256xf32>
    %356 = arith.mulf %355, %88 : vector<1x256xf32>
    %357 = arith.addf %353, %356 : vector<1x256xf32>
    %c45 = arith.constant 45 : index
    %358 = memref.load %arg6[%c45] : memref<98xf32, #tpu.memory_space<smem>>
    %359 = vector.broadcast %358 : f32 to vector<1x256xf32>
    %360 = arith.mulf %359, %73 : vector<1x256xf32>
    %361 = arith.addf %357, %360 : vector<1x256xf32>
    %c94 = arith.constant 94 : index
    %362 = memref.load %arg6[%c94] : memref<98xf32, #tpu.memory_space<smem>>
    %363 = vector.broadcast %362 : f32 to vector<1x256xf32>
    %364 = arith.mulf %363, %91 : vector<1x256xf32>
    %365 = arith.addf %361, %364 : vector<1x256xf32>
    %366 = arith.addf %308, %365 : vector<1x256xf32>
    %cst_58 = arith.constant 0.000000e+00 : f32
    %367 = vector.broadcast %cst_58 : f32 to vector<1x256xf32>
    %c4 = arith.constant 4 : index
    %368 = memref.load %arg6[%c4] : memref<98xf32, #tpu.memory_space<smem>>
    %369 = vector.broadcast %368 : f32 to vector<1x256xf32>
    %370 = arith.mulf %369, %58 : vector<1x256xf32>
    %371 = arith.addf %367, %370 : vector<1x256xf32>
    %c53 = arith.constant 53 : index
    %372 = memref.load %arg6[%c53] : memref<98xf32, #tpu.memory_space<smem>>
    %373 = vector.broadcast %372 : f32 to vector<1x256xf32>
    %374 = arith.mulf %373, %76 : vector<1x256xf32>
    %375 = arith.addf %371, %374 : vector<1x256xf32>
    %c11 = arith.constant 11 : index
    %376 = memref.load %arg6[%c11] : memref<98xf32, #tpu.memory_space<smem>>
    %377 = vector.broadcast %376 : f32 to vector<1x256xf32>
    %378 = arith.mulf %377, %61 : vector<1x256xf32>
    %379 = arith.addf %375, %378 : vector<1x256xf32>
    %c60 = arith.constant 60 : index
    %380 = memref.load %arg6[%c60] : memref<98xf32, #tpu.memory_space<smem>>
    %381 = vector.broadcast %380 : f32 to vector<1x256xf32>
    %382 = arith.mulf %381, %79 : vector<1x256xf32>
    %383 = arith.addf %379, %382 : vector<1x256xf32>
    %c18 = arith.constant 18 : index
    %384 = memref.load %arg6[%c18] : memref<98xf32, #tpu.memory_space<smem>>
    %385 = vector.broadcast %384 : f32 to vector<1x256xf32>
    %386 = arith.mulf %385, %64 : vector<1x256xf32>
    %387 = arith.addf %383, %386 : vector<1x256xf32>
    %c67 = arith.constant 67 : index
    %388 = memref.load %arg6[%c67] : memref<98xf32, #tpu.memory_space<smem>>
    %389 = vector.broadcast %388 : f32 to vector<1x256xf32>
    %390 = arith.mulf %389, %82 : vector<1x256xf32>
    %391 = arith.addf %387, %390 : vector<1x256xf32>
    %c25 = arith.constant 25 : index
    %392 = memref.load %arg6[%c25] : memref<98xf32, #tpu.memory_space<smem>>
    %393 = vector.broadcast %392 : f32 to vector<1x256xf32>
    %394 = arith.mulf %393, %51 : vector<1x256xf32>
    %395 = arith.addf %391, %394 : vector<1x256xf32>
    %c74 = arith.constant 74 : index
    %396 = memref.load %arg6[%c74] : memref<98xf32, #tpu.memory_space<smem>>
    %397 = vector.broadcast %396 : f32 to vector<1x256xf32>
    %398 = arith.mulf %397, %55 : vector<1x256xf32>
    %399 = arith.addf %395, %398 : vector<1x256xf32>
    %c32 = arith.constant 32 : index
    %400 = memref.load %arg6[%c32] : memref<98xf32, #tpu.memory_space<smem>>
    %401 = vector.broadcast %400 : f32 to vector<1x256xf32>
    %402 = arith.mulf %401, %67 : vector<1x256xf32>
    %403 = arith.addf %399, %402 : vector<1x256xf32>
    %c81 = arith.constant 81 : index
    %404 = memref.load %arg6[%c81] : memref<98xf32, #tpu.memory_space<smem>>
    %405 = vector.broadcast %404 : f32 to vector<1x256xf32>
    %406 = arith.mulf %405, %85 : vector<1x256xf32>
    %407 = arith.addf %403, %406 : vector<1x256xf32>
    %c39 = arith.constant 39 : index
    %408 = memref.load %arg6[%c39] : memref<98xf32, #tpu.memory_space<smem>>
    %409 = vector.broadcast %408 : f32 to vector<1x256xf32>
    %410 = arith.mulf %409, %70 : vector<1x256xf32>
    %411 = arith.addf %407, %410 : vector<1x256xf32>
    %c88 = arith.constant 88 : index
    %412 = memref.load %arg6[%c88] : memref<98xf32, #tpu.memory_space<smem>>
    %413 = vector.broadcast %412 : f32 to vector<1x256xf32>
    %414 = arith.mulf %413, %88 : vector<1x256xf32>
    %415 = arith.addf %411, %414 : vector<1x256xf32>
    %c46 = arith.constant 46 : index
    %416 = memref.load %arg6[%c46] : memref<98xf32, #tpu.memory_space<smem>>
    %417 = vector.broadcast %416 : f32 to vector<1x256xf32>
    %418 = arith.mulf %417, %73 : vector<1x256xf32>
    %419 = arith.addf %415, %418 : vector<1x256xf32>
    %c95 = arith.constant 95 : index
    %420 = memref.load %arg6[%c95] : memref<98xf32, #tpu.memory_space<smem>>
    %421 = vector.broadcast %420 : f32 to vector<1x256xf32>
    %422 = arith.mulf %421, %91 : vector<1x256xf32>
    %423 = arith.addf %419, %422 : vector<1x256xf32>
    %cst_59 = arith.constant 0.000000e+00 : f32
    %424 = vector.broadcast %cst_59 : f32 to vector<1x1xf32>
    %425 = vector.extract_strided_slice %423 {offsets = [0, 1], sizes = [1, 255], strides = [1, 1]} : vector<1x256xf32> to vector<1x255xf32>
    %426 = tpu.concatenate %425, %424 in 1 : vector<1x255xf32>, vector<1x1xf32> -> vector<1x256xf32>
    %c1_i32_60 = arith.constant 1 : i32
    %427 = vector.broadcast %c1_i32_60 : i32 to vector<1x256xi32>
    %428 = arith.addi %20, %427 : vector<1x256xi32>
    %c0_i32_61 = arith.constant 0 : i32
    %429 = vector.broadcast %c0_i32_61 : i32 to vector<1x256xi32>
    %430 = arith.cmpi sge, %428, %429 : vector<1x256xi32>
    %c1_i32_62 = arith.constant 1 : i32
    %431 = vector.broadcast %c1_i32_62 : i32 to vector<1x256xi32>
    %432 = arith.addi %20, %431 : vector<1x256xi32>
    %c16_i32_63 = arith.constant 16 : i32
    %433 = vector.broadcast %c16_i32_63 : i32 to vector<1x256xi32>
    %434 = arith.cmpi slt, %432, %433 : vector<1x256xi32>
    %435 = arith.andi %430, %434 : vector<1x256xi1>
    %cst_64 = arith.constant 0.000000e+00 : f32
    %436 = vector.broadcast %cst_64 : f32 to vector<1x256xf32>
    %437 = arith.select %435, %426, %436 : vector<1x256xi1>, vector<1x256xf32>
    %438 = arith.addf %366, %437 : vector<1x256xf32>
    %cst_65 = arith.constant 0.000000e+00 : f32
    %439 = vector.broadcast %cst_65 : f32 to vector<1x256xf32>
    %c5 = arith.constant 5 : index
    %440 = memref.load %arg6[%c5] : memref<98xf32, #tpu.memory_space<smem>>
    %441 = vector.broadcast %440 : f32 to vector<1x256xf32>
    %442 = arith.mulf %441, %58 : vector<1x256xf32>
    %443 = arith.addf %439, %442 : vector<1x256xf32>
    %c54 = arith.constant 54 : index
    %444 = memref.load %arg6[%c54] : memref<98xf32, #tpu.memory_space<smem>>
    %445 = vector.broadcast %444 : f32 to vector<1x256xf32>
    %446 = arith.mulf %445, %76 : vector<1x256xf32>
    %447 = arith.addf %443, %446 : vector<1x256xf32>
    %c12 = arith.constant 12 : index
    %448 = memref.load %arg6[%c12] : memref<98xf32, #tpu.memory_space<smem>>
    %449 = vector.broadcast %448 : f32 to vector<1x256xf32>
    %450 = arith.mulf %449, %61 : vector<1x256xf32>
    %451 = arith.addf %447, %450 : vector<1x256xf32>
    %c61 = arith.constant 61 : index
    %452 = memref.load %arg6[%c61] : memref<98xf32, #tpu.memory_space<smem>>
    %453 = vector.broadcast %452 : f32 to vector<1x256xf32>
    %454 = arith.mulf %453, %79 : vector<1x256xf32>
    %455 = arith.addf %451, %454 : vector<1x256xf32>
    %c19 = arith.constant 19 : index
    %456 = memref.load %arg6[%c19] : memref<98xf32, #tpu.memory_space<smem>>
    %457 = vector.broadcast %456 : f32 to vector<1x256xf32>
    %458 = arith.mulf %457, %64 : vector<1x256xf32>
    %459 = arith.addf %455, %458 : vector<1x256xf32>
    %c68 = arith.constant 68 : index
    %460 = memref.load %arg6[%c68] : memref<98xf32, #tpu.memory_space<smem>>
    %461 = vector.broadcast %460 : f32 to vector<1x256xf32>
    %462 = arith.mulf %461, %82 : vector<1x256xf32>
    %463 = arith.addf %459, %462 : vector<1x256xf32>
    %c26 = arith.constant 26 : index
    %464 = memref.load %arg6[%c26] : memref<98xf32, #tpu.memory_space<smem>>
    %465 = vector.broadcast %464 : f32 to vector<1x256xf32>
    %466 = arith.mulf %465, %51 : vector<1x256xf32>
    %467 = arith.addf %463, %466 : vector<1x256xf32>
    %c75 = arith.constant 75 : index
    %468 = memref.load %arg6[%c75] : memref<98xf32, #tpu.memory_space<smem>>
    %469 = vector.broadcast %468 : f32 to vector<1x256xf32>
    %470 = arith.mulf %469, %55 : vector<1x256xf32>
    %471 = arith.addf %467, %470 : vector<1x256xf32>
    %c33 = arith.constant 33 : index
    %472 = memref.load %arg6[%c33] : memref<98xf32, #tpu.memory_space<smem>>
    %473 = vector.broadcast %472 : f32 to vector<1x256xf32>
    %474 = arith.mulf %473, %67 : vector<1x256xf32>
    %475 = arith.addf %471, %474 : vector<1x256xf32>
    %c82 = arith.constant 82 : index
    %476 = memref.load %arg6[%c82] : memref<98xf32, #tpu.memory_space<smem>>
    %477 = vector.broadcast %476 : f32 to vector<1x256xf32>
    %478 = arith.mulf %477, %85 : vector<1x256xf32>
    %479 = arith.addf %475, %478 : vector<1x256xf32>
    %c40 = arith.constant 40 : index
    %480 = memref.load %arg6[%c40] : memref<98xf32, #tpu.memory_space<smem>>
    %481 = vector.broadcast %480 : f32 to vector<1x256xf32>
    %482 = arith.mulf %481, %70 : vector<1x256xf32>
    %483 = arith.addf %479, %482 : vector<1x256xf32>
    %c89 = arith.constant 89 : index
    %484 = memref.load %arg6[%c89] : memref<98xf32, #tpu.memory_space<smem>>
    %485 = vector.broadcast %484 : f32 to vector<1x256xf32>
    %486 = arith.mulf %485, %88 : vector<1x256xf32>
    %487 = arith.addf %483, %486 : vector<1x256xf32>
    %c47 = arith.constant 47 : index
    %488 = memref.load %arg6[%c47] : memref<98xf32, #tpu.memory_space<smem>>
    %489 = vector.broadcast %488 : f32 to vector<1x256xf32>
    %490 = arith.mulf %489, %73 : vector<1x256xf32>
    %491 = arith.addf %487, %490 : vector<1x256xf32>
    %c96 = arith.constant 96 : index
    %492 = memref.load %arg6[%c96] : memref<98xf32, #tpu.memory_space<smem>>
    %493 = vector.broadcast %492 : f32 to vector<1x256xf32>
    %494 = arith.mulf %493, %91 : vector<1x256xf32>
    %495 = arith.addf %491, %494 : vector<1x256xf32>
    %cst_66 = arith.constant 0.000000e+00 : f32
    %496 = vector.broadcast %cst_66 : f32 to vector<1x2xf32>
    %497 = vector.extract_strided_slice %495 {offsets = [0, 2], sizes = [1, 254], strides = [1, 1]} : vector<1x256xf32> to vector<1x254xf32>
    %498 = tpu.concatenate %497, %496 in 1 : vector<1x254xf32>, vector<1x2xf32> -> vector<1x256xf32>
    %c2_i32 = arith.constant 2 : i32
    %499 = vector.broadcast %c2_i32 : i32 to vector<1x256xi32>
    %500 = arith.addi %20, %499 : vector<1x256xi32>
    %c0_i32_67 = arith.constant 0 : i32
    %501 = vector.broadcast %c0_i32_67 : i32 to vector<1x256xi32>
    %502 = arith.cmpi sge, %500, %501 : vector<1x256xi32>
    %c2_i32_68 = arith.constant 2 : i32
    %503 = vector.broadcast %c2_i32_68 : i32 to vector<1x256xi32>
    %504 = arith.addi %20, %503 : vector<1x256xi32>
    %c16_i32_69 = arith.constant 16 : i32
    %505 = vector.broadcast %c16_i32_69 : i32 to vector<1x256xi32>
    %506 = arith.cmpi slt, %504, %505 : vector<1x256xi32>
    %507 = arith.andi %502, %506 : vector<1x256xi1>
    %cst_70 = arith.constant 0.000000e+00 : f32
    %508 = vector.broadcast %cst_70 : f32 to vector<1x256xf32>
    %509 = arith.select %507, %498, %508 : vector<1x256xi1>, vector<1x256xf32>
    %510 = arith.addf %438, %509 : vector<1x256xf32>
    %cst_71 = arith.constant 0.000000e+00 : f32
    %511 = vector.broadcast %cst_71 : f32 to vector<1x256xf32>
    %c6 = arith.constant 6 : index
    %512 = memref.load %arg6[%c6] : memref<98xf32, #tpu.memory_space<smem>>
    %513 = vector.broadcast %512 : f32 to vector<1x256xf32>
    %514 = arith.mulf %513, %58 : vector<1x256xf32>
    %515 = arith.addf %511, %514 : vector<1x256xf32>
    %c55 = arith.constant 55 : index
    %516 = memref.load %arg6[%c55] : memref<98xf32, #tpu.memory_space<smem>>
    %517 = vector.broadcast %516 : f32 to vector<1x256xf32>
    %518 = arith.mulf %517, %76 : vector<1x256xf32>
    %519 = arith.addf %515, %518 : vector<1x256xf32>
    %c13 = arith.constant 13 : index
    %520 = memref.load %arg6[%c13] : memref<98xf32, #tpu.memory_space<smem>>
    %521 = vector.broadcast %520 : f32 to vector<1x256xf32>
    %522 = arith.mulf %521, %61 : vector<1x256xf32>
    %523 = arith.addf %519, %522 : vector<1x256xf32>
    %c62 = arith.constant 62 : index
    %524 = memref.load %arg6[%c62] : memref<98xf32, #tpu.memory_space<smem>>
    %525 = vector.broadcast %524 : f32 to vector<1x256xf32>
    %526 = arith.mulf %525, %79 : vector<1x256xf32>
    %527 = arith.addf %523, %526 : vector<1x256xf32>
    %c20 = arith.constant 20 : index
    %528 = memref.load %arg6[%c20] : memref<98xf32, #tpu.memory_space<smem>>
    %529 = vector.broadcast %528 : f32 to vector<1x256xf32>
    %530 = arith.mulf %529, %64 : vector<1x256xf32>
    %531 = arith.addf %527, %530 : vector<1x256xf32>
    %c69 = arith.constant 69 : index
    %532 = memref.load %arg6[%c69] : memref<98xf32, #tpu.memory_space<smem>>
    %533 = vector.broadcast %532 : f32 to vector<1x256xf32>
    %534 = arith.mulf %533, %82 : vector<1x256xf32>
    %535 = arith.addf %531, %534 : vector<1x256xf32>
    %c27 = arith.constant 27 : index
    %536 = memref.load %arg6[%c27] : memref<98xf32, #tpu.memory_space<smem>>
    %537 = vector.broadcast %536 : f32 to vector<1x256xf32>
    %538 = arith.mulf %537, %51 : vector<1x256xf32>
    %539 = arith.addf %535, %538 : vector<1x256xf32>
    %c76 = arith.constant 76 : index
    %540 = memref.load %arg6[%c76] : memref<98xf32, #tpu.memory_space<smem>>
    %541 = vector.broadcast %540 : f32 to vector<1x256xf32>
    %542 = arith.mulf %541, %55 : vector<1x256xf32>
    %543 = arith.addf %539, %542 : vector<1x256xf32>
    %c34 = arith.constant 34 : index
    %544 = memref.load %arg6[%c34] : memref<98xf32, #tpu.memory_space<smem>>
    %545 = vector.broadcast %544 : f32 to vector<1x256xf32>
    %546 = arith.mulf %545, %67 : vector<1x256xf32>
    %547 = arith.addf %543, %546 : vector<1x256xf32>
    %c83 = arith.constant 83 : index
    %548 = memref.load %arg6[%c83] : memref<98xf32, #tpu.memory_space<smem>>
    %549 = vector.broadcast %548 : f32 to vector<1x256xf32>
    %550 = arith.mulf %549, %85 : vector<1x256xf32>
    %551 = arith.addf %547, %550 : vector<1x256xf32>
    %c41 = arith.constant 41 : index
    %552 = memref.load %arg6[%c41] : memref<98xf32, #tpu.memory_space<smem>>
    %553 = vector.broadcast %552 : f32 to vector<1x256xf32>
    %554 = arith.mulf %553, %70 : vector<1x256xf32>
    %555 = arith.addf %551, %554 : vector<1x256xf32>
    %c90 = arith.constant 90 : index
    %556 = memref.load %arg6[%c90] : memref<98xf32, #tpu.memory_space<smem>>
    %557 = vector.broadcast %556 : f32 to vector<1x256xf32>
    %558 = arith.mulf %557, %88 : vector<1x256xf32>
    %559 = arith.addf %555, %558 : vector<1x256xf32>
    %c48 = arith.constant 48 : index
    %560 = memref.load %arg6[%c48] : memref<98xf32, #tpu.memory_space<smem>>
    %561 = vector.broadcast %560 : f32 to vector<1x256xf32>
    %562 = arith.mulf %561, %73 : vector<1x256xf32>
    %563 = arith.addf %559, %562 : vector<1x256xf32>
    %c97 = arith.constant 97 : index
    %564 = memref.load %arg6[%c97] : memref<98xf32, #tpu.memory_space<smem>>
    %565 = vector.broadcast %564 : f32 to vector<1x256xf32>
    %566 = arith.mulf %565, %91 : vector<1x256xf32>
    %567 = arith.addf %563, %566 : vector<1x256xf32>
    %cst_72 = arith.constant 0.000000e+00 : f32
    %568 = vector.broadcast %cst_72 : f32 to vector<1x3xf32>
    %569 = vector.extract_strided_slice %567 {offsets = [0, 3], sizes = [1, 253], strides = [1, 1]} : vector<1x256xf32> to vector<1x253xf32>
    %570 = tpu.concatenate %569, %568 in 1 : vector<1x253xf32>, vector<1x3xf32> -> vector<1x256xf32>
    %c3_i32 = arith.constant 3 : i32
    %571 = vector.broadcast %c3_i32 : i32 to vector<1x256xi32>
    %572 = arith.addi %20, %571 : vector<1x256xi32>
    %c0_i32_73 = arith.constant 0 : i32
    %573 = vector.broadcast %c0_i32_73 : i32 to vector<1x256xi32>
    %574 = arith.cmpi sge, %572, %573 : vector<1x256xi32>
    %c3_i32_74 = arith.constant 3 : i32
    %575 = vector.broadcast %c3_i32_74 : i32 to vector<1x256xi32>
    %576 = arith.addi %20, %575 : vector<1x256xi32>
    %c16_i32_75 = arith.constant 16 : i32
    %577 = vector.broadcast %c16_i32_75 : i32 to vector<1x256xi32>
    %578 = arith.cmpi slt, %576, %577 : vector<1x256xi32>
    %579 = arith.andi %574, %578 : vector<1x256xi1>
    %cst_76 = arith.constant 0.000000e+00 : f32
    %580 = vector.broadcast %cst_76 : f32 to vector<1x256xf32>
    %581 = arith.select %579, %570, %580 : vector<1x256xi1>, vector<1x256xf32>
    %582 = arith.addf %510, %581 : vector<1x256xf32>
    %c0_77 = arith.constant 0 : index
    %583 = memref.load %arg7[%c0_77] : memref<2xf32, #tpu.memory_space<smem>>
    %584 = vector.broadcast %583 : f32 to vector<1x256xf32>
    %585 = arith.mulf %582, %584 : vector<1x256xf32>
    %c1_78 = arith.constant 1 : index
    %586 = memref.load %arg7[%c1_78] : memref<2xf32, #tpu.memory_space<smem>>
    %587 = vector.broadcast %586 : f32 to vector<1x256xf32>
    %588 = arith.addf %585, %587 : vector<1x256xf32>
    %589 = arith.negf %588 : vector<1x256xf32>
    %590 = math.exp %589 : vector<1x256xf32>
    %cst_79 = arith.constant 1.000000e+00 : f32
    %591 = vector.broadcast %cst_79 : f32 to vector<1x256xf32>
    %592 = arith.addf %591, %590 : vector<1x256xf32>
    %593 = arith.divf %591, %592 : vector<1x256xf32>
    %594 = vector.broadcast %593 : vector<1x256xf32> to vector<32x256xf32>
    %595 = arith.mulf %49, %594 : vector<32x256xf32>
    %596 = arith.truncf %595 : vector<32x256xf32> to vector<32x256xbf16>
    %c0_80 = arith.constant 0 : index
    %c0_81 = arith.constant 0 : index
    %c0_82 = arith.constant 0 : index
    %597 = vector.load %arg8[%c0_80, %c0_81, %c0_82] : memref<1x32x256xbf16, #tpu.memory_space<vmem>>, vector<1x32x256xbf16>
    %598 = vector.shape_cast %597 : vector<1x32x256xbf16> to vector<32x256xbf16>
    %599 = vector.shape_cast %596 : vector<32x256xbf16> to vector<1x32x256xbf16>
    tpu.vector_store %arg8[%c0_80, %c0_81, %c0_82], %599 {strides = array<i32>} : memref<1x32x256xbf16, #tpu.memory_space<vmem>>, vector<1x32x256xbf16>,
    return
  }
  func.func @transform_0(%arg0: i32) -> (i32, i32, i32) {
    %c0_i32 = arith.constant 0 : i32
    %c0_i32_0 = arith.constant 0 : i32
    %c0_i32_1 = arith.constant 0 : i32
    return %arg0, %c0_i32, %c0_i32_0 : i32, i32, i32
  }
  func.func @transform_1(%arg0: i32) -> (i32, i32) {
    %c0_i32 = arith.constant 0 : i32
    %c0_i32_0 = arith.constant 0 : i32
    %c0_i32_1 = arith.constant 0 : i32
    return %c0_i32, %c0_i32_0 : i32, i32
  }
  func.func @transform_2(%arg0: i32) -> (i32, i32) {
    %c0_i32 = arith.constant 0 : i32
    %c0_i32_0 = arith.constant 0 : i32
    %c0_i32_1 = arith.constant 0 : i32
    return %c0_i32, %c0_i32_0 : i32, i32
  }
  func.func @transform_3(%arg0: i32) -> (i32, i32) {
    %c0_i32 = arith.constant 0 : i32
    %c0_i32_0 = arith.constant 0 : i32
    %c0_i32_1 = arith.constant 0 : i32
    return %c0_i32, %c0_i32_0 : i32, i32
  }
  func.func @transform_4(%arg0: i32) -> (i32, i32) {
    %c0_i32 = arith.constant 0 : i32
    %c0_i32_0 = arith.constant 0 : i32
    %c0_i32_1 = arith.constant 0 : i32
    return %c0_i32, %c0_i32_0 : i32, i32
  }
  func.func @transform_5(%arg0: i32) -> i32 {
    %c0_i32 = arith.constant 0 : i32
    %c0_i32_0 = arith.constant 0 : i32
    return %c0_i32 : i32
  }
  func.func @transform_6(%arg0: i32) -> i32 {
    %c0_i32 = arith.constant 0 : i32
    %c0_i32_0 = arith.constant 0 : i32
    return %c0_i32 : i32
  }
  func.func @transform_7(%arg0: i32) -> (i32, i32, i32) {
    %c0_i32 = arith.constant 0 : i32
    %c0_i32_0 = arith.constant 0 : i32
    %c0_i32_1 = arith.constant 0 : i32
    return %arg0, %c0_i32, %c0_i32_0 : i32, i32, i32
  }
}

module attributes {stable_mosaic.version = 11 : i64} {
  func.func @kernel(%arg0: i32, %arg1: memref<1x32x256xbf16, #tpu.memory_space<vmem>>, %arg2: memref<2x32xf32, #tpu.memory_space<vmem>>, %arg3: memref<2x1xf32, #tpu.memory_space<vmem>>, %arg4: memref<32x2xf32, #tpu.memory_space<vmem>>, %arg5: memref<32x1xf32, #tpu.memory_space<vmem>>, %arg6: memref<98xf32, #tpu.memory_space<smem>>, %arg7: memref<2xf32, #tpu.memory_space<smem>>, %arg8: memref<1x32x256xbf16, #tpu.memory_space<vmem>>) attributes {dimension_semantics = [#tpu.dimension_semantics<parallel>], iteration_bounds = array<i64: 2>, scalar_prefetch = 0 : i64, scratch_operands = 0 : i64, tpu.core_type = #tpu.core_type<tc>, window_params = [{transform_indices = @transform_0, window_bounds = array<i64: 1, 32, 256>}, {pipeline_mode = #tpu.pipeline_mode<synchronous>, transform_indices = @transform_1, window_bounds = array<i64: 2, 32>}, {pipeline_mode = #tpu.pipeline_mode<synchronous>, transform_indices = @transform_2, window_bounds = array<i64: 2, 1>}, {pipeline_mode = #tpu.pipeline_mode<synchronous>, transform_indices = @transform_3, window_bounds = array<i64: 32, 2>}, {pipeline_mode = #tpu.pipeline_mode<synchronous>, transform_indices = @transform_4, window_bounds = array<i64: 32, 1>}, {transform_indices = @transform_5, window_bounds = array<i64: 98>}, {transform_indices = @transform_6, window_bounds = array<i64: 2>}, {transform_indices = @transform_7, window_bounds = array<i64: 1, 32, 256>}]} {
    %c0 = arith.constant 0 : index
    %c0_0 = arith.constant 0 : index
    %0 = vector.load %arg2[%c0, %c0_0] : memref<2x32xf32, #tpu.memory_space<vmem>>, vector<2x32xf32>
    %c0_1 = arith.constant 0 : index
    %c0_2 = arith.constant 0 : index
    %1 = vector.load %arg3[%c0_1, %c0_2] : memref<2x1xf32, #tpu.memory_space<vmem>>, vector<2x1xf32>
    %c0_3 = arith.constant 0 : index
    %c0_4 = arith.constant 0 : index
    %2 = vector.load %arg4[%c0_3, %c0_4] : memref<32x2xf32, #tpu.memory_space<vmem>>, vector<32x2xf32>
    %c0_5 = arith.constant 0 : index
    %c0_6 = arith.constant 0 : index
    %3 = vector.load %arg5[%c0_5, %c0_6] : memref<32x1xf32, #tpu.memory_space<vmem>>, vector<32x1xf32>
    %4 = tpu.iota {dimensions = array<i32: 1>} : vector<1x256xi32>
    %c16_i32 = arith.constant 16 : i32
    %c0_i32 = arith.constant 0 : i32
    %5 = arith.cmpi eq, %c16_i32, %c0_i32 : i32
    %c1_i32 = arith.constant 1 : i32
    %6 = arith.select %5, %c1_i32, %c16_i32 : i32
    %7 = vector.broadcast %6 : i32 to vector<1x256xi32>
    %8 = arith.remsi %4, %7 : vector<1x256xi32>
    %c0_i32_7 = arith.constant 0 : i32
    %9 = vector.broadcast %c0_i32_7 : i32 to vector<1x256xi32>
    %10 = arith.cmpi ne, %8, %9 : vector<1x256xi32>
    %c0_i32_8 = arith.constant 0 : i32
    %11 = vector.broadcast %c0_i32_8 : i32 to vector<1x256xi32>
    %12 = arith.cmpi slt, %8, %11 : vector<1x256xi32>
    %c0_i32_9 = arith.constant 0 : i32
    %13 = arith.cmpi slt, %6, %c0_i32_9 : i32
    %14 = vector.broadcast %13 : i1 to vector<1x256xi1>
    %15 = vector.broadcast %14 : vector<1x256xi1> to vector<1x256xi1>
    %16 = arith.xori %12, %15 : vector<1x256xi1>
    %17 = arith.andi %16, %10 : vector<1x256xi1>
    %18 = vector.broadcast %6 : i32 to vector<1x256xi32>
    %19 = arith.addi %8, %18 : vector<1x256xi32>
    %20 = arith.select %17, %19, %8 : vector<1x256xi1>, vector<1x256xi32>
    %c0_10 = arith.constant 0 : index
    %c0_11 = arith.constant 0 : index
    %c0_12 = arith.constant 0 : index
    %21 = vector.load %arg1[%c0_10, %c0_11, %c0_12] : memref<1x32x256xbf16, #tpu.memory_space<vmem>>, vector<1x32x256xbf16>
    %22 = vector.shape_cast %21 : vector<1x32x256xbf16> to vector<32x256xbf16>
    %23 = arith.extf %22 : vector<32x256xbf16> to vector<32x256xf32>
    %cst = arith.constant dense<0.000000e+00> : vector<32xf32>
    %24 = vector.multi_reduction <add>, %23, %cst [1] : vector<32x256xf32> to vector<32xf32>
    %25 = vector.shape_cast %24 : vector<32xf32> to vector<32x1xf32>
    %cst_13 = arith.constant 3.906250e-03 : f32
    %26 = vector.broadcast %cst_13 : f32 to vector<32x1xf32>
    %27 = arith.mulf %25, %26 : vector<32x1xf32>
    %cst_14 = arith.constant dense<0xFF800000> : vector<32xf32>
    %28 = vector.multi_reduction <maximumf>, %23, %cst_14 [1] : vector<32x256xf32> to vector<32xf32>
    %29 = vector.shape_cast %28 : vector<32xf32> to vector<32x1xf32>
    %cst_15 = arith.constant dense<0.000000e+00> : vector<2x1xf32>
    %30 = tpu.matmul %0, %27, %cst_15 {dimension_numbers = #tpu.dot_dimension_numbers<[1], [0], [0], [1], [0, 0, 1, 1], [], []>} : vector<2x32xf32>, vector<32x1xf32>, vector<2x1xf32> -> vector<2x1xf32>
    %31 = arith.addf %30, %1 : vector<2x1xf32>
    %cst_16 = arith.constant 0.000000e+00 : f32
    %32 = vector.broadcast %cst_16 : f32 to vector<2x1xf32>
    %33 = arith.maximumf %31, %32 : vector<2x1xf32>
    %cst_17 = arith.constant dense<0.000000e+00> : vector<32x1xf32>
    %34 = tpu.matmul %2, %33, %cst_17 {dimension_numbers = #tpu.dot_dimension_numbers<[1], [0], [0], [1], [0, 0, 1, 1], [], []>} : vector<32x2xf32>, vector<2x1xf32>, vector<32x1xf32> -> vector<32x1xf32>
    %35 = arith.addf %34, %3 : vector<32x1xf32>
    %cst_18 = arith.constant dense<0.000000e+00> : vector<2x1xf32>
    %36 = tpu.matmul %0, %29, %cst_18 {dimension_numbers = #tpu.dot_dimension_numbers<[1], [0], [0], [1], [0, 0, 1, 1], [], []>} : vector<2x32xf32>, vector<32x1xf32>, vector<2x1xf32> -> vector<2x1xf32>
    %37 = arith.addf %36, %1 : vector<2x1xf32>
    %cst_19 = arith.constant 0.000000e+00 : f32
    %38 = vector.broadcast %cst_19 : f32 to vector<2x1xf32>
    %39 = arith.maximumf %37, %38 : vector<2x1xf32>
    %cst_20 = arith.constant dense<0.000000e+00> : vector<32x1xf32>
    %40 = tpu.matmul %2, %39, %cst_20 {dimension_numbers = #tpu.dot_dimension_numbers<[1], [0], [0], [1], [0, 0, 1, 1], [], []>} : vector<32x2xf32>, vector<2x1xf32>, vector<32x1xf32> -> vector<32x1xf32>
    %41 = arith.addf %40, %3 : vector<32x1xf32>
    %42 = arith.addf %35, %41 : vector<32x1xf32>
    %43 = arith.negf %42 : vector<32x1xf32>
    %44 = math.exp %43 : vector<32x1xf32>
    %cst_21 = arith.constant 1.000000e+00 : f32
    %45 = vector.broadcast %cst_21 : f32 to vector<32x1xf32>
    %46 = arith.addf %45, %44 : vector<32x1xf32>
    %47 = arith.divf %45, %46 : vector<32x1xf32>
    %48 = vector.broadcast %47 : vector<32x1xf32> to vector<32x256xf32>
    %49 = arith.mulf %23, %48 : vector<32x256xf32>
    %cst_22 = arith.constant dense<0xFF800000> : vector<256xf32>
    %50 = vector.multi_reduction <maximumf>, %49, %cst_22 [0] : vector<32x256xf32> to vector<256xf32>
    %51 = vector.shape_cast %50 : vector<256xf32> to vector<1x256xf32>
    %cst_23 = arith.constant dense<0.000000e+00> : vector<256xf32>
    %52 = vector.multi_reduction <add>, %49, %cst_23 [0] : vector<32x256xf32> to vector<256xf32>
    %53 = vector.shape_cast %52 : vector<256xf32> to vector<1x256xf32>
    %cst_24 = arith.constant 3.125000e-02 : f32
    %54 = vector.broadcast %cst_24 : f32 to vector<1x256xf32>
    %55 = arith.mulf %53, %54 : vector<1x256xf32>
    %cst_25 = arith.constant 0.000000e+00 : f32
    %56 = vector.broadcast %cst_25 : f32 to vector<1x48xf32>
    %57 = vector.extract_strided_slice %51 {offsets = [0, 0], sizes = [1, 208], strides = [1, 1]} : vector<1x256xf32> to vector<1x208xf32>
    %58 = tpu.concatenate %56, %57 in 1 : vector<1x48xf32>, vector<1x208xf32> -> vector<1x256xf32>
    %cst_26 = arith.constant 0.000000e+00 : f32
    %59 = vector.broadcast %cst_26 : f32 to vector<1x32xf32>
    %60 = vector.extract_strided_slice %51 {offsets = [0, 0], sizes = [1, 224], strides = [1, 1]} : vector<1x256xf32> to vector<1x224xf32>
    %61 = tpu.concatenate %59, %60 in 1 : vector<1x32xf32>, vector<1x224xf32> -> vector<1x256xf32>
    %cst_27 = arith.constant 0.000000e+00 : f32
    %62 = vector.broadcast %cst_27 : f32 to vector<1x16xf32>
    %63 = vector.extract_strided_slice %51 {offsets = [0, 0], sizes = [1, 240], strides = [1, 1]} : vector<1x256xf32> to vector<1x240xf32>
    %64 = tpu.concatenate %62, %63 in 1 : vector<1x16xf32>, vector<1x240xf32> -> vector<1x256xf32>
    %cst_28 = arith.constant 0.000000e+00 : f32
    %65 = vector.broadcast %cst_28 : f32 to vector<1x16xf32>
    %66 = vector.extract_strided_slice %51 {offsets = [0, 16], sizes = [1, 240], strides = [1, 1]} : vector<1x256xf32> to vector<1x240xf32>
    %67 = tpu.concatenate %66, %65 in 1 : vector<1x240xf32>, vector<1x16xf32> -> vector<1x256xf32>
    %cst_29 = arith.constant 0.000000e+00 : f32
    %68 = vector.broadcast %cst_29 : f32 to vector<1x32xf32>
    %69 = vector.extract_strided_slice %51 {offsets = [0, 32], sizes = [1, 224], strides = [1, 1]} : vector<1x256xf32> to vector<1x224xf32>
    %70 = tpu.concatenate %69, %68 in 1 : vector<1x224xf32>, vector<1x32xf32> -> vector<1x256xf32>
    %cst_30 = arith.constant 0.000000e+00 : f32
    %71 = vector.broadcast %cst_30 : f32 to vector<1x48xf32>
    %72 = vector.extract_strided_slice %51 {offsets = [0, 48], sizes = [1, 208], strides = [1, 1]} : vector<1x256xf32> to vector<1x208xf32>
    %73 = tpu.concatenate %72, %71 in 1 : vector<1x208xf32>, vector<1x48xf32> -> vector<1x256xf32>
    %cst_31 = arith.constant 0.000000e+00 : f32
    %74 = vector.broadcast %cst_31 : f32 to vector<1x48xf32>
    %75 = vector.extract_strided_slice %55 {offsets = [0, 0], sizes = [1, 208], strides = [1, 1]} : vector<1x256xf32> to vector<1x208xf32>
    %76 = tpu.concatenate %74, %75 in 1 : vector<1x48xf32>, vector<1x208xf32> -> vector<1x256xf32>
    %cst_32 = arith.constant 0.000000e+00 : f32
    %77 = vector.broadcast %cst_32 : f32 to vector<1x32xf32>
    %78 = vector.extract_strided_slice %55 {offsets = [0, 0], sizes = [1, 224], strides = [1, 1]} : vector<1x256xf32> to vector<1x224xf32>
    %79 = tpu.concatenate %77, %78 in 1 : vector<1x32xf32>, vector<1x224xf32> -> vector<1x256xf32>
    %cst_33 = arith.constant 0.000000e+00 : f32
    %80 = vector.broadcast %cst_33 : f32 to vector<1x16xf32>
    %81 = vector.extract_strided_slice %55 {offsets = [0, 0], sizes = [1, 240], strides = [1, 1]} : vector<1x256xf32> to vector<1x240xf32>
    %82 = tpu.concatenate %80, %81 in 1 : vector<1x16xf32>, vector<1x240xf32> -> vector<1x256xf32>
    %cst_34 = arith.constant 0.000000e+00 : f32
    %83 = vector.broadcast %cst_34 : f32 to vector<1x16xf32>
    %84 = vector.extract_strided_slice %55 {offsets = [0, 16], sizes = [1, 240], strides = [1, 1]} : vector<1x256xf32> to vector<1x240xf32>
    %85 = tpu.concatenate %84, %83 in 1 : vector<1x240xf32>, vector<1x16xf32> -> vector<1x256xf32>
    %cst_35 = arith.constant 0.000000e+00 : f32
    %86 = vector.broadcast %cst_35 : f32 to vector<1x32xf32>
    %87 = vector.extract_strided_slice %55 {offsets = [0, 32], sizes = [1, 224], strides = [1, 1]} : vector<1x256xf32> to vector<1x224xf32>
    %88 = tpu.concatenate %87, %86 in 1 : vector<1x224xf32>, vector<1x32xf32> -> vector<1x256xf32>
    %cst_36 = arith.constant 0.000000e+00 : f32
    %89 = vector.broadcast %cst_36 : f32 to vector<1x48xf32>
    %90 = vector.extract_strided_slice %55 {offsets = [0, 48], sizes = [1, 208], strides = [1, 1]} : vector<1x256xf32> to vector<1x208xf32>
    %91 = tpu.concatenate %90, %89 in 1 : vector<1x208xf32>, vector<1x48xf32> -> vector<1x256xf32>
    %cst_37 = arith.constant 0.000000e+00 : f32
    %92 = vector.broadcast %cst_37 : f32 to vector<1x256xf32>
    %cst_38 = arith.constant 0.000000e+00 : f32
    %93 = vector.broadcast %cst_38 : f32 to vector<1x256xf32>
    %c0_39 = arith.constant 0 : index
    %94 = memref.load %arg6[%c0_39] : memref<98xf32, #tpu.memory_space<smem>>
    %95 = vector.broadcast %94 : f32 to vector<1x256xf32>
    %96 = arith.mulf %95, %58 : vector<1x256xf32>
    %97 = arith.addf %93, %96 : vector<1x256xf32>
    %c49 = arith.constant 49 : index
    %98 = memref.load %arg6[%c49] : memref<98xf32, #tpu.memory_space<smem>>
    %99 = vector.broadcast %98 : f32 to vector<1x256xf32>
    %100 = arith.mulf %99, %76 : vector<1x256xf32>
    %101 = arith.addf %97, %100 : vector<1x256xf32>
    %c7 = arith.constant 7 : index
    %102 = memref.load %arg6[%c7] : memref<98xf32, #tpu.memory_space<smem>>
    %103 = vector.broadcast %102 : f32 to vector<1x256xf32>
    %104 = arith.mulf %103, %61 : vector<1x256xf32>
    %105 = arith.addf %101, %104 : vector<1x256xf32>
    %c56 = arith.constant 56 : index
    %106 = memref.load %arg6[%c56] : memref<98xf32, #tpu.memory_space<smem>>
    %107 = vector.broadcast %106 : f32 to vector<1x256xf32>
    %108 = arith.mulf %107, %79 : vector<1x256xf32>
    %109 = arith.addf %105, %108 : vector<1x256xf32>
    %c14 = arith.constant 14 : index
    %110 = memref.load %arg6[%c14] : memref<98xf32, #tpu.memory_space<smem>>
    %111 = vector.broadcast %110 : f32 to vector<1x256xf32>
    %112 = arith.mulf %111, %64 : vector<1x256xf32>
    %113 = arith.addf %109, %112 : vector<1x256xf32>
    %c63 = arith.constant 63 : index
    %114 = memref.load %arg6[%c63] : memref<98xf32, #tpu.memory_space<smem>>
    %115 = vector.broadcast %114 : f32 to vector<1x256xf32>
    %116 = arith.mulf %115, %82 : vector<1x256xf32>
    %117 = arith.addf %113, %116 : vector<1x256xf32>
    %c21 = arith.constant 21 : index
    %118 = memref.load %arg6[%c21] : memref<98xf32, #tpu.memory_space<smem>>
    %119 = vector.broadcast %118 : f32 to vector<1x256xf32>
    %120 = arith.mulf %119, %51 : vector<1x256xf32>
    %121 = arith.addf %117, %120 : vector<1x256xf32>
    %c70 = arith.constant 70 : index
    %122 = memref.load %arg6[%c70] : memref<98xf32, #tpu.memory_space<smem>>
    %123 = vector.broadcast %122 : f32 to vector<1x256xf32>
    %124 = arith.mulf %123, %55 : vector<1x256xf32>
    %125 = arith.addf %121, %124 : vector<1x256xf32>
    %c28 = arith.constant 28 : index
    %126 = memref.load %arg6[%c28] : memref<98xf32, #tpu.memory_space<smem>>
    %127 = vector.broadcast %126 : f32 to vector<1x256xf32>
    %128 = arith.mulf %127, %67 : vector<1x256xf32>
    %129 = arith.addf %125, %128 : vector<1x256xf32>
    %c77 = arith.constant 77 : index
    %130 = memref.load %arg6[%c77] : memref<98xf32, #tpu.memory_space<smem>>
    %131 = vector.broadcast %130 : f32 to vector<1x256xf32>
    %132 = arith.mulf %131, %85 : vector<1x256xf32>
    %133 = arith.addf %129, %132 : vector<1x256xf32>
    %c35 = arith.constant 35 : index
    %134 = memref.load %arg6[%c35] : memref<98xf32, #tpu.memory_space<smem>>
    %135 = vector.broadcast %134 : f32 to vector<1x256xf32>
    %136 = arith.mulf %135, %70 : vector<1x256xf32>
    %137 = arith.addf %133, %136 : vector<1x256xf32>
    %c84 = arith.constant 84 : index
    %138 = memref.load %arg6[%c84] : memref<98xf32, #tpu.memory_space<smem>>
    %139 = vector.broadcast %138 : f32 to vector<1x256xf32>
    %140 = arith.mulf %139, %88 : vector<1x256xf32>
    %141 = arith.addf %137, %140 : vector<1x256xf32>
    %c42 = arith.constant 42 : index
    %142 = memref.load %arg6[%c42] : memref<98xf32, #tpu.memory_space<smem>>
    %143 = vector.broadcast %142 : f32 to vector<1x256xf32>
    %144 = arith.mulf %143, %73 : vector<1x256xf32>
    %145 = arith.addf %141, %144 : vector<1x256xf32>
    %c91 = arith.constant 91 : index
    %146 = memref.load %arg6[%c91] : memref<98xf32, #tpu.memory_space<smem>>
    %147 = vector.broadcast %146 : f32 to vector<1x256xf32>
    %148 = arith.mulf %147, %91 : vector<1x256xf32>
    %149 = arith.addf %145, %148 : vector<1x256xf32>
    %cst_40 = arith.constant 0.000000e+00 : f32
    %150 = vector.broadcast %cst_40 : f32 to vector<1x3xf32>
    %151 = vector.extract_strided_slice %149 {offsets = [0, 0], sizes = [1, 253], strides = [1, 1]} : vector<1x256xf32> to vector<1x253xf32>
    %152 = tpu.concatenate %150, %151 in 1 : vector<1x3xf32>, vector<1x253xf32> -> vector<1x256xf32>
    %c-3_i32 = arith.constant -3 : i32
    %153 = vector.broadcast %c-3_i32 : i32 to vector<1x256xi32>
    %154 = arith.addi %20, %153 : vector<1x256xi32>
    %c0_i32_41 = arith.constant 0 : i32
    %155 = vector.broadcast %c0_i32_41 : i32 to vector<1x256xi32>
    %156 = arith.cmpi sge, %154, %155 : vector<1x256xi32>
    %c-3_i32_42 = arith.constant -3 : i32
    %157 = vector.broadcast %c-3_i32_42 : i32 to vector<1x256xi32>
    %158 = arith.addi %20, %157 : vector<1x256xi32>
    %c16_i32_43 = arith.constant 16 : i32
    %159 = vector.broadcast %c16_i32_43 : i32 to vector<1x256xi32>
    %160 = arith.cmpi slt, %158, %159 : vector<1x256xi32>
    %161 = arith.andi %156, %160 : vector<1x256xi1>
    %cst_44 = arith.constant 0.000000e+00 : f32
    %162 = vector.broadcast %cst_44 : f32 to vector<1x256xf32>
    %163 = arith.select %161, %152, %162 : vector<1x256xi1>, vector<1x256xf32>
    %164 = arith.addf %92, %163 : vector<1x256xf32>
    %cst_45 = arith.constant 0.000000e+00 : f32
    %165 = vector.broadcast %cst_45 : f32 to vector<1x256xf32>
    %c1 = arith.constant 1 : index
    %166 = memref.load %arg6[%c1] : memref<98xf32, #tpu.memory_space<smem>>
    %167 = vector.broadcast %166 : f32 to vector<1x256xf32>
    %168 = arith.mulf %167, %58 : vector<1x256xf32>
    %169 = arith.addf %165, %168 : vector<1x256xf32>
    %c50 = arith.constant 50 : index
    %170 = memref.load %arg6[%c50] : memref<98xf32, #tpu.memory_space<smem>>
    %171 = vector.broadcast %170 : f32 to vector<1x256xf32>
    %172 = arith.mulf %171, %76 : vector<1x256xf32>
    %173 = arith.addf %169, %172 : vector<1x256xf32>
    %c8 = arith.constant 8 : index
    %174 = memref.load %arg6[%c8] : memref<98xf32, #tpu.memory_space<smem>>
    %175 = vector.broadcast %174 : f32 to vector<1x256xf32>
    %176 = arith.mulf %175, %61 : vector<1x256xf32>
    %177 = arith.addf %173, %176 : vector<1x256xf32>
    %c57 = arith.constant 57 : index
    %178 = memref.load %arg6[%c57] : memref<98xf32, #tpu.memory_space<smem>>
    %179 = vector.broadcast %178 : f32 to vector<1x256xf32>
    %180 = arith.mulf %179, %79 : vector<1x256xf32>
    %181 = arith.addf %177, %180 : vector<1x256xf32>
    %c15 = arith.constant 15 : index
    %182 = memref.load %arg6[%c15] : memref<98xf32, #tpu.memory_space<smem>>
    %183 = vector.broadcast %182 : f32 to vector<1x256xf32>
    %184 = arith.mulf %183, %64 : vector<1x256xf32>
    %185 = arith.addf %181, %184 : vector<1x256xf32>
    %c64 = arith.constant 64 : index
    %186 = memref.load %arg6[%c64] : memref<98xf32, #tpu.memory_space<smem>>
    %187 = vector.broadcast %186 : f32 to vector<1x256xf32>
    %188 = arith.mulf %187, %82 : vector<1x256xf32>
    %189 = arith.addf %185, %188 : vector<1x256xf32>
    %c22 = arith.constant 22 : index
    %190 = memref.load %arg6[%c22] : memref<98xf32, #tpu.memory_space<smem>>
    %191 = vector.broadcast %190 : f32 to vector<1x256xf32>
    %192 = arith.mulf %191, %51 : vector<1x256xf32>
    %193 = arith.addf %189, %192 : vector<1x256xf32>
    %c71 = arith.constant 71 : index
    %194 = memref.load %arg6[%c71] : memref<98xf32, #tpu.memory_space<smem>>
    %195 = vector.broadcast %194 : f32 to vector<1x256xf32>
    %196 = arith.mulf %195, %55 : vector<1x256xf32>
    %197 = arith.addf %193, %196 : vector<1x256xf32>
    %c29 = arith.constant 29 : index
    %198 = memref.load %arg6[%c29] : memref<98xf32, #tpu.memory_space<smem>>
    %199 = vector.broadcast %198 : f32 to vector<1x256xf32>
    %200 = arith.mulf %199, %67 : vector<1x256xf32>
    %201 = arith.addf %197, %200 : vector<1x256xf32>
    %c78 = arith.constant 78 : index
    %202 = memref.load %arg6[%c78] : memref<98xf32, #tpu.memory_space<smem>>
    %203 = vector.broadcast %202 : f32 to vector<1x256xf32>
    %204 = arith.mulf %203, %85 : vector<1x256xf32>
    %205 = arith.addf %201, %204 : vector<1x256xf32>
    %c36 = arith.constant 36 : index
    %206 = memref.load %arg6[%c36] : memref<98xf32, #tpu.memory_space<smem>>
    %207 = vector.broadcast %206 : f32 to vector<1x256xf32>
    %208 = arith.mulf %207, %70 : vector<1x256xf32>
    %209 = arith.addf %205, %208 : vector<1x256xf32>
    %c85 = arith.constant 85 : index
    %210 = memref.load %arg6[%c85] : memref<98xf32, #tpu.memory_space<smem>>
    %211 = vector.broadcast %210 : f32 to vector<1x256xf32>
    %212 = arith.mulf %211, %88 : vector<1x256xf32>
    %213 = arith.addf %209, %212 : vector<1x256xf32>
    %c43 = arith.constant 43 : index
    %214 = memref.load %arg6[%c43] : memref<98xf32, #tpu.memory_space<smem>>
    %215 = vector.broadcast %214 : f32 to vector<1x256xf32>
    %216 = arith.mulf %215, %73 : vector<1x256xf32>
    %217 = arith.addf %213, %216 : vector<1x256xf32>
    %c92 = arith.constant 92 : index
    %218 = memref.load %arg6[%c92] : memref<98xf32, #tpu.memory_space<smem>>
    %219 = vector.broadcast %218 : f32 to vector<1x256xf32>
    %220 = arith.mulf %219, %91 : vector<1x256xf32>
    %221 = arith.addf %217, %220 : vector<1x256xf32>
    %cst_46 = arith.constant 0.000000e+00 : f32
    %222 = vector.broadcast %cst_46 : f32 to vector<1x2xf32>
    %223 = vector.extract_strided_slice %221 {offsets = [0, 0], sizes = [1, 254], strides = [1, 1]} : vector<1x256xf32> to vector<1x254xf32>
    %224 = tpu.concatenate %222, %223 in 1 : vector<1x2xf32>, vector<1x254xf32> -> vector<1x256xf32>
    %c-2_i32 = arith.constant -2 : i32
    %225 = vector.broadcast %c-2_i32 : i32 to vector<1x256xi32>
    %226 = arith.addi %20, %225 : vector<1x256xi32>
    %c0_i32_47 = arith.constant 0 : i32
    %227 = vector.broadcast %c0_i32_47 : i32 to vector<1x256xi32>
    %228 = arith.cmpi sge, %226, %227 : vector<1x256xi32>
    %c-2_i32_48 = arith.constant -2 : i32
    %229 = vector.broadcast %c-2_i32_48 : i32 to vector<1x256xi32>
    %230 = arith.addi %20, %229 : vector<1x256xi32>
    %c16_i32_49 = arith.constant 16 : i32
    %231 = vector.broadcast %c16_i32_49 : i32 to vector<1x256xi32>
    %232 = arith.cmpi slt, %230, %231 : vector<1x256xi32>
    %233 = arith.andi %228, %232 : vector<1x256xi1>
    %cst_50 = arith.constant 0.000000e+00 : f32
    %234 = vector.broadcast %cst_50 : f32 to vector<1x256xf32>
    %235 = arith.select %233, %224, %234 : vector<1x256xi1>, vector<1x256xf32>
    %236 = arith.addf %164, %235 : vector<1x256xf32>
    %cst_51 = arith.constant 0.000000e+00 : f32
    %237 = vector.broadcast %cst_51 : f32 to vector<1x256xf32>
    %c2 = arith.constant 2 : index
    %238 = memref.load %arg6[%c2] : memref<98xf32, #tpu.memory_space<smem>>
    %239 = vector.broadcast %238 : f32 to vector<1x256xf32>
    %240 = arith.mulf %239, %58 : vector<1x256xf32>
    %241 = arith.addf %237, %240 : vector<1x256xf32>
    %c51 = arith.constant 51 : index
    %242 = memref.load %arg6[%c51] : memref<98xf32, #tpu.memory_space<smem>>
    %243 = vector.broadcast %242 : f32 to vector<1x256xf32>
    %244 = arith.mulf %243, %76 : vector<1x256xf32>
    %245 = arith.addf %241, %244 : vector<1x256xf32>
    %c9 = arith.constant 9 : index
    %246 = memref.load %arg6[%c9] : memref<98xf32, #tpu.memory_space<smem>>
    %247 = vector.broadcast %246 : f32 to vector<1x256xf32>
    %248 = arith.mulf %247, %61 : vector<1x256xf32>
    %249 = arith.addf %245, %248 : vector<1x256xf32>
    %c58 = arith.constant 58 : index
    %250 = memref.load %arg6[%c58] : memref<98xf32, #tpu.memory_space<smem>>
    %251 = vector.broadcast %250 : f32 to vector<1x256xf32>
    %252 = arith.mulf %251, %79 : vector<1x256xf32>
    %253 = arith.addf %249, %252 : vector<1x256xf32>
    %c16 = arith.constant 16 : index
    %254 = memref.load %arg6[%c16] : memref<98xf32, #tpu.memory_space<smem>>
    %255 = vector.broadcast %254 : f32 to vector<1x256xf32>
    %256 = arith.mulf %255, %64 : vector<1x256xf32>
    %257 = arith.addf %253, %256 : vector<1x256xf32>
    %c65 = arith.constant 65 : index
    %258 = memref.load %arg6[%c65] : memref<98xf32, #tpu.memory_space<smem>>
    %259 = vector.broadcast %258 : f32 to vector<1x256xf32>
    %260 = arith.mulf %259, %82 : vector<1x256xf32>
    %261 = arith.addf %257, %260 : vector<1x256xf32>
    %c23 = arith.constant 23 : index
    %262 = memref.load %arg6[%c23] : memref<98xf32, #tpu.memory_space<smem>>
    %263 = vector.broadcast %262 : f32 to vector<1x256xf32>
    %264 = arith.mulf %263, %51 : vector<1x256xf32>
    %265 = arith.addf %261, %264 : vector<1x256xf32>
    %c72 = arith.constant 72 : index
    %266 = memref.load %arg6[%c72] : memref<98xf32, #tpu.memory_space<smem>>
    %267 = vector.broadcast %266 : f32 to vector<1x256xf32>
    %268 = arith.mulf %267, %55 : vector<1x256xf32>
    %269 = arith.addf %265, %268 : vector<1x256xf32>
    %c30 = arith.constant 30 : index
    %270 = memref.load %arg6[%c30] : memref<98xf32, #tpu.memory_space<smem>>
    %271 = vector.broadcast %270 : f32 to vector<1x256xf32>
    %272 = arith.mulf %271, %67 : vector<1x256xf32>
    %273 = arith.addf %269, %272 : vector<1x256xf32>
    %c79 = arith.constant 79 : index
    %274 = memref.load %arg6[%c79] : memref<98xf32, #tpu.memory_space<smem>>
    %275 = vector.broadcast %274 : f32 to vector<1x256xf32>
    %276 = arith.mulf %275, %85 : vector<1x256xf32>
    %277 = arith.addf %273, %276 : vector<1x256xf32>
    %c37 = arith.constant 37 : index
    %278 = memref.load %arg6[%c37] : memref<98xf32, #tpu.memory_space<smem>>
    %279 = vector.broadcast %278 : f32 to vector<1x256xf32>
    %280 = arith.mulf %279, %70 : vector<1x256xf32>
    %281 = arith.addf %277, %280 : vector<1x256xf32>
    %c86 = arith.constant 86 : index
    %282 = memref.load %arg6[%c86] : memref<98xf32, #tpu.memory_space<smem>>
    %283 = vector.broadcast %282 : f32 to vector<1x256xf32>
    %284 = arith.mulf %283, %88 : vector<1x256xf32>
    %285 = arith.addf %281, %284 : vector<1x256xf32>
    %c44 = arith.constant 44 : index
    %286 = memref.load %arg6[%c44] : memref<98xf32, #tpu.memory_space<smem>>
    %287 = vector.broadcast %286 : f32 to vector<1x256xf32>
    %288 = arith.mulf %287, %73 : vector<1x256xf32>
    %289 = arith.addf %285, %288 : vector<1x256xf32>
    %c93 = arith.constant 93 : index
    %290 = memref.load %arg6[%c93] : memref<98xf32, #tpu.memory_space<smem>>
    %291 = vector.broadcast %290 : f32 to vector<1x256xf32>
    %292 = arith.mulf %291, %91 : vector<1x256xf32>
    %293 = arith.addf %289, %292 : vector<1x256xf32>
    %cst_52 = arith.constant 0.000000e+00 : f32
    %294 = vector.broadcast %cst_52 : f32 to vector<1x1xf32>
    %295 = vector.extract_strided_slice %293 {offsets = [0, 0], sizes = [1, 255], strides = [1, 1]} : vector<1x256xf32> to vector<1x255xf32>
    %296 = tpu.concatenate %294, %295 in 1 : vector<1x1xf32>, vector<1x255xf32> -> vector<1x256xf32>
    %c-1_i32 = arith.constant -1 : i32
    %297 = vector.broadcast %c-1_i32 : i32 to vector<1x256xi32>
    %298 = arith.addi %20, %297 : vector<1x256xi32>
    %c0_i32_53 = arith.constant 0 : i32
    %299 = vector.broadcast %c0_i32_53 : i32 to vector<1x256xi32>
    %300 = arith.cmpi sge, %298, %299 : vector<1x256xi32>
    %c-1_i32_54 = arith.constant -1 : i32
    %301 = vector.broadcast %c-1_i32_54 : i32 to vector<1x256xi32>
    %302 = arith.addi %20, %301 : vector<1x256xi32>
    %c16_i32_55 = arith.constant 16 : i32
    %303 = vector.broadcast %c16_i32_55 : i32 to vector<1x256xi32>
    %304 = arith.cmpi slt, %302, %303 : vector<1x256xi32>
    %305 = arith.andi %300, %304 : vector<1x256xi1>
    %cst_56 = arith.constant 0.000000e+00 : f32
    %306 = vector.broadcast %cst_56 : f32 to vector<1x256xf32>
    %307 = arith.select %305, %296, %306 : vector<1x256xi1>, vector<1x256xf32>
    %308 = arith.addf %236, %307 : vector<1x256xf32>
    %cst_57 = arith.constant 0.000000e+00 : f32
    %309 = vector.broadcast %cst_57 : f32 to vector<1x256xf32>
    %c3 = arith.constant 3 : index
    %310 = memref.load %arg6[%c3] : memref<98xf32, #tpu.memory_space<smem>>
    %311 = vector.broadcast %310 : f32 to vector<1x256xf32>
    %312 = arith.mulf %311, %58 : vector<1x256xf32>
    %313 = arith.addf %309, %312 : vector<1x256xf32>
    %c52 = arith.constant 52 : index
    %314 = memref.load %arg6[%c52] : memref<98xf32, #tpu.memory_space<smem>>
    %315 = vector.broadcast %314 : f32 to vector<1x256xf32>
    %316 = arith.mulf %315, %76 : vector<1x256xf32>
    %317 = arith.addf %313, %316 : vector<1x256xf32>
    %c10 = arith.constant 10 : index
    %318 = memref.load %arg6[%c10] : memref<98xf32, #tpu.memory_space<smem>>
    %319 = vector.broadcast %318 : f32 to vector<1x256xf32>
    %320 = arith.mulf %319, %61 : vector<1x256xf32>
    %321 = arith.addf %317, %320 : vector<1x256xf32>
    %c59 = arith.constant 59 : index
    %322 = memref.load %arg6[%c59] : memref<98xf32, #tpu.memory_space<smem>>
    %323 = vector.broadcast %322 : f32 to vector<1x256xf32>
    %324 = arith.mulf %323, %79 : vector<1x256xf32>
    %325 = arith.addf %321, %324 : vector<1x256xf32>
    %c17 = arith.constant 17 : index
    %326 = memref.load %arg6[%c17] : memref<98xf32, #tpu.memory_space<smem>>
    %327 = vector.broadcast %326 : f32 to vector<1x256xf32>
    %328 = arith.mulf %327, %64 : vector<1x256xf32>
    %329 = arith.addf %325, %328 : vector<1x256xf32>
    %c66 = arith.constant 66 : index
    %330 = memref.load %arg6[%c66] : memref<98xf32, #tpu.memory_space<smem>>
    %331 = vector.broadcast %330 : f32 to vector<1x256xf32>
    %332 = arith.mulf %331, %82 : vector<1x256xf32>
    %333 = arith.addf %329, %332 : vector<1x256xf32>
    %c24 = arith.constant 24 : index
    %334 = memref.load %arg6[%c24] : memref<98xf32, #tpu.memory_space<smem>>
    %335 = vector.broadcast %334 : f32 to vector<1x256xf32>
    %336 = arith.mulf %335, %51 : vector<1x256xf32>
    %337 = arith.addf %333, %336 : vector<1x256xf32>
    %c73 = arith.constant 73 : index
    %338 = memref.load %arg6[%c73] : memref<98xf32, #tpu.memory_space<smem>>
    %339 = vector.broadcast %338 : f32 to vector<1x256xf32>
    %340 = arith.mulf %339, %55 : vector<1x256xf32>
    %341 = arith.addf %337, %340 : vector<1x256xf32>
    %c31 = arith.constant 31 : index
    %342 = memref.load %arg6[%c31] : memref<98xf32, #tpu.memory_space<smem>>
    %343 = vector.broadcast %342 : f32 to vector<1x256xf32>
    %344 = arith.mulf %343, %67 : vector<1x256xf32>
    %345 = arith.addf %341, %344 : vector<1x256xf32>
    %c80 = arith.constant 80 : index
    %346 = memref.load %arg6[%c80] : memref<98xf32, #tpu.memory_space<smem>>
    %347 = vector.broadcast %346 : f32 to vector<1x256xf32>
    %348 = arith.mulf %347, %85 : vector<1x256xf32>
    %349 = arith.addf %345, %348 : vector<1x256xf32>
    %c38 = arith.constant 38 : index
    %350 = memref.load %arg6[%c38] : memref<98xf32, #tpu.memory_space<smem>>
    %351 = vector.broadcast %350 : f32 to vector<1x256xf32>
    %352 = arith.mulf %351, %70 : vector<1x256xf32>
    %353 = arith.addf %349, %352 : vector<1x256xf32>
    %c87 = arith.constant 87 : index
    %354 = memref.load %arg6[%c87] : memref<98xf32, #tpu.memory_space<smem>>
    %355 = vector.broadcast %354 : f32 to vector<1x256xf32>
    %356 = arith.mulf %355, %88 : vector<1x256xf32>
    %357 = arith.addf %353, %356 : vector<1x256xf32>
    %c45 = arith.constant 45 : index
    %358 = memref.load %arg6[%c45] : memref<98xf32, #tpu.memory_space<smem>>
    %359 = vector.broadcast %358 : f32 to vector<1x256xf32>
    %360 = arith.mulf %359, %73 : vector<1x256xf32>
    %361 = arith.addf %357, %360 : vector<1x256xf32>
    %c94 = arith.constant 94 : index
    %362 = memref.load %arg6[%c94] : memref<98xf32, #tpu.memory_space<smem>>
    %363 = vector.broadcast %362 : f32 to vector<1x256xf32>
    %364 = arith.mulf %363, %91 : vector<1x256xf32>
    %365 = arith.addf %361, %364 : vector<1x256xf32>
    %366 = arith.addf %308, %365 : vector<1x256xf32>
    %cst_58 = arith.constant 0.000000e+00 : f32
    %367 = vector.broadcast %cst_58 : f32 to vector<1x256xf32>
    %c4 = arith.constant 4 : index
    %368 = memref.load %arg6[%c4] : memref<98xf32, #tpu.memory_space<smem>>
    %369 = vector.broadcast %368 : f32 to vector<1x256xf32>
    %370 = arith.mulf %369, %58 : vector<1x256xf32>
    %371 = arith.addf %367, %370 : vector<1x256xf32>
    %c53 = arith.constant 53 : index
    %372 = memref.load %arg6[%c53] : memref<98xf32, #tpu.memory_space<smem>>
    %373 = vector.broadcast %372 : f32 to vector<1x256xf32>
    %374 = arith.mulf %373, %76 : vector<1x256xf32>
    %375 = arith.addf %371, %374 : vector<1x256xf32>
    %c11 = arith.constant 11 : index
    %376 = memref.load %arg6[%c11] : memref<98xf32, #tpu.memory_space<smem>>
    %377 = vector.broadcast %376 : f32 to vector<1x256xf32>
    %378 = arith.mulf %377, %61 : vector<1x256xf32>
    %379 = arith.addf %375, %378 : vector<1x256xf32>
    %c60 = arith.constant 60 : index
    %380 = memref.load %arg6[%c60] : memref<98xf32, #tpu.memory_space<smem>>
    %381 = vector.broadcast %380 : f32 to vector<1x256xf32>
    %382 = arith.mulf %381, %79 : vector<1x256xf32>
    %383 = arith.addf %379, %382 : vector<1x256xf32>
    %c18 = arith.constant 18 : index
    %384 = memref.load %arg6[%c18] : memref<98xf32, #tpu.memory_space<smem>>
    %385 = vector.broadcast %384 : f32 to vector<1x256xf32>
    %386 = arith.mulf %385, %64 : vector<1x256xf32>
    %387 = arith.addf %383, %386 : vector<1x256xf32>
    %c67 = arith.constant 67 : index
    %388 = memref.load %arg6[%c67] : memref<98xf32, #tpu.memory_space<smem>>
    %389 = vector.broadcast %388 : f32 to vector<1x256xf32>
    %390 = arith.mulf %389, %82 : vector<1x256xf32>
    %391 = arith.addf %387, %390 : vector<1x256xf32>
    %c25 = arith.constant 25 : index
    %392 = memref.load %arg6[%c25] : memref<98xf32, #tpu.memory_space<smem>>
    %393 = vector.broadcast %392 : f32 to vector<1x256xf32>
    %394 = arith.mulf %393, %51 : vector<1x256xf32>
    %395 = arith.addf %391, %394 : vector<1x256xf32>
    %c74 = arith.constant 74 : index
    %396 = memref.load %arg6[%c74] : memref<98xf32, #tpu.memory_space<smem>>
    %397 = vector.broadcast %396 : f32 to vector<1x256xf32>
    %398 = arith.mulf %397, %55 : vector<1x256xf32>
    %399 = arith.addf %395, %398 : vector<1x256xf32>
    %c32 = arith.constant 32 : index
    %400 = memref.load %arg6[%c32] : memref<98xf32, #tpu.memory_space<smem>>
    %401 = vector.broadcast %400 : f32 to vector<1x256xf32>
    %402 = arith.mulf %401, %67 : vector<1x256xf32>
    %403 = arith.addf %399, %402 : vector<1x256xf32>
    %c81 = arith.constant 81 : index
    %404 = memref.load %arg6[%c81] : memref<98xf32, #tpu.memory_space<smem>>
    %405 = vector.broadcast %404 : f32 to vector<1x256xf32>
    %406 = arith.mulf %405, %85 : vector<1x256xf32>
    %407 = arith.addf %403, %406 : vector<1x256xf32>
    %c39 = arith.constant 39 : index
    %408 = memref.load %arg6[%c39] : memref<98xf32, #tpu.memory_space<smem>>
    %409 = vector.broadcast %408 : f32 to vector<1x256xf32>
    %410 = arith.mulf %409, %70 : vector<1x256xf32>
    %411 = arith.addf %407, %410 : vector<1x256xf32>
    %c88 = arith.constant 88 : index
    %412 = memref.load %arg6[%c88] : memref<98xf32, #tpu.memory_space<smem>>
    %413 = vector.broadcast %412 : f32 to vector<1x256xf32>
    %414 = arith.mulf %413, %88 : vector<1x256xf32>
    %415 = arith.addf %411, %414 : vector<1x256xf32>
    %c46 = arith.constant 46 : index
    %416 = memref.load %arg6[%c46] : memref<98xf32, #tpu.memory_space<smem>>
    %417 = vector.broadcast %416 : f32 to vector<1x256xf32>
    %418 = arith.mulf %417, %73 : vector<1x256xf32>
    %419 = arith.addf %415, %418 : vector<1x256xf32>
    %c95 = arith.constant 95 : index
    %420 = memref.load %arg6[%c95] : memref<98xf32, #tpu.memory_space<smem>>
    %421 = vector.broadcast %420 : f32 to vector<1x256xf32>
    %422 = arith.mulf %421, %91 : vector<1x256xf32>
    %423 = arith.addf %419, %422 : vector<1x256xf32>
    %cst_59 = arith.constant 0.000000e+00 : f32
    %424 = vector.broadcast %cst_59 : f32 to vector<1x1xf32>
    %425 = vector.extract_strided_slice %423 {offsets = [0, 1], sizes = [1, 255], strides = [1, 1]} : vector<1x256xf32> to vector<1x255xf32>
    %426 = tpu.concatenate %425, %424 in 1 : vector<1x255xf32>, vector<1x1xf32> -> vector<1x256xf32>
    %c1_i32_60 = arith.constant 1 : i32
    %427 = vector.broadcast %c1_i32_60 : i32 to vector<1x256xi32>
    %428 = arith.addi %20, %427 : vector<1x256xi32>
    %c0_i32_61 = arith.constant 0 : i32
    %429 = vector.broadcast %c0_i32_61 : i32 to vector<1x256xi32>
    %430 = arith.cmpi sge, %428, %429 : vector<1x256xi32>
    %c1_i32_62 = arith.constant 1 : i32
    %431 = vector.broadcast %c1_i32_62 : i32 to vector<1x256xi32>
    %432 = arith.addi %20, %431 : vector<1x256xi32>
    %c16_i32_63 = arith.constant 16 : i32
    %433 = vector.broadcast %c16_i32_63 : i32 to vector<1x256xi32>
    %434 = arith.cmpi slt, %432, %433 : vector<1x256xi32>
    %435 = arith.andi %430, %434 : vector<1x256xi1>
    %cst_64 = arith.constant 0.000000e+00 : f32
    %436 = vector.broadcast %cst_64 : f32 to vector<1x256xf32>
    %437 = arith.select %435, %426, %436 : vector<1x256xi1>, vector<1x256xf32>
    %438 = arith.addf %366, %437 : vector<1x256xf32>
    %cst_65 = arith.constant 0.000000e+00 : f32
    %439 = vector.broadcast %cst_65 : f32 to vector<1x256xf32>
    %c5 = arith.constant 5 : index
    %440 = memref.load %arg6[%c5] : memref<98xf32, #tpu.memory_space<smem>>
    %441 = vector.broadcast %440 : f32 to vector<1x256xf32>
    %442 = arith.mulf %441, %58 : vector<1x256xf32>
    %443 = arith.addf %439, %442 : vector<1x256xf32>
    %c54 = arith.constant 54 : index
    %444 = memref.load %arg6[%c54] : memref<98xf32, #tpu.memory_space<smem>>
    %445 = vector.broadcast %444 : f32 to vector<1x256xf32>
    %446 = arith.mulf %445, %76 : vector<1x256xf32>
    %447 = arith.addf %443, %446 : vector<1x256xf32>
    %c12 = arith.constant 12 : index
    %448 = memref.load %arg6[%c12] : memref<98xf32, #tpu.memory_space<smem>>
    %449 = vector.broadcast %448 : f32 to vector<1x256xf32>
    %450 = arith.mulf %449, %61 : vector<1x256xf32>
    %451 = arith.addf %447, %450 : vector<1x256xf32>
    %c61 = arith.constant 61 : index
    %452 = memref.load %arg6[%c61] : memref<98xf32, #tpu.memory_space<smem>>
    %453 = vector.broadcast %452 : f32 to vector<1x256xf32>
    %454 = arith.mulf %453, %79 : vector<1x256xf32>
    %455 = arith.addf %451, %454 : vector<1x256xf32>
    %c19 = arith.constant 19 : index
    %456 = memref.load %arg6[%c19] : memref<98xf32, #tpu.memory_space<smem>>
    %457 = vector.broadcast %456 : f32 to vector<1x256xf32>
    %458 = arith.mulf %457, %64 : vector<1x256xf32>
    %459 = arith.addf %455, %458 : vector<1x256xf32>
    %c68 = arith.constant 68 : index
    %460 = memref.load %arg6[%c68] : memref<98xf32, #tpu.memory_space<smem>>
    %461 = vector.broadcast %460 : f32 to vector<1x256xf32>
    %462 = arith.mulf %461, %82 : vector<1x256xf32>
    %463 = arith.addf %459, %462 : vector<1x256xf32>
    %c26 = arith.constant 26 : index
    %464 = memref.load %arg6[%c26] : memref<98xf32, #tpu.memory_space<smem>>
    %465 = vector.broadcast %464 : f32 to vector<1x256xf32>
    %466 = arith.mulf %465, %51 : vector<1x256xf32>
    %467 = arith.addf %463, %466 : vector<1x256xf32>
    %c75 = arith.constant 75 : index
    %468 = memref.load %arg6[%c75] : memref<98xf32, #tpu.memory_space<smem>>
    %469 = vector.broadcast %468 : f32 to vector<1x256xf32>
    %470 = arith.mulf %469, %55 : vector<1x256xf32>
    %471 = arith.addf %467, %470 : vector<1x256xf32>
    %c33 = arith.constant 33 : index
    %472 = memref.load %arg6[%c33] : memref<98xf32, #tpu.memory_space<smem>>
    %473 = vector.broadcast %472 : f32 to vector<1x256xf32>
    %474 = arith.mulf %473, %67 : vector<1x256xf32>
    %475 = arith.addf %471, %474 : vector<1x256xf32>
    %c82 = arith.constant 82 : index
    %476 = memref.load %arg6[%c82] : memref<98xf32, #tpu.memory_space<smem>>
    %477 = vector.broadcast %476 : f32 to vector<1x256xf32>
    %478 = arith.mulf %477, %85 : vector<1x256xf32>
    %479 = arith.addf %475, %478 : vector<1x256xf32>
    %c40 = arith.constant 40 : index
    %480 = memref.load %arg6[%c40] : memref<98xf32, #tpu.memory_space<smem>>
    %481 = vector.broadcast %480 : f32 to vector<1x256xf32>
    %482 = arith.mulf %481, %70 : vector<1x256xf32>
    %483 = arith.addf %479, %482 : vector<1x256xf32>
    %c89 = arith.constant 89 : index
    %484 = memref.load %arg6[%c89] : memref<98xf32, #tpu.memory_space<smem>>
    %485 = vector.broadcast %484 : f32 to vector<1x256xf32>
    %486 = arith.mulf %485, %88 : vector<1x256xf32>
    %487 = arith.addf %483, %486 : vector<1x256xf32>
    %c47 = arith.constant 47 : index
    %488 = memref.load %arg6[%c47] : memref<98xf32, #tpu.memory_space<smem>>
    %489 = vector.broadcast %488 : f32 to vector<1x256xf32>
    %490 = arith.mulf %489, %73 : vector<1x256xf32>
    %491 = arith.addf %487, %490 : vector<1x256xf32>
    %c96 = arith.constant 96 : index
    %492 = memref.load %arg6[%c96] : memref<98xf32, #tpu.memory_space<smem>>
    %493 = vector.broadcast %492 : f32 to vector<1x256xf32>
    %494 = arith.mulf %493, %91 : vector<1x256xf32>
    %495 = arith.addf %491, %494 : vector<1x256xf32>
    %cst_66 = arith.constant 0.000000e+00 : f32
    %496 = vector.broadcast %cst_66 : f32 to vector<1x2xf32>
    %497 = vector.extract_strided_slice %495 {offsets = [0, 2], sizes = [1, 254], strides = [1, 1]} : vector<1x256xf32> to vector<1x254xf32>
    %498 = tpu.concatenate %497, %496 in 1 : vector<1x254xf32>, vector<1x2xf32> -> vector<1x256xf32>
    %c2_i32 = arith.constant 2 : i32
    %499 = vector.broadcast %c2_i32 : i32 to vector<1x256xi32>
    %500 = arith.addi %20, %499 : vector<1x256xi32>
    %c0_i32_67 = arith.constant 0 : i32
    %501 = vector.broadcast %c0_i32_67 : i32 to vector<1x256xi32>
    %502 = arith.cmpi sge, %500, %501 : vector<1x256xi32>
    %c2_i32_68 = arith.constant 2 : i32
    %503 = vector.broadcast %c2_i32_68 : i32 to vector<1x256xi32>
    %504 = arith.addi %20, %503 : vector<1x256xi32>
    %c16_i32_69 = arith.constant 16 : i32
    %505 = vector.broadcast %c16_i32_69 : i32 to vector<1x256xi32>
    %506 = arith.cmpi slt, %504, %505 : vector<1x256xi32>
    %507 = arith.andi %502, %506 : vector<1x256xi1>
    %cst_70 = arith.constant 0.000000e+00 : f32
    %508 = vector.broadcast %cst_70 : f32 to vector<1x256xf32>
    %509 = arith.select %507, %498, %508 : vector<1x256xi1>, vector<1x256xf32>
    %510 = arith.addf %438, %509 : vector<1x256xf32>
    %cst_71 = arith.constant 0.000000e+00 : f32
    %511 = vector.broadcast %cst_71 : f32 to vector<1x256xf32>
    %c6 = arith.constant 6 : index
    %512 = memref.load %arg6[%c6] : memref<98xf32, #tpu.memory_space<smem>>
    %513 = vector.broadcast %512 : f32 to vector<1x256xf32>
    %514 = arith.mulf %513, %58 : vector<1x256xf32>
    %515 = arith.addf %511, %514 : vector<1x256xf32>
    %c55 = arith.constant 55 : index
    %516 = memref.load %arg6[%c55] : memref<98xf32, #tpu.memory_space<smem>>
    %517 = vector.broadcast %516 : f32 to vector<1x256xf32>
    %518 = arith.mulf %517, %76 : vector<1x256xf32>
    %519 = arith.addf %515, %518 : vector<1x256xf32>
    %c13 = arith.constant 13 : index
    %520 = memref.load %arg6[%c13] : memref<98xf32, #tpu.memory_space<smem>>
    %521 = vector.broadcast %520 : f32 to vector<1x256xf32>
    %522 = arith.mulf %521, %61 : vector<1x256xf32>
    %523 = arith.addf %519, %522 : vector<1x256xf32>
    %c62 = arith.constant 62 : index
    %524 = memref.load %arg6[%c62] : memref<98xf32, #tpu.memory_space<smem>>
    %525 = vector.broadcast %524 : f32 to vector<1x256xf32>
    %526 = arith.mulf %525, %79 : vector<1x256xf32>
    %527 = arith.addf %523, %526 : vector<1x256xf32>
    %c20 = arith.constant 20 : index
    %528 = memref.load %arg6[%c20] : memref<98xf32, #tpu.memory_space<smem>>
    %529 = vector.broadcast %528 : f32 to vector<1x256xf32>
    %530 = arith.mulf %529, %64 : vector<1x256xf32>
    %531 = arith.addf %527, %530 : vector<1x256xf32>
    %c69 = arith.constant 69 : index
    %532 = memref.load %arg6[%c69] : memref<98xf32, #tpu.memory_space<smem>>
    %533 = vector.broadcast %532 : f32 to vector<1x256xf32>
    %534 = arith.mulf %533, %82 : vector<1x256xf32>
    %535 = arith.addf %531, %534 : vector<1x256xf32>
    %c27 = arith.constant 27 : index
    %536 = memref.load %arg6[%c27] : memref<98xf32, #tpu.memory_space<smem>>
    %537 = vector.broadcast %536 : f32 to vector<1x256xf32>
    %538 = arith.mulf %537, %51 : vector<1x256xf32>
    %539 = arith.addf %535, %538 : vector<1x256xf32>
    %c76 = arith.constant 76 : index
    %540 = memref.load %arg6[%c76] : memref<98xf32, #tpu.memory_space<smem>>
    %541 = vector.broadcast %540 : f32 to vector<1x256xf32>
    %542 = arith.mulf %541, %55 : vector<1x256xf32>
    %543 = arith.addf %539, %542 : vector<1x256xf32>
    %c34 = arith.constant 34 : index
    %544 = memref.load %arg6[%c34] : memref<98xf32, #tpu.memory_space<smem>>
    %545 = vector.broadcast %544 : f32 to vector<1x256xf32>
    %546 = arith.mulf %545, %67 : vector<1x256xf32>
    %547 = arith.addf %543, %546 : vector<1x256xf32>
    %c83 = arith.constant 83 : index
    %548 = memref.load %arg6[%c83] : memref<98xf32, #tpu.memory_space<smem>>
    %549 = vector.broadcast %548 : f32 to vector<1x256xf32>
    %550 = arith.mulf %549, %85 : vector<1x256xf32>
    %551 = arith.addf %547, %550 : vector<1x256xf32>
    %c41 = arith.constant 41 : index
    %552 = memref.load %arg6[%c41] : memref<98xf32, #tpu.memory_space<smem>>
    %553 = vector.broadcast %552 : f32 to vector<1x256xf32>
    %554 = arith.mulf %553, %70 : vector<1x256xf32>
    %555 = arith.addf %551, %554 : vector<1x256xf32>
    %c90 = arith.constant 90 : index
    %556 = memref.load %arg6[%c90] : memref<98xf32, #tpu.memory_space<smem>>
    %557 = vector.broadcast %556 : f32 to vector<1x256xf32>
    %558 = arith.mulf %557, %88 : vector<1x256xf32>
    %559 = arith.addf %555, %558 : vector<1x256xf32>
    %c48 = arith.constant 48 : index
    %560 = memref.load %arg6[%c48] : memref<98xf32, #tpu.memory_space<smem>>
    %561 = vector.broadcast %560 : f32 to vector<1x256xf32>
    %562 = arith.mulf %561, %73 : vector<1x256xf32>
    %563 = arith.addf %559, %562 : vector<1x256xf32>
    %c97 = arith.constant 97 : index
    %564 = memref.load %arg6[%c97] : memref<98xf32, #tpu.memory_space<smem>>
    %565 = vector.broadcast %564 : f32 to vector<1x256xf32>
    %566 = arith.mulf %565, %91 : vector<1x256xf32>
    %567 = arith.addf %563, %566 : vector<1x256xf32>
    %cst_72 = arith.constant 0.000000e+00 : f32
    %568 = vector.broadcast %cst_72 : f32 to vector<1x3xf32>
    %569 = vector.extract_strided_slice %567 {offsets = [0, 3], sizes = [1, 253], strides = [1, 1]} : vector<1x256xf32> to vector<1x253xf32>
    %570 = tpu.concatenate %569, %568 in 1 : vector<1x253xf32>, vector<1x3xf32> -> vector<1x256xf32>
    %c3_i32 = arith.constant 3 : i32
    %571 = vector.broadcast %c3_i32 : i32 to vector<1x256xi32>
    %572 = arith.addi %20, %571 : vector<1x256xi32>
    %c0_i32_73 = arith.constant 0 : i32
    %573 = vector.broadcast %c0_i32_73 : i32 to vector<1x256xi32>
    %574 = arith.cmpi sge, %572, %573 : vector<1x256xi32>
    %c3_i32_74 = arith.constant 3 : i32
    %575 = vector.broadcast %c3_i32_74 : i32 to vector<1x256xi32>
    %576 = arith.addi %20, %575 : vector<1x256xi32>
    %c16_i32_75 = arith.constant 16 : i32
    %577 = vector.broadcast %c16_i32_75 : i32 to vector<1x256xi32>
    %578 = arith.cmpi slt, %576, %577 : vector<1x256xi32>
    %579 = arith.andi %574, %578 : vector<1x256xi1>
    %cst_76 = arith.constant 0.000000e+00 : f32
    %580 = vector.broadcast %cst_76 : f32 to vector<1x256xf32>
    %581 = arith.select %579, %570, %580 : vector<1x256xi1>, vector<1x256xf32>
    %582 = arith.addf %510, %581 : vector<1x256xf32>
    %c0_77 = arith.constant 0 : index
    %583 = memref.load %arg7[%c0_77] : memref<2xf32, #tpu.memory_space<smem>>
    %584 = vector.broadcast %583 : f32 to vector<1x256xf32>
    %585 = arith.mulf %582, %584 : vector<1x256xf32>
    %c1_78 = arith.constant 1 : index
    %586 = memref.load %arg7[%c1_78] : memref<2xf32, #tpu.memory_space<smem>>
    %587 = vector.broadcast %586 : f32 to vector<1x256xf32>
    %588 = arith.addf %585, %587 : vector<1x256xf32>
    %589 = arith.negf %588 : vector<1x256xf32>
    %590 = math.exp %589 : vector<1x256xf32>
    %cst_79 = arith.constant 1.000000e+00 : f32
    %591 = vector.broadcast %cst_79 : f32 to vector<1x256xf32>
    %592 = arith.addf %591, %590 : vector<1x256xf32>
    %593 = arith.divf %591, %592 : vector<1x256xf32>
    %594 = vector.broadcast %593 : vector<1x256xf32> to vector<32x256xf32>
    %595 = arith.mulf %49, %594 : vector<32x256xf32>
    %596 = arith.truncf %595 : vector<32x256xf32> to vector<32x256xbf16>
    %c0_80 = arith.constant 0 : index
    %c0_81 = arith.constant 0 : index
    %c0_82 = arith.constant 0 : index
    %597 = vector.load %arg8[%c0_80, %c0_81, %c0_82] : memref<1x32x256xbf16, #tpu.memory_space<vmem>>, vector<1x32x256xbf16>
    %598 = vector.shape_cast %597 : vector<1x32x256xbf16> to vector<32x256xbf16>
    %599 = vector.shape_cast %596 : vector<32x256xbf16> to vector<1x32x256xbf16>
    tpu.vector_store %arg8[%c0_80, %c0_81, %c0_82], %599 {strides = array<i32>} : memref<1x32x256xbf16, #tpu.memory_space<vmem>>, vector<1x32x256xbf16>,
    return
  }
  func.func @transform_0(%arg0: i32) -> (i32, i32, i32) {
    %c0_i32 = arith.constant 0 : i32
    %c0_i32_0 = arith.constant 0 : i32
    %c0_i32_1 = arith.constant 0 : i32
    return %arg0, %c0_i32, %c0_i32_0 : i32, i32, i32
  }
  func.func @transform_1(%arg0: i32) -> (i32, i32) {
    %c0_i32 = arith.constant 0 : i32
    %c0_i32_0 = arith.constant 0 : i32
    %c0_i32_1 = arith.constant 0 : i32
    return %c0_i32, %c0_i32_0 : i32, i32
  }
  func.func @transform_2(%arg0: i32) -> (i32, i32) {
    %c0_i32 = arith.constant 0 : i32
    %c0_i32_0 = arith.constant 0 : i32
    %c0_i32_1 = arith.constant 0 : i32
    return %c0_i32, %c0_i32_0 : i32, i32
  }
  func.func @transform_3(%arg0: i32) -> (i32, i32) {
    %c0_i32 = arith.constant 0 : i32
    %c0_i32_0 = arith.constant 0 : i32
    %c0_i32_1 = arith.constant 0 : i32
    return %c0_i32, %c0_i32_0 : i32, i32
  }
  func.func @transform_4(%arg0: i32) -> (i32, i32) {
    %c0_i32 = arith.constant 0 : i32
    %c0_i32_0 = arith.constant 0 : i32
    %c0_i32_1 = arith.constant 0 : i32
    return %c0_i32, %c0_i32_0 : i32, i32
  }
  func.func @transform_5(%arg0: i32) -> i32 {
    %c0_i32 = arith.constant 0 : i32
    %c0_i32_0 = arith.constant 0 : i32
    return %c0_i32 : i32
  }
  func.func @transform_6(%arg0: i32) -> i32 {
    %c0_i32 = arith.constant 0 : i32
    %c0_i32_0 = arith.constant 0 : i32
    return %c0_i32 : i32
  }
  func.func @transform_7(%arg0: i32) -> (i32, i32, i32) {
    %c0_i32 = arith.constant 0 : i32
    %c0_i32_0 = arith.constant 0 : i32
    %c0_i32_1 = arith.constant 0 : i32
    return %arg0, %c0_i32, %c0_i32_0 : i32, i32, i32
  }
}

</mosaic_0001>

<llo_original>
// kernel: tpu_custom_call.1
$region0: #{tpu_custom_call.1}
  #allocation0 [shape = 'u32[]', space=smem, size = 0x4, offset = 0x4, fixed_abs, tag = 'smem constant byte address 0x4 - core index']
  #allocation1 [shape = 'u32[144,128]{1,0:T(1,128)}', space=vmem, size = 0x12000, scoped, tag = 'internal scratch']
  %s0 = inlined_call_operand.vmem [shape: bf16[2,32,256], index: 0, kind: input, shape index: {}]
  %s1 = inlined_call_operand.vmem [shape: f32[2,32], index: 1, kind: input, shape index: {}]
  %s2 = inlined_call_operand.vmem [shape: f32[2,1], index: 2, kind: input, shape index: {}]
  %s3 = inlined_call_operand.vmem [shape: f32[32,2], index: 3, kind: input, shape index: {}]
  %s4 = inlined_call_operand.vmem [shape: f32[32,1], index: 4, kind: input, shape index: {}]
  %s5 = inlined_call_operand.vmem [shape: f32[98], index: 5, kind: input, shape index: {}]
  %s6 = inlined_call_operand.vmem [shape: f32[2], index: 6, kind: input, shape index: {}]
  %s7 = inlined_call_operand.hbm [shape: bf16[2,32,256], index: 7, kind: output, shape index: {}]
  %s8 = sld [smem:[#allocation0]]
  $region69: #{tpu_custom_call.1} parent=0
    _
  %s10 = ssub.s32 1, %s8
  %s11 = scalar_select 0, %s10, %s8
  $region1: #{tpu_custom_call.1} parent=0
    #allocation2 [shape = 'u8[512]{0}', space=smem, size = 0x200, scoped, tag = 'input window, operand 5, single buffered']
    #allocation3 [shape = 's32[2]{0}', space=sflag, size = 0x8, scoped, tag = 'scoped memory for tpu_custom_call.1']
    #allocation4 [shape = 's32[2]{0}', space=sflag, size = 0x8, scoped, tag = 'scoped memory for tpu_custom_call.1']
    #allocation5 [shape = 'u8[512]{0}', space=smem, size = 0x200, scoped, tag = 'input window, operand 6, single buffered']
    #allocation6 [shape = 's32[1]{0}', space=sflag, size = 0x4, scoped, tag = 'scoped memory for tpu_custom_call.1']
    #allocation7 [shape = 'u8[32768]{0}', space=vmem, size = 0x8000, scoped, tag = 'output window, operand 0']
    %12 = vsyncpa [#allocation4], 0
    %13 = vsyncpa [#allocation6], 0
    %14 = vsyncpa [#allocation3], 0
    %s15 = scalar_lea.sflag [#allocation3], 1
    %16 = vsyncpa %s15, 0
    loop: start=0, step=1, limit=4
    $region2: #{tpu_custom_call.1} parent=1 // loop_pre_header
      _
    $region3: #{tpu_custom_call.1} parent=1 // loop_header
      %s18 = sphi 0, %s22
      %p19 = scmp.ge.s32.totalorder %s18, 4
      %s28 = sphi 0, %s30
      %s31 = sphi 0, %s28
      %s32 = sphi 0, %s31
      %s48 = sphi 0, %s32
      %s52 = sphi 0, %s52
      %s54 = sphi 0, %s52
      %s55 = sphi 0, %s54
      %s69 = sphi 0, %s55
      %s73 = sphi 0, %s73
      %s75 = sphi 0, %s73
      %s76 = sphi 0, %s75
      %s90 = sphi 0, %s76
      %s94 = sphi 0, %s94
      %s96 = sphi 0, %s94
      %s97 = sphi 0, %s96
      %s111 = sphi 0, %s97
      %s115 = sphi 0, %s115
      %s117 = sphi 0, %s115
      %s118 = sphi 0, %s117
      %s132 = sphi 0, %s118
      %s136 = sphi 0, %s136
      %s138 = sphi 0, %s136
      %s139 = sphi 0, %s138
      %s153 = sphi 0, %s139
      %s157 = sphi 0, %s157
      %s159 = sphi 0, %s157
      %s160 = sphi 0, %s159
      %s174 = sphi 0, %s160
      %s180 = sphi 0, %s182
      %s183 = sphi 0, %s180
      %s184 = sphi 0, %s183
      %s200 = sphi 0, %s184
    $region4: #{tpu_custom_call.1} parent=1 // loop_header_branch
      %21 = sbr.rel (%p19) target = $region8
    $region5: #{tpu_custom_call.1} parent=1 // loop_body
      %s23 = ssub.s32 %s18, 1
      %s24 = ssub.s32 %s18, 2
      %s25 = sadd.s32 %s18, 1
      %s26 = ssub.s32 %s18, %s25
      %p27 = scmp.eq.s32.totalorder %s26, 0
      %s29 = sadd.s32 %s28, 1
      %s30 = scalar_select %p27, %s28, %s29
      %p33 = pneg %p27
      %p34 = scmp.eq.s32.totalorder %s18, 1
      %p35 = por %p33, %p34
      %p36 = scmp.ne.s32.totalorder %s28, %s31
      %p37 = scmp.eq.s32.totalorder %s18, 0
      %p38 = por %p36, %p37
      %p39 = scmp.ne.s32.totalorder %s28, %s31
      %p40 = scmp.eq.s32.totalorder %s23, 1
      %p41 = por %p39, %p40
      %p42 = scmp.ne.s32.totalorder %s31, %s32
      %p43 = scmp.eq.s32.totalorder %s23, 0
      %p44 = por %p42, %p43
      %p45 = scmp.ne.s32.totalorder %s31, %s32
      %p46 = scmp.eq.s32.totalorder %s24, 1
      %p47 = por %p45, %p46
      %p49 = scmp.ne.s32.totalorder %s32, %s48
      %p50 = scmp.eq.s32.totalorder %s24, 0
      %p51 = por %p49, %p50
      %s53 = sadd.s32 %s52, 1
      %p56 = scmp.eq.s32.totalorder %s18, 1
      %p57 = scmp.ne.s32.totalorder %s52, %s54
      %p58 = scmp.eq.s32.totalorder %s18, 0
      %p59 = por %p57, %p58
      %p60 = scmp.ne.s32.totalorder %s52, %s54
      %p61 = scmp.eq.s32.totalorder %s23, 1
      %p62 = por %p60, %p61
      %p63 = scmp.ne.s32.totalorder %s54, %s55
      %p64 = scmp.eq.s32.totalorder %s23, 0
      %p65 = por %p63, %p64
      %p66 = scmp.ne.s32.totalorder %s54, %s55
      %p67 = scmp.eq.s32.totalorder %s24, 1
      %p68 = por %p66, %p67
      %p70 = scmp.ne.s32.totalorder %s55, %s69
      %p71 = scmp.eq.s32.totalorder %s24, 0
      %p72 = por %p70, %p71
      %s74 = sadd.s32 %s73, 1
      %p77 = scmp.eq.s32.totalorder %s18, 1
      %p78 = scmp.ne.s32.totalorder %s73, %s75
      %p79 = scmp.eq.s32.totalorder %s18, 0
      %p80 = por %p78, %p79
      %p81 = scmp.ne.s32.totalorder %s73, %s75
      %p82 = scmp.eq.s32.totalorder %s23, 1
      %p83 = por %p81, %p82
      %p84 = scmp.ne.s32.totalorder %s75, %s76
      %p85 = scmp.eq.s32.totalorder %s23, 0
      %p86 = por %p84, %p85
      %p87 = scmp.ne.s32.totalorder %s75, %s76
      %p88 = scmp.eq.s32.totalorder %s24, 1
      %p89 = por %p87, %p88
      %p91 = scmp.ne.s32.totalorder %s76, %s90
      %p92 = scmp.eq.s32.totalorder %s24, 0
      %p93 = por %p91, %p92
      %s95 = sadd.s32 %s94, 1
      %p98 = scmp.eq.s32.totalorder %s18, 1
      %p99 = scmp.ne.s32.totalorder %s94, %s96
      %p100 = scmp.eq.s32.totalorder %s18, 0
      %p101 = por %p99, %p100
      %p102 = scmp.ne.s32.totalorder %s94, %s96
      %p103 = scmp.eq.s32.totalorder %s23, 1
      %p104 = por %p102, %p103
      %p105 = scmp.ne.s32.totalorder %s96, %s97
      %p106 = scmp.eq.s32.totalorder %s23, 0
      %p107 = por %p105, %p106
      %p108 = scmp.ne.s32.totalorder %s96, %s97
      %p109 = scmp.eq.s32.totalorder %s24, 1
      %p110 = por %p108, %p109
      %p112 = scmp.ne.s32.totalorder %s97, %s111
      %p113 = scmp.eq.s32.totalorder %s24, 0
      %p114 = por %p112, %p113
      %s116 = sadd.s32 %s115, 1
      %p119 = scmp.eq.s32.totalorder %s18, 1
      %p120 = scmp.ne.s32.totalorder %s115, %s117
      %p121 = scmp.eq.s32.totalorder %s18, 0
      %p122 = por %p120, %p121
      %p123 = scmp.ne.s32.totalorder %s115, %s117
      %p124 = scmp.eq.s32.totalorder %s23, 1
      %p125 = por %p123, %p124
      %p126 = scmp.ne.s32.totalorder %s117, %s118
      %p127 = scmp.eq.s32.totalorder %s23, 0
      %p128 = por %p126, %p127
      %p129 = scmp.ne.s32.totalorder %s117, %s118
      %p130 = scmp.eq.s32.totalorder %s24, 1
      %p131 = por %p129, %p130
      %p133 = scmp.ne.s32.totalorder %s118, %s132
      %p134 = scmp.eq.s32.totalorder %s24, 0
      %p135 = por %p133, %p134
      %s137 = sadd.s32 %s136, 1
      %p140 = scmp.eq.s32.totalorder %s18, 1
      %p141 = scmp.ne.s32.totalorder %s136, %s138
      %p142 = scmp.eq.s32.totalorder %s18, 0
      %p143 = por %p141, %p142
      %p144 = scmp.ne.s32.totalorder %s136, %s138
      %p145 = scmp.eq.s32.totalorder %s23, 1
      %p146 = por %p144, %p145
      %p147 = scmp.ne.s32.totalorder %s138, %s139
      %p148 = scmp.eq.s32.totalorder %s23, 0
      %p149 = por %p147, %p148
      %p150 = scmp.ne.s32.totalorder %s138, %s139
      %p151 = scmp.eq.s32.totalorder %s24, 1
      %p152 = por %p150, %p151
      %p154 = scmp.ne.s32.totalorder %s139, %s153
      %p155 = scmp.eq.s32.totalorder %s24, 0
      %p156 = por %p154, %p155
      %s158 = sadd.s32 %s157, 1
      %p161 = scmp.eq.s32.totalorder %s18, 1
      %p162 = scmp.ne.s32.totalorder %s157, %s159
      %p163 = scmp.eq.s32.totalorder %s18, 0
      %p164 = por %p162, %p163
      %p165 = scmp.ne.s32.totalorder %s157, %s159
      %p166 = scmp.eq.s32.totalorder %s23, 1
      %p167 = por %p165, %p166
      %p168 = scmp.ne.s32.totalorder %s159, %s160
      %p169 = scmp.eq.s32.totalorder %s23, 0
      %p170 = por %p168, %p169
      %p171 = scmp.ne.s32.totalorder %s159, %s160
      %p172 = scmp.eq.s32.totalorder %s24, 1
      %p173 = por %p171, %p172
      %p175 = scmp.ne.s32.totalorder %s160, %s174
      %p176 = scmp.eq.s32.totalorder %s24, 0
      %p177 = por %p175, %p176
      %s178 = ssub.s32 %s18, %s25
      %p179 = scmp.eq.s32.totalorder %s178, 0
      %s181 = sadd.s32 %s180, 1
      %s182 = scalar_select %p179, %s180, %s181
      %p185 = pneg %p179
      %p186 = scmp.eq.s32.totalorder %s18, 1
      %p187 = por %p185, %p186
      %p188 = scmp.ne.s32.totalorder %s180, %s183
      %p189 = scmp.eq.s32.totalorder %s18, 0
      %p190 = por %p188, %p189
      %p191 = scmp.ne.s32.totalorder %s180, %s183
      %p192 = scmp.eq.s32.totalorder %s23, 1
      %p193 = por %p191, %p192
      %p194 = scmp.ne.s32.totalorder %s183, %s184
      %p195 = scmp.eq.s32.totalorder %s23, 0
      %p196 = por %p194, %p195
      %p197 = scmp.ne.s32.totalorder %s183, %s184
      %p198 = scmp.eq.s32.totalorder %s24, 1
      %p199 = por %p197, %p198
      %p201 = scmp.ne.s32.totalorder %s184, %s200
      %p202 = scmp.eq.s32.totalorder %s24, 0
      %p203 = por %p201, %p202
      %p204 = scmp.le.s32.totalorder 1, %s18
      %p205 = scmp.lt.s32.totalorder %s18, 3
      %p206 = pnand %p204, %p205
      %p207 = pneg %p206
      // Predicated region
      $region9: #{tpu_custom_call.1} parent=5 // pred_check
        _
      $region10: #{tpu_custom_call.1} parent=5 // pred_check_branch
        %209 = sbr.rel (%p206) target = $region12
      $region11: #{tpu_custom_call.1} parent=5 // pred_region
        %s210 = ssub.s32 %s18, 1
        // Predicated region
        $region13: #{tpu_custom_call.1} parent=11 // pred_check
          %p211 = pneg %p65
        $region14: #{tpu_custom_call.1} parent=11 // pred_check_branch
          %213 = sbr.rel (%p211) target = $region16
        $region15: #{tpu_custom_call.1} parent=11 // pred_region
          _
        $region16: #{tpu_custom_call.1} parent=11 // pred_fallthru
          _
        // Predicated region
        $region17: #{tpu_custom_call.1} parent=11 // pred_check
          %p214 = pneg %p86
        $region18: #{tpu_custom_call.1} parent=11 // pred_check_branch
          %216 = sbr.rel (%p214) target = $region20
        $region19: #{tpu_custom_call.1} parent=11 // pred_region
          _
        $region20: #{tpu_custom_call.1} parent=11 // pred_fallthru
          _
        // Predicated region
        $region21: #{tpu_custom_call.1} parent=11 // pred_check
          %p217 = pneg %p107
        $region22: #{tpu_custom_call.1} parent=11 // pred_check_branch
          %219 = sbr.rel (%p217) target = $region24
        $region23: #{tpu_custom_call.1} parent=11 // pred_region
          _
        $region24: #{tpu_custom_call.1} parent=11 // pred_fallthru
          _
        // Predicated region
        $region25: #{tpu_custom_call.1} parent=11 // pred_check
          %p220 = pneg %p128
        $region26: #{tpu_custom_call.1} parent=11 // pred_check_branch
          %222 = sbr.rel (%p220) target = $region28
        $region27: #{tpu_custom_call.1} parent=11 // pred_region
          _
        $region28: #{tpu_custom_call.1} parent=11 // pred_fallthru
          _
        // Predicated region
        $region29: #{tpu_custom_call.1} parent=11 // pred_check
          %p223 = pneg %p149
        $region30: #{tpu_custom_call.1} parent=11 // pred_check_branch
          %225 = sbr.rel (%p223) target = $region32
        $region31: #{tpu_custom_call.1} parent=11 // pred_region
          %s227 = ssub.s32 16, 16
          %228 = vsyncadd [#allocation4], %s227
          %s230 = sshll.u32 %s5, 4
          %s231 = int_to_ptr.vmem [resolvable:$true] %s230
          %233 = dma.vmem_to_smem %s231, 16, [#allocation2], [#allocation4]
        $region32: #{tpu_custom_call.1} parent=11 // pred_fallthru
          _
        // Predicated region
        $region33: #{tpu_custom_call.1} parent=11 // pred_check
          %p234 = pneg %p170
        $region34: #{tpu_custom_call.1} parent=11 // pred_check_branch
          %236 = sbr.rel (%p234) target = $region36
        $region35: #{tpu_custom_call.1} parent=11 // pred_region
          %s238 = ssub.s32 16, 16
          %239 = vsyncadd [#allocation6], %s238
          %s241 = sshll.u32 %s6, 4
          %s242 = int_to_ptr.vmem [resolvable:$true] %s241
          %244 = dma.vmem_to_smem %s242, 16, [#allocation5], [#allocation6]
        $region36: #{tpu_custom_call.1} parent=11 // pred_fallthru
          _
      $region12: #{tpu_custom_call.1} parent=5 // pred_fallthru
        _
      %p245 = scmp.lt.s32.totalorder %s18, 2
      // Predicated region
      $region37: #{tpu_custom_call.1} parent=5 // pred_check
        %p246 = pneg %p245
      $region38: #{tpu_custom_call.1} parent=5 // pred_check_branch
        %248 = sbr.rel (%p246) target = $region40
      $region39: #{tpu_custom_call.1} parent=5 // pred_region
        // Predicated region
        $region41: #{tpu_custom_call.1} parent=39 // pred_check
          %p249 = pneg %p38
        $region42: #{tpu_custom_call.1} parent=39 // pred_check_branch
          %251 = sbr.rel (%p249) target = $region44
        $region43: #{tpu_custom_call.1} parent=39 // pred_region
          %p252 = scmp.lt.s32.totalorder %s18, 1
          %s253 = scalar_select %p252, %s18, 1
          %s254 = smul.addr %s253, 8
          %s255 = smul.addr %s254, 4
          %s256 = scalar_lea.vmem %s0, %s255
        $region44: #{tpu_custom_call.1} parent=39 // pred_fallthru
          _
      $region40: #{tpu_custom_call.1} parent=5 // pred_fallthru
        _
      %p257 = scmp.le.s32.totalorder 1, %s18
      %p258 = scmp.lt.s32.totalorder %s18, 3
      %p259 = pnand %p257, %p258
      %p260 = pneg %p259
      // Predicated region
      $region45: #{tpu_custom_call.1} parent=5 // pred_check
        _
      $region46: #{tpu_custom_call.1} parent=5 // pred_check_branch
        %262 = sbr.rel (%p259) target = $region48
      $region47: #{tpu_custom_call.1} parent=5 // pred_region
        %s263 = ssub.s32 %s18, 1
        // Predicated region
        $region49: #{tpu_custom_call.1} parent=47 // pred_check
          %p264 = pneg %p149
        $region50: #{tpu_custom_call.1} parent=47 // pred_check_branch
          %266 = sbr.rel (%p264) target = $region52
        $region51: #{tpu_custom_call.1} parent=47 // pred_region
          %267 = dma.done [#allocation4], 16
        $region52: #{tpu_custom_call.1} parent=47 // pred_fallthru
          _
        // Predicated region
        $region53: #{tpu_custom_call.1} parent=47 // pred_check
          %p268 = pneg %p170
        $region54: #{tpu_custom_call.1} parent=47 // pred_check_branch
          %270 = sbr.rel (%p268) target = $region56
        $region55: #{tpu_custom_call.1} parent=47 // pred_region
          %271 = dma.done [#allocation6], 16
        $region56: #{tpu_custom_call.1} parent=47 // pred_fallthru
          _
        %272 = sfence
        %p273 = scmp.lt.s32.totalorder %s23, 1
        %s274 = scalar_select %p273, %s23, 1
        %s275 = smul.addr %s274, 8
        %s276 = smul.addr %s275, 4
        %s277 = scalar_lea.vmem %s0, %s276
        %p278 = pneg %p44
        %p279 = pneg %p41
        %p280 = pneg %p65
        %p281 = pneg %p62
        %p282 = pneg %p86
        %p283 = pneg %p83
        %p284 = pneg %p107
        %p285 = pneg %p104
        %p286 = pneg %p128
        %p287 = pneg %p125
        %p288 = pneg %p149
        %p289 = pneg %p146
        %p290 = pneg %p170
        %p291 = pneg %p167
        %p292 = pneg %p196
        %p293 = pneg %p193
        %s294 = sand.u32 %s183, 1
        %s295 = scalar_lea.sflag [#allocation3], %s294
        %s296 = sand.u32 %s183, 1
        %s297 = smul.addr %s296, 32
        %s298 = scalar_lea.vmem [#allocation7], %s297
        %p299 = scmp.lt.s32.totalorder %s23, 1
        %s300 = scalar_select %p299, %s23, 1
        %s301 = smul.addr %s300, 8
        %s302 = smul.addr %s301, 4
        %s303 = scalar_lea.vmem %s0, %s302
        %v304 = vld [vmem:[%s1] sm:$0x3]
        %v305 = vld [vmem:[%s2] sm:$0x3]
        %v306 = vld [vmem:[%s3] sm:$0xff]
        %v307 = vld [vmem:[%s3 + $0x8] sm:$0xff]
        %v308 = vld [vmem:[%s3 + $0x10] sm:$0xff]
        %v309 = vld [vmem:[%s3 + $0x18] sm:$0xff]
        %v310 = vld [vmem:[%s4] sm:$0xff]
        %v311 = vld [vmem:[%s4 + $0x8] sm:$0xff]
        %v312 = vld [vmem:[%s4 + $0x10] sm:$0xff]
        %v313 = vld [vmem:[%s4 + $0x18] sm:$0xff]
        %v314 = vlaneseq
        %v315 = vand.u32 %v314, 127
        %v316 = vadd.s32 %v315, 128
        %vm317 = vcmp.lt.s32.totalorder %v315, 0
        %v318 = vsub.s32 0, %v315
        %v319 = vsel %vm317, %v318, %v315
        %v320 = vshrl.u32 %v319, 4
        %v321 = vand.u32 %v319, 15
        %v322 = vsub.s32 0, %v321
        %v323 = vsel %vm317, %v322, %v321
        %vm324 = vcmp.lt.s32.totalorder %v316, 0
        %v325 = vsub.s32 0, %v316
        %v326 = vsel %vm324, %v325, %v316
        %v327 = vshrl.u32 %v326, 4
        %v328 = vand.u32 %v326, 15
        %v329 = vsub.s32 0, %v328
        %v330 = vsel %vm324, %v329, %v328
        %vm331 = vcmp.ne.s32.totalorder %v323, 0
        %vm332 = vcmp.ne.s32.totalorder %v330, 0
        %vm333 = vcmp.lt.s32.totalorder %v323, 0
        %vm334 = vcmp.lt.s32.totalorder %v330, 0
        %vm335 = vmand %vm333, %vm331
        %vm336 = vmand %vm334, %vm332
        %v337 = vadd.s32 %v323, 16
        %v338 = vadd.s32 %v330, 16
        %v339 = vsel %vm335, %v337, %v323
        %v340 = vsel %vm336, %v338, %v330
        %v341 = vld [vmem:[%s303] sm:$0xff]
        %v342 = vld [vmem:[%s303 + $0x8] sm:$0xff]
        %v343 = vld [vmem:[%s303 + $0x10] sm:$0xff]
        %v344 = vld [vmem:[%s303 + $0x18] sm:$0xff]
        %v345 = vunpack.c.l.bf16 %v341
        %v346 = vunpack.c.h.bf16 %v341
        %v347 = vunpack.c.l.bf16 %v342
        %v348 = vunpack.c.h.bf16 %v342
        %v349 = vunpack.c.l.bf16 %v343
        %v350 = vunpack.c.h.bf16 %v343
        %v351 = vunpack.c.l.bf16 %v344
        %v352 = vunpack.c.h.bf16 %v344
        %v353 = vadd.f32 %v345, %v346
        %354 = vadd.xlane.f32.xlu0 %v353
        %v355 = vpop.xlane.xlu0 %354
        %v356 = vadd.f32 %v347, %v348
        %357 = vadd.xlane.f32.xlu0 %v356
        %v358 = vpop.xlane.xlu0 %357
        %v359 = vadd.f32 %v349, %v350
        %360 = vadd.xlane.f32.xlu0 %v359
        %v361 = vpop.xlane.xlu0 %360
        %v362 = vadd.f32 %v351, %v352
        %363 = vadd.xlane.f32.xlu0 %v362
        %v364 = vpop.xlane.xlu0 %363
        %v365 = vmul.f32 %v355, 0.00390625
        %v366 = vmul.f32 %v358, 0.00390625
        %v367 = vmul.f32 %v361, 0.00390625
        %v368 = vmul.f32 %v364, 0.00390625
        %v369 = vmax.f32 %v345, %v346
        %370 = vmax.xlane.f32.xlu0 %v369
        %v371 = vpop.xlane.xlu0 %370
        %v372 = vmax.f32 %v347, %v348
        %373 = vmax.xlane.f32.xlu0 %v372
        %v374 = vpop.xlane.xlu0 %373
        %v375 = vmax.f32 %v349, %v350
        %376 = vmax.xlane.f32.xlu0 %v375
        %v377 = vpop.xlane.xlu0 %376
        %v378 = vmax.f32 %v351, %v352
        %379 = vmax.xlane.f32.xlu0 %v378
        %v380 = vpop.xlane.xlu0 %379
        %vm381 = vcmask 261120
        %v383 = vsel %vm381, %v304, 0
        %385 = vmatprep.subr.mxu0 0.0
        %386 = vmatpush1.msra.mxu0 %v365
        %387 = vmatprep.subr.mxu0 0.0
        %388 = vmatpush1.msra.mxu0 %v366
        %389 = vmatprep.subr.mxu0 0.0
        %390 = vmatpush1.msra.mxu0 %v367
        %391 = vmatprep.subr.mxu0 0.0
        %392 = vmatpush1.msra.mxu0 %v368
        %393 = vmatprep.subr.mxu0 0.0
        %394 = vmatpush1.msra.mxu0 0.0
        %395 = vmatprep.subr.mxu0 0.0
        %396 = vmatpush1.msra.mxu0 0.0
        %397 = vmatprep.subr.mxu0 0.0
        %398 = vmatpush1.msra.mxu0 0.0
        %399 = vmatprep.subr.mxu0 0.0
        %400 = vmatpush1.msra.mxu0 0.0
        %401 = vmatprep.subr.mxu0 0.0
        %402 = vmatpush1.msra.mxu0 0.0
        %403 = vmatprep.subr.mxu0 0.0
        %404 = vmatpush1.msra.mxu0 0.0
        %405 = vmatprep.subr.mxu0 0.0
        %406 = vmatpush1.msra.mxu0 0.0
        %407 = vmatprep.subr.mxu0 0.0
        %408 = vmatpush1.msra.mxu0 0.0
        %409 = vmatprep.subr.mxu0 0.0
        %410 = vmatpush1.msra.mxu0 0.0
        %411 = vmatprep.subr.mxu0 0.0
        %412 = vmatpush1.msra.mxu0 0.0
        %413 = vmatprep.subr.mxu0 0.0
        %414 = vmatpush1.msra.mxu0 0.0
        %415 = vmatprep.subr.mxu0 0.0
        %416 = vmatpush1.msra.mxu0 0.0
        %417 = vmatprep.subr.mxu0 0.0
        %418 = vmatpush1.msra.mxu0 0.0
        %419 = vmatprep.subr.mxu0 0.0
        %420 = vmatpush1.msra.mxu0 0.0
        %421 = vmatprep.subr.mxu0 0.0
        %422 = vmatpush1.msra.mxu0 0.0
        %423 = vmatprep.subr.mxu0 0.0
        %424 = vmatpush1.msra.mxu0 0.0
        %425 = vmatprep.subr.mxu0 0.0
        %426 = vmatpush1.msra.mxu0 0.0
        %427 = vmatprep.subr.mxu0 0.0
        %428 = vmatpush1.msra.mxu0 0.0
        %429 = vmatprep.subr.mxu0 0.0
        %430 = vmatpush1.msra.mxu0 0.0
        %431 = vmatprep.subr.mxu0 0.0
        %432 = vmatpush1.msra.mxu0 0.0
        %433 = vmatprep.subr.mxu0 0.0
        %434 = vmatpush1.msra.mxu0 0.0
        %435 = vmatprep.subr.mxu0 0.0
        %436 = vmatpush1.msra.mxu0 0.0
        %437 = vmatprep.subr.mxu0 0.0
        %438 = vmatpush1.msra.mxu0 0.0
        %439 = vmatprep.subr.mxu0 0.0
        %440 = vmatpush1.msra.mxu0 0.0
        %441 = vmatprep.subr.mxu0 0.0
        %442 = vmatpush1.msra.mxu0 0.0
        %443 = vmatprep.subr.mxu0 0.0
        %444 = vmatpush1.msra.mxu0 0.0
        %445 = vmatprep.subr.mxu0 0.0
        %446 = vmatpush1.msra.mxu0 0.0
        %447 = vmatprep.subr.mxu0 0.0
        %448 = vmatpush1.msra.mxu0 0.0
        %449 = vmatprep.mubr.f32.mxu0 0.0
        %450 = vmatmul.mubr.f32.gmra.mrb[0].mxu0 %v383
        %v451 = vpop.f32.mrb[0].mxu0
        %v452 = vadd.f32 %v305, %v451
        %v453 = vpop.f32.mrb[0].mxu0
        %454 = vdwg.mxu0
        %v455 = vmax.f32 %v452, 0.0
        %vm456 = vcmask 15360
        %v458 = vsel %vm456, %v306, 0
        %v461 = vsel %vm456, %v307, 0
        %v464 = vsel %vm456, %v308, 0
        %v467 = vsel %vm456, %v309, 0
        %vm469 = vcmask 1041408
        %v471 = vsel %vm469, %v455, 0
        %473 = vmatprep.subr.mxu0 0.0
        %474 = vmatpush1.msra.mxu0 %v471
        %475 = vmatprep.subr.mxu0 0.0
        %476 = vmatpush1.msra.mxu0 0.0
        %477 = vmatprep.subr.mxu0 0.0
        %478 = vmatpush1.msra.mxu0 0.0
        %479 = vmatprep.subr.mxu0 0.0
        %480 = vmatpush1.msra.mxu0 0.0
        %481 = vmatprep.subr.mxu0 0.0
        %482 = vmatpush1.msra.mxu0 0.0
        %483 = vmatprep.subr.mxu0 0.0
        %484 = vmatpush1.msra.mxu0 0.0
        %485 = vmatprep.subr.mxu0 0.0
        %486 = vmatpush1.msra.mxu0 0.0
        %487 = vmatprep.subr.mxu0 0.0
        %488 = vmatpush1.msra.mxu0 0.0
        %489 = vmatprep.subr.mxu0 0.0
        %490 = vmatpush1.msra.mxu0 0.0
        %491 = vmatprep.subr.mxu0 0.0
        %492 = vmatpush1.msra.mxu0 0.0
        %493 = vmatprep.subr.mxu0 0.0
        %494 = vmatpush1.msra.mxu0 0.0
        %495 = vmatprep.subr.mxu0 0.0
        %496 = vmatpush1.msra.mxu0 0.0
        %497 = vmatprep.subr.mxu0 0.0
        %498 = vmatpush1.msra.mxu0 0.0
        %499 = vmatprep.subr.mxu0 0.0
        %500 = vmatpush1.msra.mxu0 0.0
        %501 = vmatprep.subr.mxu0 0.0
        %502 = vmatpush1.msra.mxu0 0.0
        %503 = vmatprep.subr.mxu0 0.0
        %504 = vmatpush1.msra.mxu0 0.0
        %505 = vmatprep.subr.mxu0 0.0
        %506 = vmatpush1.msra.mxu0 0.0
        %507 = vmatprep.subr.mxu0 0.0
        %508 = vmatpush1.msra.mxu0 0.0
        %509 = vmatprep.subr.mxu0 0.0
        %510 = vmatpush1.msra.mxu0 0.0
        %511 = vmatprep.subr.mxu0 0.0
        %512 = vmatpush1.msra.mxu0 0.0
        %513 = vmatprep.subr.mxu0 0.0
        %514 = vmatpush1.msra.mxu0 0.0
        %515 = vmatprep.subr.mxu0 0.0
        %516 = vmatpush1.msra.mxu0 0.0
        %517 = vmatprep.subr.mxu0 0.0
        %518 = vmatpush1.msra.mxu0 0.0
        %519 = vmatprep.subr.mxu0 0.0
        %520 = vmatpush1.msra.mxu0 0.0
        %521 = vmatprep.subr.mxu0 0.0
        %522 = vmatpush1.msra.mxu0 0.0
        %523 = vmatprep.subr.mxu0 0.0
        %524 = vmatpush1.msra.mxu0 0.0
        %525 = vmatprep.subr.mxu0 0.0
        %526 = vmatpush1.msra.mxu0 0.0
        %527 = vmatprep.subr.mxu0 0.0
        %528 = vmatpush1.msra.mxu0 0.0
        %529 = vmatprep.subr.mxu0 0.0
        %530 = vmatpush1.msra.mxu0 0.0
        %531 = vmatprep.subr.mxu0 0.0
        %532 = vmatpush1.msra.mxu0 0.0
        %533 = vmatprep.subr.mxu0 0.0
        %534 = vmatpush1.msra.mxu0 0.0
        %535 = vmatprep.subr.mxu0 0.0
        %536 = vmatpush1.msra.mxu0 0.0
        %537 = vmatprep.mubr.f32.mxu0 0.0
        %538 = vmatmul.mubr.f32.gmra.mrb[0].mxu0 %v458
        %v539 = vpop.f32.mrb[0].mxu0
        %v540 = vadd.f32 %v310, %v539
        %v541 = vpop.f32.mrb[0].mxu0
        %542 = vmatprep.mubr.f32.mxu0 0.0
        %543 = vmatmul.mubr.f32.gmra.mrb[0].mxu0 %v461
        %v544 = vpop.f32.mrb[0].mxu0
        %v545 = vadd.f32 %v311, %v544
        %v546 = vpop.f32.mrb[0].mxu0
        %547 = vmatprep.mubr.f32.mxu0 0.0
        %548 = vmatmul.mubr.f32.gmra.mrb[0].mxu0 %v464
        %v549 = vpop.f32.mrb[0].mxu0
        %v550 = vadd.f32 %v312, %v549
        %v551 = vpop.f32.mrb[0].mxu0
        %552 = vmatprep.mubr.f32.mxu0 0.0
        %553 = vmatmul.mubr.f32.gmra.mrb[0].mxu0 %v467
        %v554 = vpop.f32.mrb[0].mxu0
        %v555 = vadd.f32 %v313, %v554
        %v556 = vpop.f32.mrb[0].mxu0
        %557 = vdwg.mxu0
        %558 = vmatprep.subr.mxu0 0.0
        %559 = vmatpush1.msra.mxu0 %v371
        %560 = vmatprep.subr.mxu0 0.0
        %561 = vmatpush1.msra.mxu0 %v374
        %562 = vmatprep.subr.mxu0 0.0
        %563 = vmatpush1.msra.mxu0 %v377
        %564 = vmatprep.subr.mxu0 0.0
        %565 = vmatpush1.msra.mxu0 %v380
        %566 = vmatprep.subr.mxu0 0.0
        %567 = vmatpush1.msra.mxu0 0.0
        %568 = vmatprep.subr.mxu0 0.0
        %569 = vmatpush1.msra.mxu0 0.0
        %570 = vmatprep.subr.mxu0 0.0
        %571 = vmatpush1.msra.mxu0 0.0
        %572 = vmatprep.subr.mxu0 0.0
        %573 = vmatpush1.msra.mxu0 0.0
        %574 = vmatprep.subr.mxu0 0.0
        %575 = vmatpush1.msra.mxu0 0.0
        %576 = vmatprep.subr.mxu0 0.0
        %577 = vmatpush1.msra.mxu0 0.0
        %578 = vmatprep.subr.mxu0 0.0
        %579 = vmatpush1.msra.mxu0 0.0
        %580 = vmatprep.subr.mxu0 0.0
        %581 = vmatpush1.msra.mxu0 0.0
        %582 = vmatprep.subr.mxu0 0.0
        %583 = vmatpush1.msra.mxu0 0.0
        %584 = vmatprep.subr.mxu0 0.0
        %585 = vmatpush1.msra.mxu0 0.0
        %586 = vmatprep.subr.mxu0 0.0
        %587 = vmatpush1.msra.mxu0 0.0
        %588 = vmatprep.subr.mxu0 0.0
        %589 = vmatpush1.msra.mxu0 0.0
        %590 = vmatprep.subr.mxu0 0.0
        %591 = vmatpush1.msra.mxu0 0.0
        %592 = vmatprep.subr.mxu0 0.0
        %593 = vmatpush1.msra.mxu0 0.0
        %594 = vmatprep.subr.mxu0 0.0
        %595 = vmatpush1.msra.mxu0 0.0
        %596 = vmatprep.subr.mxu0 0.0
        %597 = vmatpush1.msra.mxu0 0.0
        %598 = vmatprep.subr.mxu0 0.0
        %599 = vmatpush1.msra.mxu0 0.0
        %600 = vmatprep.subr.mxu0 0.0
        %601 = vmatpush1.msra.mxu0 0.0
        %602 = vmatprep.subr.mxu0 0.0
        %603 = vmatpush1.msra.mxu0 0.0
        %604 = vmatprep.subr.mxu0 0.0
        %605 = vmatpush1.msra.mxu0 0.0
        %606 = vmatprep.subr.mxu0 0.0
        %607 = vmatpush1.msra.mxu0 0.0
        %608 = vmatprep.subr.mxu0 0.0
        %609 = vmatpush1.msra.mxu0 0.0
        %610 = vmatprep.subr.mxu0 0.0
        %611 = vmatpush1.msra.mxu0 0.0
        %612 = vmatprep.subr.mxu0 0.0
        %613 = vmatpush1.msra.mxu0 0.0
        %614 = vmatprep.subr.mxu0 0.0
        %615 = vmatpush1.msra.mxu0 0.0
        %616 = vmatprep.subr.mxu0 0.0
        %617 = vmatpush1.msra.mxu0 0.0
        %618 = vmatprep.subr.mxu0 0.0
        %619 = vmatpush1.msra.mxu0 0.0
        %620 = vmatprep.subr.mxu0 0.0
        %621 = vmatpush1.msra.mxu0 0.0
        %622 = vmatprep.mubr.f32.mxu0 0.0
        %623 = vmatmul.mubr.f32.gmra.mrb[0].mxu0 %v383
        %v624 = vpop.f32.mrb[0].mxu0
        %v625 = vadd.f32 %v305, %v624
        %v626 = vpop.f32.mrb[0].mxu0
        %627 = vdwg.mxu0
        %v628 = vmax.f32 %v625, 0.0
        %v630 = vsel %vm469, %v628, 0
        %632 = vmatprep.subr.mxu0 0.0
        %633 = vmatpush1.msra.mxu0 %v630
        %634 = vmatprep.subr.mxu0 0.0
        %635 = vmatpush1.msra.mxu0 0.0
        %636 = vmatprep.subr.mxu0 0.0
        %637 = vmatpush1.msra.mxu0 0.0
        %638 = vmatprep.subr.mxu0 0.0
        %639 = vmatpush1.msra.mxu0 0.0
        %640 = vmatprep.subr.mxu0 0.0
        %641 = vmatpush1.msra.mxu0 0.0
        %642 = vmatprep.subr.mxu0 0.0
        %643 = vmatpush1.msra.mxu0 0.0
        %644 = vmatprep.subr.mxu0 0.0
        %645 = vmatpush1.msra.mxu0 0.0
        %646 = vmatprep.subr.mxu0 0.0
        %647 = vmatpush1.msra.mxu0 0.0
        %648 = vmatprep.subr.mxu0 0.0
        %649 = vmatpush1.msra.mxu0 0.0
        %650 = vmatprep.subr.mxu0 0.0
        %651 = vmatpush1.msra.mxu0 0.0
        %652 = vmatprep.subr.mxu0 0.0
        %653 = vmatpush1.msra.mxu0 0.0
        %654 = vmatprep.subr.mxu0 0.0
        %655 = vmatpush1.msra.mxu0 0.0
        %656 = vmatprep.subr.mxu0 0.0
        %657 = vmatpush1.msra.mxu0 0.0
        %658 = vmatprep.subr.mxu0 0.0
        %659 = vmatpush1.msra.mxu0 0.0
        %660 = vmatprep.subr.mxu0 0.0
        %661 = vmatpush1.msra.mxu0 0.0
        %662 = vmatprep.subr.mxu0 0.0
        %663 = vmatpush1.msra.mxu0 0.0
        %664 = vmatprep.subr.mxu0 0.0
        %665 = vmatpush1.msra.mxu0 0.0
        %666 = vmatprep.subr.mxu0 0.0
        %667 = vmatpush1.msra.mxu0 0.0
        %668 = vmatprep.subr.mxu0 0.0
        %669 = vmatpush1.msra.mxu0 0.0
        %670 = vmatprep.subr.mxu0 0.0
        %671 = vmatpush1.msra.mxu0 0.0
        %672 = vmatprep.subr.mxu0 0.0
        %673 = vmatpush1.msra.mxu0 0.0
        %674 = vmatprep.subr.mxu0 0.0
        %675 = vmatpush1.msra.mxu0 0.0
        %676 = vmatprep.subr.mxu0 0.0
        %677 = vmatpush1.msra.mxu0 0.0
        %678 = vmatprep.subr.mxu0 0.0
        %679 = vmatpush1.msra.mxu0 0.0
        %680 = vmatprep.subr.mxu0 0.0
        %681 = vmatpush1.msra.mxu0 0.0
        %682 = vmatprep.subr.mxu0 0.0
        %683 = vmatpush1.msra.mxu0 0.0
        %684 = vmatprep.subr.mxu0 0.0
        %685 = vmatpush1.msra.mxu0 0.0
        %686 = vmatprep.subr.mxu0 0.0
        %687 = vmatpush1.msra.mxu0 0.0
        %688 = vmatprep.subr.mxu0 0.0
        %689 = vmatpush1.msra.mxu0 0.0
        %690 = vmatprep.subr.mxu0 0.0
        %691 = vmatpush1.msra.mxu0 0.0
        %692 = vmatprep.subr.mxu0 0.0
        %693 = vmatpush1.msra.mxu0 0.0
        %694 = vmatprep.subr.mxu0 0.0
        %695 = vmatpush1.msra.mxu0 0.0
        %696 = vmatprep.mubr.f32.mxu0 0.0
        %697 = vmatmul.mubr.f32.gmra.mrb[0].mxu0 %v458
        %v698 = vpop.f32.mrb[0].mxu0
        %v699 = vadd.f32 %v310, %v698
        %v700 = vpop.f32.mrb[0].mxu0
        %701 = vmatprep.mubr.f32.mxu0 0.0
        %702 = vmatmul.mubr.f32.gmra.mrb[0].mxu0 %v461
        %v703 = vpop.f32.mrb[0].mxu0
        %v704 = vadd.f32 %v311, %v703
        %v705 = vpop.f32.mrb[0].mxu0
        %706 = vmatprep.mubr.f32.mxu0 0.0
        %707 = vmatmul.mubr.f32.gmra.mrb[0].mxu0 %v464
        %v708 = vpop.f32.mrb[0].mxu0
        %v709 = vadd.f32 %v312, %v708
        %v710 = vpop.f32.mrb[0].mxu0
        %711 = vmatprep.mubr.f32.mxu0 0.0
        %712 = vmatmul.mubr.f32.gmra.mrb[0].mxu0 %v467
        %v713 = vpop.f32.mrb[0].mxu0
        %v714 = vadd.f32 %v313, %v713
        %v715 = vpop.f32.mrb[0].mxu0
        %716 = vdwg.mxu0
        %v717 = vadd.f32 %v540, %v699
        %v718 = vadd.f32 %v545, %v704
        %v719 = vadd.f32 %v550, %v709
        %v720 = vadd.f32 %v555, %v714
        %v721 = vxor.u32 %v717, 2147483648
        %v722 = vxor.u32 %v718, 2147483648
        %v723 = vxor.u32 %v719, 2147483648
        %v724 = vxor.u32 %v720, 2147483648
        %v725 = vmul.f32 %v721, 1.442695
        %v726 = vpow.pop %v725
        %v727 = vmul.f32 %v722, 1.442695
        %v728 = vpow.pop %v727
        %v729 = vmul.f32 %v723, 1.442695
        %v730 = vpow.pop %v729
        %v731 = vmul.f32 %v724, 1.442695
        %v732 = vpow.pop %v731
        %v733 = vadd.f32 %v726, 1.0
        %v734 = vadd.f32 %v728, 1.0
        %v735 = vadd.f32 %v730, 1.0
        %v736 = vadd.f32 %v732, 1.0
        %v737 = vrcp.pop %v733
        %v738 = vmul.f32 1.0, %v737
        %v739 = vrcp.pop %v734
        %v740 = vmul.f32 1.0, %v739
        %v741 = vrcp.pop %v735
        %v742 = vmul.f32 1.0, %v741
        %v743 = vrcp.pop %v736
        %v744 = vmul.f32 1.0, %v743
        %746 = vset.pattern.permute.xlu0 0
        %747 = vperm.xlu0 %746, %v738
        %v748 = vpop.permute.xlu0 %747
        %751 = vset.pattern.permute.xlu0 0
        %752 = vperm.xlu0 %751, %v740
        %v753 = vpop.permute.xlu0 %752
        %756 = vset.pattern.permute.xlu0 0
        %757 = vperm.xlu0 %756, %v742
        %v758 = vpop.permute.xlu0 %757
        %761 = vset.pattern.permute.xlu0 0
        %762 = vperm.xlu0 %761, %v744
        %v763 = vpop.permute.xlu0 %762
        %v765 = vmul.f32 %v345, %v748
        %v766 = vmul.f32 %v346, %v748
        %v767 = vmul.f32 %v347, %v753
        %v768 = vmul.f32 %v348, %v753
        %v769 = vmul.f32 %v349, %v758
        %v770 = vmul.f32 %v350, %v758
        %v771 = vmul.f32 %v351, %v763
        %v772 = vmul.f32 %v352, %v763
        %v773 = vmax.f32 %v765, %v769
        %v774 = vmax.f32 %v767, %v771
        %v775 = vmax.f32 %v773, %v774
        %v776 = vrot.slane %v775, 4
        %v777 = vmax.f32 %v775, %v776
        %v778 = vrot.slane %v777, 2
        %v779 = vmax.f32 %v777, %v778
        %v780 = vrot.slane %v779, 1
        %v781 = vmax.f32 %v779, %v780
        %v782 = vmax.f32 %v766, %v770
        %v783 = vmax.f32 %v768, %v772
        %v784 = vmax.f32 %v782, %v783
        %v785 = vrot.slane %v784, 4
        %v786 = vmax.f32 %v784, %v785
        %v787 = vrot.slane %v786, 2
        %v788 = vmax.f32 %v786, %v787
        %v789 = vrot.slane %v788, 1
        %v790 = vmax.f32 %v788, %v789
        %v791 = vadd.f32 %v765, %v767
        %v792 = vadd.f32 %v791, %v769
        %v793 = vadd.f32 %v792, %v771
        %v794 = vrot.slane %v793, 4
        %v795 = vadd.f32 %v793, %v794
        %v796 = vrot.slane %v795, 2
        %v797 = vadd.f32 %v795, %v796
        %v798 = vrot.slane %v797, 1
        %v799 = vadd.f32 %v797, %v798
        %v800 = vadd.f32 %v766, %v768
        %v801 = vadd.f32 %v800, %v770
        %v802 = vadd.f32 %v801, %v772
        %v803 = vrot.slane %v802, 4
        %v804 = vadd.f32 %v802, %v803
        %v805 = vrot.slane %v804, 2
        %v806 = vadd.f32 %v804, %v805
        %v807 = vrot.slane %v806, 1
        %v808 = vadd.f32 %v806, %v807
        %v809 = vmul.f32 %v799, 0.03125
        %v810 = vmul.f32 %v808, 0.03125
        %813 = vrot.lane.b32.xlu0 %v781, 48
        %v814 = vpop.permute.xlu0 %813
        %815 = vrot.lane.b32.xlu0 %v790, 48
        %v816 = vpop.permute.xlu0 %815
        %vm817 = vcmask 392192
        %v818 = vsel %vm817, %v814, %v816
        %v821 = vsel %vm817, 0.0, %v814
        %822 = vrot.lane.b32.xlu0 %v781, 32
        %v823 = vpop.permute.xlu0 %822
        %824 = vrot.lane.b32.xlu0 %v790, 32
        %v825 = vpop.permute.xlu0 %824
        %v826 = vsel %vm381, %v823, %v825
        %v829 = vsel %vm381, 0.0, %v823
        %830 = vrot.lane.b32.xlu0 %v781, 16
        %v831 = vpop.permute.xlu0 %830
        %832 = vrot.lane.b32.xlu0 %v790, 16
        %v833 = vpop.permute.xlu0 %832
        %vm834 = vcmask 130048
        %v835 = vsel %vm834, %v831, %v833
        %v838 = vsel %vm834, 0.0, %v831
        %839 = vrot.lane.b32.xlu0 %v781, 112
        %v840 = vpop.permute.xlu0 %839
        %841 = vrot.lane.b32.xlu0 %v790, 112
        %v842 = vpop.permute.xlu0 %841
        %vm843 = vcmask 916480
        %v844 = vsel %vm843, %v840, %v842
        %v847 = vsel %vm843, %v842, 0.0
        %848 = vrot.lane.b32.xlu0 %v781, 96
        %v849 = vpop.permute.xlu0 %848
        %850 = vrot.lane.b32.xlu0 %v790, 96
        %v851 = vpop.permute.xlu0 %850
        %vm852 = vcmask 785408
        %v853 = vsel %vm852, %v849, %v851
        %v856 = vsel %vm852, %v851, 0.0
        %857 = vrot.lane.b32.xlu0 %v781, 80
        %v858 = vpop.permute.xlu0 %857
        %859 = vrot.lane.b32.xlu0 %v790, 80
        %v860 = vpop.permute.xlu0 %859
        %vm861 = vcmask 654336
        %v862 = vsel %vm861, %v858, %v860
        %v865 = vsel %vm861, %v860, 0.0
        %868 = vrot.lane.b32.xlu0 %v809, 48
        %v869 = vpop.permute.xlu0 %868
        %870 = vrot.lane.b32.xlu0 %v810, 48
        %v871 = vpop.permute.xlu0 %870
        %v872 = vsel %vm817, %v869, %v871
        %v875 = vsel %vm817, 0.0, %v869
        %876 = vrot.lane.b32.xlu0 %v809, 32
        %v877 = vpop.permute.xlu0 %876
        %878 = vrot.lane.b32.xlu0 %v810, 32
        %v879 = vpop.permute.xlu0 %878
        %v880 = vsel %vm381, %v877, %v879
        %v883 = vsel %vm381, 0.0, %v877
        %884 = vrot.lane.b32.xlu0 %v809, 16
        %v885 = vpop.permute.xlu0 %884
        %886 = vrot.lane.b32.xlu0 %v810, 16
        %v887 = vpop.permute.xlu0 %886
        %v888 = vsel %vm834, %v885, %v887
        %v891 = vsel %vm834, 0.0, %v885
        %892 = vrot.lane.b32.xlu0 %v809, 112
        %v893 = vpop.permute.xlu0 %892
        %894 = vrot.lane.b32.xlu0 %v810, 112
        %v895 = vpop.permute.xlu0 %894
        %v896 = vsel %vm843, %v893, %v895
        %v899 = vsel %vm843, %v895, 0.0
        %900 = vrot.lane.b32.xlu0 %v809, 96
        %v901 = vpop.permute.xlu0 %900
        %902 = vrot.lane.b32.xlu0 %v810, 96
        %v903 = vpop.permute.xlu0 %902
        %v904 = vsel %vm852, %v901, %v903
        %v907 = vsel %vm852, %v903, 0.0
        %908 = vrot.lane.b32.xlu0 %v809, 80
        %v909 = vpop.permute.xlu0 %908
        %910 = vrot.lane.b32.xlu0 %v810, 80
        %v911 = vpop.permute.xlu0 %910
        %v912 = vsel %vm861, %v909, %v911
        %v915 = vsel %vm861, %v911, 0.0
        %s916 = sld [smem:[#allocation2]]
        %v917 = vstv %s916
        %v918 = vmul.f32 %v917, %v821
        %v919 = vmul.f32 %v917, %v818
        %v920 = vadd.f32 %v918, 0.0
        %v921 = vadd.f32 %v919, 0.0
        %s922 = sld [smem:[#allocation2 + $0x31]]
        %v923 = vstv %s922
        %v924 = vmul.f32 %v923, %v875
        %v925 = vmul.f32 %v923, %v872
        %v926 = vadd.f32 %v920, %v924
        %v927 = vadd.f32 %v921, %v925
        %s928 = sld [smem:[#allocation2 + $0x7]]
        %v929 = vstv %s928
        %v930 = vmul.f32 %v929, %v829
        %v931 = vmul.f32 %v929, %v826
        %v932 = vadd.f32 %v926, %v930
        %v933 = vadd.f32 %v927, %v931
        %s934 = sld [smem:[#allocation2 + $0x38]]
        %v935 = vstv %s934
        %v936 = vmul.f32 %v935, %v883
        %v937 = vmul.f32 %v935, %v880
        %v938 = vadd.f32 %v932, %v936
        %v939 = vadd.f32 %v933, %v937
        %s940 = sld [smem:[#allocation2 + $0xe]]
        %v941 = vstv %s940
        %v942 = vmul.f32 %v941, %v838
        %v943 = vmul.f32 %v941, %v835
        %v944 = vadd.f32 %v938, %v942
        %v945 = vadd.f32 %v939, %v943
        %s946 = sld [smem:[#allocation2 + $0x3f]]
        %v947 = vstv %s946
        %v948 = vmul.f32 %v947, %v891
        %v949 = vmul.f32 %v947, %v888
        %v950 = vadd.f32 %v944, %v948
        %v951 = vadd.f32 %v945, %v949
        %s952 = sld [smem:[#allocation2 + $0x15]]
        %v953 = vstv %s952
        %v954 = vmul.f32 %v953, %v781
        %v955 = vmul.f32 %v953, %v790
        %v956 = vadd.f32 %v950, %v954
        %v957 = vadd.f32 %v951, %v955
        %s958 = sld [smem:[#allocation2 + $0x46]]
        %v959 = vstv %s958
        %v960 = vmul.f32 %v959, %v809
        %v961 = vmul.f32 %v959, %v810
        %v962 = vadd.f32 %v956, %v960
        %v963 = vadd.f32 %v957, %v961
        %s964 = sld [smem:[#allocation2 + $0x1c]]
        %v965 = vstv %s964
        %v966 = vmul.f32 %v965, %v844
        %v967 = vmul.f32 %v965, %v847
        %v968 = vadd.f32 %v962, %v966
        %v969 = vadd.f32 %v963, %v967
        %s970 = sld [smem:[#allocation2 + $0x4d]]
        %v971 = vstv %s970
        %v972 = vmul.f32 %v971, %v896
        %v973 = vmul.f32 %v971, %v899
        %v974 = vadd.f32 %v968, %v972
        %v975 = vadd.f32 %v969, %v973
        %s976 = sld [smem:[#allocation2 + $0x23]]
        %v977 = vstv %s976
        %v978 = vmul.f32 %v977, %v853
        %v979 = vmul.f32 %v977, %v856
        %v980 = vadd.f32 %v974, %v978
        %v981 = vadd.f32 %v975, %v979
        %s982 = sld [smem:[#allocation2 + $0x54]]
        %v983 = vstv %s982
        %v984 = vmul.f32 %v983, %v904
        %v985 = vmul.f32 %v983, %v907
        %v986 = vadd.f32 %v980, %v984
        %v987 = vadd.f32 %v981, %v985
        %s988 = sld [smem:[#allocation2 + $0x2a]]
        %v989 = vstv %s988
        %v990 = vmul.f32 %v989, %v862
        %v991 = vmul.f32 %v989, %v865
        %v992 = vadd.f32 %v986, %v990
        %v993 = vadd.f32 %v987, %v991
        %s994 = sld [smem:[#allocation2 + $0x5b]]
        %v995 = vstv %s994
        %v996 = vmul.f32 %v995, %v912
        %v997 = vmul.f32 %v995, %v915
        %v998 = vadd.f32 %v992, %v996
        %v999 = vadd.f32 %v993, %v997
        %1002 = vrot.lane.b32.xlu0 %v998, 3
        %v1003 = vpop.permute.xlu0 %1002
        %1004 = vrot.lane.b32.xlu0 %v999, 3
        %v1005 = vpop.permute.xlu0 %1004
        %vm1006 = vcmask 23552
        %v1007 = vsel %vm1006, %v1003, %v1005
        %v1010 = vsel %vm1006, 0.0, %v1003
        %v1011 = vadd.s32 %v339, 4294967293
        %v1012 = vadd.s32 %v340, 4294967293
        %vm1013 = vcmp.ge.s32.totalorder %v1011, 0
        %vm1014 = vcmp.ge.s32.totalorder %v1012, 0
        %vm1015 = vcmp.lt.s32.totalorder %v1011, 16
        %vm1016 = vcmp.lt.s32.totalorder %v1012, 16
        %vm1017 = vmand %vm1013, %vm1015
        %vm1018 = vmand %vm1014, %vm1016
        %v1019 = vsel %vm1017, %v1010, 0.0
        %v1020 = vsel %vm1018, %v1007, 0.0
        %v1021 = vadd.f32 %v1019, 0.0
        %v1022 = vadd.f32 %v1020, 0.0
        %s1023 = sld [smem:[#allocation2 + $0x1]]
        %v1024 = vstv %s1023
        %v1025 = vmul.f32 %v1024, %v821
        %v1026 = vmul.f32 %v1024, %v818
        %v1027 = vadd.f32 %v1025, 0.0
        %v1028 = vadd.f32 %v1026, 0.0
        %s1029 = sld [smem:[#allocation2 + $0x32]]
        %v1030 = vstv %s1029
        %v1031 = vmul.f32 %v1030, %v875
        %v1032 = vmul.f32 %v1030, %v872
        %v1033 = vadd.f32 %v1027, %v1031
        %v1034 = vadd.f32 %v1028, %v1032
        %s1035 = sld [smem:[#allocation2 + $0x8]]
        %v1036 = vstv %s1035
        %v1037 = vmul.f32 %v1036, %v829
        %v1038 = vmul.f32 %v1036, %v826
        %v1039 = vadd.f32 %v1033, %v1037
        %v1040 = vadd.f32 %v1034, %v1038
        %s1041 = sld [smem:[#allocation2 + $0x39]]
        %v1042 = vstv %s1041
        %v1043 = vmul.f32 %v1042, %v883
        %v1044 = vmul.f32 %v1042, %v880
        %v1045 = vadd.f32 %v1039, %v1043
        %v1046 = vadd.f32 %v1040, %v1044
        %s1047 = sld [smem:[#allocation2 + $0xf]]
        %v1048 = vstv %s1047
        %v1049 = vmul.f32 %v1048, %v838
        %v1050 = vmul.f32 %v1048, %v835
        %v1051 = vadd.f32 %v1045, %v1049
        %v1052 = vadd.f32 %v1046, %v1050
        %s1053 = sld [smem:[#allocation2 + $0x40]]
        %v1054 = vstv %s1053
        %v1055 = vmul.f32 %v1054, %v891
        %v1056 = vmul.f32 %v1054, %v888
        %v1057 = vadd.f32 %v1051, %v1055
        %v1058 = vadd.f32 %v1052, %v1056
        %s1059 = sld [smem:[#allocation2 + $0x16]]
        %v1060 = vstv %s1059
        %v1061 = vmul.f32 %v1060, %v781
        %v1062 = vmul.f32 %v1060, %v790
        %v1063 = vadd.f32 %v1057, %v1061
        %v1064 = vadd.f32 %v1058, %v1062
        %s1065 = sld [smem:[#allocation2 + $0x47]]
        %v1066 = vstv %s1065
        %v1067 = vmul.f32 %v1066, %v809
        %v1068 = vmul.f32 %v1066, %v810
        %v1069 = vadd.f32 %v1063, %v1067
        %v1070 = vadd.f32 %v1064, %v1068
        %s1071 = sld [smem:[#allocation2 + $0x1d]]
        %v1072 = vstv %s1071
        %v1073 = vmul.f32 %v1072, %v844
        %v1074 = vmul.f32 %v1072, %v847
        %v1075 = vadd.f32 %v1069, %v1073
        %v1076 = vadd.f32 %v1070, %v1074
        %s1077 = sld [smem:[#allocation2 + $0x4e]]
        %v1078 = vstv %s1077
        %v1079 = vmul.f32 %v1078, %v896
        %v1080 = vmul.f32 %v1078, %v899
        %v1081 = vadd.f32 %v1075, %v1079
        %v1082 = vadd.f32 %v1076, %v1080
        %s1083 = sld [smem:[#allocation2 + $0x24]]
        %v1084 = vstv %s1083
        %v1085 = vmul.f32 %v1084, %v853
        %v1086 = vmul.f32 %v1084, %v856
        %v1087 = vadd.f32 %v1081, %v1085
        %v1088 = vadd.f32 %v1082, %v1086
        %s1089 = sld [smem:[#allocation2 + $0x55]]
        %v1090 = vstv %s1089
        %v1091 = vmul.f32 %v1090, %v904
        %v1092 = vmul.f32 %v1090, %v907
        %v1093 = vadd.f32 %v1087, %v1091
        %v1094 = vadd.f32 %v1088, %v1092
        %s1095 = sld [smem:[#allocation2 + $0x2b]]
        %v1096 = vstv %s1095
        %v1097 = vmul.f32 %v1096, %v862
        %v1098 = vmul.f32 %v1096, %v865
        %v1099 = vadd.f32 %v1093, %v1097
        %v1100 = vadd.f32 %v1094, %v1098
        %s1101 = sld [smem:[#allocation2 + $0x5c]]
        %v1102 = vstv %s1101
        %v1103 = vmul.f32 %v1102, %v912
        %v1104 = vmul.f32 %v1102, %v915
        %v1105 = vadd.f32 %v1099, %v1103
        %v1106 = vadd.f32 %v1100, %v1104
        %1109 = vrot.lane.b32.xlu0 %v1105, 2
        %v1110 = vpop.permute.xlu0 %1109
        %1111 = vrot.lane.b32.xlu0 %v1106, 2
        %v1112 = vpop.permute.xlu0 %1111
        %v1113 = vsel %vm456, %v1110, %v1112
        %v1116 = vsel %vm456, 0.0, %v1110
        %v1117 = vadd.s32 %v339, 4294967294
        %v1118 = vadd.s32 %v340, 4294967294
        %vm1119 = vcmp.ge.s32.totalorder %v1117, 0
        %vm1120 = vcmp.ge.s32.totalorder %v1118, 0
        %vm1121 = vcmp.lt.s32.totalorder %v1117, 16
        %vm1122 = vcmp.lt.s32.totalorder %v1118, 16
        %vm1123 = vmand %vm1119, %vm1121
        %vm1124 = vmand %vm1120, %vm1122
        %v1125 = vsel %vm1123, %v1116, 0.0
        %v1126 = vsel %vm1124, %v1113, 0.0
        %v1127 = vadd.f32 %v1021, %v1125
        %v1128 = vadd.f32 %v1022, %v1126
        %s1129 = sld [smem:[#allocation2 + $0x2]]
        %v1130 = vstv %s1129
        %v1131 = vmul.f32 %v1130, %v821
        %v1132 = vmul.f32 %v1130, %v818
        %v1133 = vadd.f32 %v1131, 0.0
        %v1134 = vadd.f32 %v1132, 0.0
        %s1135 = sld [smem:[#allocation2 + $0x33]]
        %v1136 = vstv %s1135
        %v1137 = vmul.f32 %v1136, %v875
        %v1138 = vmul.f32 %v1136, %v872
        %v1139 = vadd.f32 %v1133, %v1137
        %v1140 = vadd.f32 %v1134, %v1138
        %s1141 = sld [smem:[#allocation2 + $0x9]]
        %v1142 = vstv %s1141
        %v1143 = vmul.f32 %v1142, %v829
        %v1144 = vmul.f32 %v1142, %v826
        %v1145 = vadd.f32 %v1139, %v1143
        %v1146 = vadd.f32 %v1140, %v1144
        %s1147 = sld [smem:[#allocation2 + $0x3a]]
        %v1148 = vstv %s1147
        %v1149 = vmul.f32 %v1148, %v883
        %v1150 = vmul.f32 %v1148, %v880
        %v1151 = vadd.f32 %v1145, %v1149
        %v1152 = vadd.f32 %v1146, %v1150
        %s1153 = sld [smem:[#allocation2 + $0x10]]
        %v1154 = vstv %s1153
        %v1155 = vmul.f32 %v1154, %v838
        %v1156 = vmul.f32 %v1154, %v835
        %v1157 = vadd.f32 %v1151, %v1155
        %v1158 = vadd.f32 %v1152, %v1156
        %s1159 = sld [smem:[#allocation2 + $0x41]]
        %v1160 = vstv %s1159
        %v1161 = vmul.f32 %v1160, %v891
        %v1162 = vmul.f32 %v1160, %v888
        %v1163 = vadd.f32 %v1157, %v1161
        %v1164 = vadd.f32 %v1158, %v1162
        %s1165 = sld [smem:[#allocation2 + $0x17]]
        %v1166 = vstv %s1165
        %v1167 = vmul.f32 %v1166, %v781
        %v1168 = vmul.f32 %v1166, %v790
        %v1169 = vadd.f32 %v1163, %v1167
        %v1170 = vadd.f32 %v1164, %v1168
        %s1171 = sld [smem:[#allocation2 + $0x48]]
        %v1172 = vstv %s1171
        %v1173 = vmul.f32 %v1172, %v809
        %v1174 = vmul.f32 %v1172, %v810
        %v1175 = vadd.f32 %v1169, %v1173
        %v1176 = vadd.f32 %v1170, %v1174
        %s1177 = sld [smem:[#allocation2 + $0x1e]]
        %v1178 = vstv %s1177
        %v1179 = vmul.f32 %v1178, %v844
        %v1180 = vmul.f32 %v1178, %v847
        %v1181 = vadd.f32 %v1175, %v1179
        %v1182 = vadd.f32 %v1176, %v1180
        %s1183 = sld [smem:[#allocation2 + $0x4f]]
        %v1184 = vstv %s1183
        %v1185 = vmul.f32 %v1184, %v896
        %v1186 = vmul.f32 %v1184, %v899
        %v1187 = vadd.f32 %v1181, %v1185
        %v1188 = vadd.f32 %v1182, %v1186
        %s1189 = sld [smem:[#allocation2 + $0x25]]
        %v1190 = vstv %s1189
        %v1191 = vmul.f32 %v1190, %v853
        %v1192 = vmul.f32 %v1190, %v856
        %v1193 = vadd.f32 %v1187, %v1191
        %v1194 = vadd.f32 %v1188, %v1192
        %s1195 = sld [smem:[#allocation2 + $0x56]]
        %v1196 = vstv %s1195
        %v1197 = vmul.f32 %v1196, %v904
        %v1198 = vmul.f32 %v1196, %v907
        %v1199 = vadd.f32 %v1193, %v1197
        %v1200 = vadd.f32 %v1194, %v1198
        %s1201 = sld [smem:[#allocation2 + $0x2c]]
        %v1202 = vstv %s1201
        %v1203 = vmul.f32 %v1202, %v862
        %v1204 = vmul.f32 %v1202, %v865
        %v1205 = vadd.f32 %v1199, %v1203
        %v1206 = vadd.f32 %v1200, %v1204
        %s1207 = sld [smem:[#allocation2 + $0x5d]]
        %v1208 = vstv %s1207
        %v1209 = vmul.f32 %v1208, %v912
        %v1210 = vmul.f32 %v1208, %v915
        %v1211 = vadd.f32 %v1205, %v1209
        %v1212 = vadd.f32 %v1206, %v1210
        %1215 = vrot.lane.b32.xlu0 %v1211, 1
        %v1216 = vpop.permute.xlu0 %1215
        %1217 = vrot.lane.b32.xlu0 %v1212, 1
        %v1218 = vpop.permute.xlu0 %1217
        %vm1219 = vcmask 7168
        %v1220 = vsel %vm1219, %v1216, %v1218
        %v1223 = vsel %vm1219, 0.0, %v1216
        %v1224 = vadd.s32 %v339, 4294967295
        %v1225 = vadd.s32 %v340, 4294967295
        %vm1226 = vcmp.ge.s32.totalorder %v1224, 0
        %vm1227 = vcmp.ge.s32.totalorder %v1225, 0
        %vm1228 = vcmp.lt.s32.totalorder %v1224, 16
        %vm1229 = vcmp.lt.s32.totalorder %v1225, 16
        %vm1230 = vmand %vm1226, %vm1228
        %vm1231 = vmand %vm1227, %vm1229
        %v1232 = vsel %vm1230, %v1223, 0.0
        %v1233 = vsel %vm1231, %v1220, 0.0
        %v1234 = vadd.f32 %v1127, %v1232
        %v1235 = vadd.f32 %v1128, %v1233
        %s1236 = sld [smem:[#allocation2 + $0x3]]
        %v1237 = vstv %s1236
        %v1238 = vmul.f32 %v1237, %v821
        %v1239 = vmul.f32 %v1237, %v818
        %v1240 = vadd.f32 %v1238, 0.0
        %v1241 = vadd.f32 %v1239, 0.0
        %s1242 = sld [smem:[#allocation2 + $0x34]]
        %v1243 = vstv %s1242
        %v1244 = vmul.f32 %v1243, %v875
        %v1245 = vmul.f32 %v1243, %v872
        %v1246 = vadd.f32 %v1240, %v1244
        %v1247 = vadd.f32 %v1241, %v1245
        %s1248 = sld [smem:[#allocation2 + $0xa]]
        %v1249 = vstv %s1248
        %v1250 = vmul.f32 %v1249, %v829
        %v1251 = vmul.f32 %v1249, %v826
        %v1252 = vadd.f32 %v1246, %v1250
        %v1253 = vadd.f32 %v1247, %v1251
        %s1254 = sld [smem:[#allocation2 + $0x3b]]
        %v1255 = vstv %s1254
        %v1256 = vmul.f32 %v1255, %v883
        %v1257 = vmul.f32 %v1255, %v880
        %v1258 = vadd.f32 %v1252, %v1256
        %v1259 = vadd.f32 %v1253, %v1257
        %s1260 = sld [smem:[#allocation2 + $0x11]]
        %v1261 = vstv %s1260
        %v1262 = vmul.f32 %v1261, %v838
        %v1263 = vmul.f32 %v1261, %v835
        %v1264 = vadd.f32 %v1258, %v1262
        %v1265 = vadd.f32 %v1259, %v1263
        %s1266 = sld [smem:[#allocation2 + $0x42]]
        %v1267 = vstv %s1266
        %v1268 = vmul.f32 %v1267, %v891
        %v1269 = vmul.f32 %v1267, %v888
        %v1270 = vadd.f32 %v1264, %v1268
        %v1271 = vadd.f32 %v1265, %v1269
        %s1272 = sld [smem:[#allocation2 + $0x18]]
        %v1273 = vstv %s1272
        %v1274 = vmul.f32 %v1273, %v781
        %v1275 = vmul.f32 %v1273, %v790
        %v1276 = vadd.f32 %v1270, %v1274
        %v1277 = vadd.f32 %v1271, %v1275
        %s1278 = sld [smem:[#allocation2 + $0x49]]
        %v1279 = vstv %s1278
        %v1280 = vmul.f32 %v1279, %v809
        %v1281 = vmul.f32 %v1279, %v810
        %v1282 = vadd.f32 %v1276, %v1280
        %v1283 = vadd.f32 %v1277, %v1281
        %s1284 = sld [smem:[#allocation2 + $0x1f]]
        %v1285 = vstv %s1284
        %v1286 = vmul.f32 %v1285, %v844
        %v1287 = vmul.f32 %v1285, %v847
        %v1288 = vadd.f32 %v1282, %v1286
        %v1289 = vadd.f32 %v1283, %v1287
        %s1290 = sld [smem:[#allocation2 + $0x50]]
        %v1291 = vstv %s1290
        %v1292 = vmul.f32 %v1291, %v896
        %v1293 = vmul.f32 %v1291, %v899
        %v1294 = vadd.f32 %v1288, %v1292
        %v1295 = vadd.f32 %v1289, %v1293
        %s1296 = sld [smem:[#allocation2 + $0x26]]
        %v1297 = vstv %s1296
        %v1298 = vmul.f32 %v1297, %v853
        %v1299 = vmul.f32 %v1297, %v856
        %v1300 = vadd.f32 %v1294, %v1298
        %v1301 = vadd.f32 %v1295, %v1299
        %s1302 = sld [smem:[#allocation2 + $0x57]]
        %v1303 = vstv %s1302
        %v1304 = vmul.f32 %v1303, %v904
        %v1305 = vmul.f32 %v1303, %v907
        %v1306 = vadd.f32 %v1300, %v1304
        %v1307 = vadd.f32 %v1301, %v1305
        %s1308 = sld [smem:[#allocation2 + $0x2d]]
        %v1309 = vstv %s1308
        %v1310 = vmul.f32 %v1309, %v862
        %v1311 = vmul.f32 %v1309, %v865
        %v1312 = vadd.f32 %v1306, %v1310
        %v1313 = vadd.f32 %v1307, %v1311
        %s1314 = sld [smem:[#allocation2 + $0x5e]]
        %v1315 = vstv %s1314
        %v1316 = vmul.f32 %v1315, %v912
        %v1317 = vmul.f32 %v1315, %v915
        %v1318 = vadd.f32 %v1312, %v1316
        %v1319 = vadd.f32 %v1313, %v1317
        %v1320 = vadd.f32 %v1234, %v1318
        %v1321 = vadd.f32 %v1235, %v1319
        %s1322 = sld [smem:[#allocation2 + $0x4]]
        %v1323 = vstv %s1322
        %v1324 = vmul.f32 %v1323, %v821
        %v1325 = vmul.f32 %v1323, %v818
        %v1326 = vadd.f32 %v1324, 0.0
        %v1327 = vadd.f32 %v1325, 0.0
        %s1328 = sld [smem:[#allocation2 + $0x35]]
        %v1329 = vstv %s1328
        %v1330 = vmul.f32 %v1329, %v875
        %v1331 = vmul.f32 %v1329, %v872
        %v1332 = vadd.f32 %v1326, %v1330
        %v1333 = vadd.f32 %v1327, %v1331
        %s1334 = sld [smem:[#allocation2 + $0xb]]
        %v1335 = vstv %s1334
        %v1336 = vmul.f32 %v1335, %v829
        %v1337 = vmul.f32 %v1335, %v826
        %v1338 = vadd.f32 %v1332, %v1336
        %v1339 = vadd.f32 %v1333, %v1337
        %s1340 = sld [smem:[#allocation2 + $0x3c]]
        %v1341 = vstv %s1340
        %v1342 = vmul.f32 %v1341, %v883
        %v1343 = vmul.f32 %v1341, %v880
        %v1344 = vadd.f32 %v1338, %v1342
        %v1345 = vadd.f32 %v1339, %v1343
        %s1346 = sld [smem:[#allocation2 + $0x12]]
        %v1347 = vstv %s1346
        %v1348 = vmul.f32 %v1347, %v838
        %v1349 = vmul.f32 %v1347, %v835
        %v1350 = vadd.f32 %v1344, %v1348
        %v1351 = vadd.f32 %v1345, %v1349
        %s1352 = sld [smem:[#allocation2 + $0x43]]
        %v1353 = vstv %s1352
        %v1354 = vmul.f32 %v1353, %v891
        %v1355 = vmul.f32 %v1353, %v888
        %v1356 = vadd.f32 %v1350, %v1354
        %v1357 = vadd.f32 %v1351, %v1355
        %s1358 = sld [smem:[#allocation2 + $0x19]]
        %v1359 = vstv %s1358
        %v1360 = vmul.f32 %v1359, %v781
        %v1361 = vmul.f32 %v1359, %v790
        %v1362 = vadd.f32 %v1356, %v1360
        %v1363 = vadd.f32 %v1357, %v1361
        %s1364 = sld [smem:[#allocation2 + $0x4a]]
        %v1365 = vstv %s1364
        %v1366 = vmul.f32 %v1365, %v809
        %v1367 = vmul.f32 %v1365, %v810
        %v1368 = vadd.f32 %v1362, %v1366
        %v1369 = vadd.f32 %v1363, %v1367
        %s1370 = sld [smem:[#allocation2 + $0x20]]
        %v1371 = vstv %s1370
        %v1372 = vmul.f32 %v1371, %v844
        %v1373 = vmul.f32 %v1371, %v847
        %v1374 = vadd.f32 %v1368, %v1372
        %v1375 = vadd.f32 %v1369, %v1373
        %s1376 = sld [smem:[#allocation2 + $0x51]]
        %v1377 = vstv %s1376
        %v1378 = vmul.f32 %v1377, %v896
        %v1379 = vmul.f32 %v1377, %v899
        %v1380 = vadd.f32 %v1374, %v1378
        %v1381 = vadd.f32 %v1375, %v1379
        %s1382 = sld [smem:[#allocation2 + $0x27]]
        %v1383 = vstv %s1382
        %v1384 = vmul.f32 %v1383, %v853
        %v1385 = vmul.f32 %v1383, %v856
        %v1386 = vadd.f32 %v1380, %v1384
        %v1387 = vadd.f32 %v1381, %v1385
        %s1388 = sld [smem:[#allocation2 + $0x58]]
        %v1389 = vstv %s1388
        %v1390 = vmul.f32 %v1389, %v904
        %v1391 = vmul.f32 %v1389, %v907
        %v1392 = vadd.f32 %v1386, %v1390
        %v1393 = vadd.f32 %v1387, %v1391
        %s1394 = sld [smem:[#allocation2 + $0x2e]]
        %v1395 = vstv %s1394
        %v1396 = vmul.f32 %v1395, %v862
        %v1397 = vmul.f32 %v1395, %v865
        %v1398 = vadd.f32 %v1392, %v1396
        %v1399 = vadd.f32 %v1393, %v1397
        %s1400 = sld [smem:[#allocation2 + $0x5f]]
        %v1401 = vstv %s1400
        %v1402 = vmul.f32 %v1401, %v912
        %v1403 = vmul.f32 %v1401, %v915
        %v1404 = vadd.f32 %v1398, %v1402
        %v1405 = vadd.f32 %v1399, %v1403
        %1408 = vrot.lane.b32.xlu0 %v1404, 127
        %v1409 = vpop.permute.xlu0 %1408
        %1410 = vrot.lane.b32.xlu0 %v1405, 127
        %v1411 = vpop.permute.xlu0 %1410
        %vm1412 = vcmask 1039360
        %v1413 = vsel %vm1412, %v1409, %v1411
        %v1416 = vsel %vm1412, %v1411, 0.0
        %v1417 = vadd.s32 %v339, 1
        %v1418 = vadd.s32 %v340, 1
        %vm1419 = vcmp.ge.s32.totalorder %v1417, 0
        %vm1420 = vcmp.ge.s32.totalorder %v1418, 0
        %vm1421 = vcmp.lt.s32.totalorder %v1417, 16
        %vm1422 = vcmp.lt.s32.totalorder %v1418, 16
        %vm1423 = vmand %vm1419, %vm1421
        %vm1424 = vmand %vm1420, %vm1422
        %v1425 = vsel %vm1423, %v1413, 0.0
        %v1426 = vsel %vm1424, %v1416, 0.0
        %v1427 = vadd.f32 %v1320, %v1425
        %v1428 = vadd.f32 %v1321, %v1426
        %s1429 = sld [smem:[#allocation2 + $0x5]]
        %v1430 = vstv %s1429
        %v1431 = vmul.f32 %v1430, %v821
        %v1432 = vmul.f32 %v1430, %v818
        %v1433 = vadd.f32 %v1431, 0.0
        %v1434 = vadd.f32 %v1432, 0.0
        %s1435 = sld [smem:[#allocation2 + $0x36]]
        %v1436 = vstv %s1435
        %v1437 = vmul.f32 %v1436, %v875
        %v1438 = vmul.f32 %v1436, %v872
        %v1439 = vadd.f32 %v1433, %v1437
        %v1440 = vadd.f32 %v1434, %v1438
        %s1441 = sld [smem:[#allocation2 + $0xc]]
        %v1442 = vstv %s1441
        %v1443 = vmul.f32 %v1442, %v829
        %v1444 = vmul.f32 %v1442, %v826
        %v1445 = vadd.f32 %v1439, %v1443
        %v1446 = vadd.f32 %v1440, %v1444
        %s1447 = sld [smem:[#allocation2 + $0x3d]]
        %v1448 = vstv %s1447
        %v1449 = vmul.f32 %v1448, %v883
        %v1450 = vmul.f32 %v1448, %v880
        %v1451 = vadd.f32 %v1445, %v1449
        %v1452 = vadd.f32 %v1446, %v1450
        %s1453 = sld [smem:[#allocation2 + $0x13]]
        %v1454 = vstv %s1453
        %v1455 = vmul.f32 %v1454, %v838
        %v1456 = vmul.f32 %v1454, %v835
        %v1457 = vadd.f32 %v1451, %v1455
        %v1458 = vadd.f32 %v1452, %v1456
        %s1459 = sld [smem:[#allocation2 + $0x44]]
        %v1460 = vstv %s1459
        %v1461 = vmul.f32 %v1460, %v891
        %v1462 = vmul.f32 %v1460, %v888
        %v1463 = vadd.f32 %v1457, %v1461
        %v1464 = vadd.f32 %v1458, %v1462
        %s1465 = sld [smem:[#allocation2 + $0x1a]]
        %v1466 = vstv %s1465
        %v1467 = vmul.f32 %v1466, %v781
        %v1468 = vmul.f32 %v1466, %v790
        %v1469 = vadd.f32 %v1463, %v1467
        %v1470 = vadd.f32 %v1464, %v1468
        %s1471 = sld [smem:[#allocation2 + $0x4b]]
        %v1472 = vstv %s1471
        %v1473 = vmul.f32 %v1472, %v809
        %v1474 = vmul.f32 %v1472, %v810
        %v1475 = vadd.f32 %v1469, %v1473
        %v1476 = vadd.f32 %v1470, %v1474
        %s1477 = sld [smem:[#allocation2 + $0x21]]
        %v1478 = vstv %s1477
        %v1479 = vmul.f32 %v1478, %v844
        %v1480 = vmul.f32 %v1478, %v847
        %v1481 = vadd.f32 %v1475, %v1479
        %v1482 = vadd.f32 %v1476, %v1480
        %s1483 = sld [smem:[#allocation2 + $0x52]]
        %v1484 = vstv %s1483
        %v1485 = vmul.f32 %v1484, %v896
        %v1486 = vmul.f32 %v1484, %v899
        %v1487 = vadd.f32 %v1481, %v1485
        %v1488 = vadd.f32 %v1482, %v1486
        %s1489 = sld [smem:[#allocation2 + $0x28]]
        %v1490 = vstv %s1489
        %v1491 = vmul.f32 %v1490, %v853
        %v1492 = vmul.f32 %v1490, %v856
        %v1493 = vadd.f32 %v1487, %v1491
        %v1494 = vadd.f32 %v1488, %v1492
        %s1495 = sld [smem:[#allocation2 + $0x59]]
        %v1496 = vstv %s1495
        %v1497 = vmul.f32 %v1496, %v904
        %v1498 = vmul.f32 %v1496, %v907
        %v1499 = vadd.f32 %v1493, %v1497
        %v1500 = vadd.f32 %v1494, %v1498
        %s1501 = sld [smem:[#allocation2 + $0x2f]]
        %v1502 = vstv %s1501
        %v1503 = vmul.f32 %v1502, %v862
        %v1504 = vmul.f32 %v1502, %v865
        %v1505 = vadd.f32 %v1499, %v1503
        %v1506 = vadd.f32 %v1500, %v1504
        %s1507 = sld [smem:[#allocation2 + $0x60]]
        %v1508 = vstv %s1507
        %v1509 = vmul.f32 %v1508, %v912
        %v1510 = vmul.f32 %v1508, %v915
        %v1511 = vadd.f32 %v1505, %v1509
        %v1512 = vadd.f32 %v1506, %v1510
        %1515 = vrot.lane.b32.xlu0 %v1511, 126
        %v1516 = vpop.permute.xlu0 %1515
        %1517 = vrot.lane.b32.xlu0 %v1512, 126
        %v1518 = vpop.permute.xlu0 %1517
        %vm1519 = vcmask 1031168
        %v1520 = vsel %vm1519, %v1516, %v1518
        %v1523 = vsel %vm1519, %v1518, 0.0
        %v1524 = vadd.s32 %v339, 2
        %v1525 = vadd.s32 %v340, 2
        %vm1526 = vcmp.ge.s32.totalorder %v1524, 0
        %vm1527 = vcmp.ge.s32.totalorder %v1525, 0
        %vm1528 = vcmp.lt.s32.totalorder %v1524, 16
        %vm1529 = vcmp.lt.s32.totalorder %v1525, 16
        %vm1530 = vmand %vm1526, %vm1528
        %vm1531 = vmand %vm1527, %vm1529
        %v1532 = vsel %vm1530, %v1520, 0.0
        %v1533 = vsel %vm1531, %v1523, 0.0
        %v1534 = vadd.f32 %v1427, %v1532
        %v1535 = vadd.f32 %v1428, %v1533
        %s1536 = sld [smem:[#allocation2 + $0x6]]
        %v1537 = vstv %s1536
        %v1538 = vmul.f32 %v1537, %v821
        %v1539 = vmul.f32 %v1537, %v818
        %v1540 = vadd.f32 %v1538, 0.0
        %v1541 = vadd.f32 %v1539, 0.0
        %s1542 = sld [smem:[#allocation2 + $0x37]]
        %v1543 = vstv %s1542
        %v1544 = vmul.f32 %v1543, %v875
        %v1545 = vmul.f32 %v1543, %v872
        %v1546 = vadd.f32 %v1540, %v1544
        %v1547 = vadd.f32 %v1541, %v1545
        %s1548 = sld [smem:[#allocation2 + $0xd]]
        %v1549 = vstv %s1548
        %v1550 = vmul.f32 %v1549, %v829
        %v1551 = vmul.f32 %v1549, %v826
        %v1552 = vadd.f32 %v1546, %v1550
        %v1553 = vadd.f32 %v1547, %v1551
        %s1554 = sld [smem:[#allocation2 + $0x3e]]
        %v1555 = vstv %s1554
        %v1556 = vmul.f32 %v1555, %v883
        %v1557 = vmul.f32 %v1555, %v880
        %v1558 = vadd.f32 %v1552, %v1556
        %v1559 = vadd.f32 %v1553, %v1557
        %s1560 = sld [smem:[#allocation2 + $0x14]]
        %v1561 = vstv %s1560
        %v1562 = vmul.f32 %v1561, %v838
        %v1563 = vmul.f32 %v1561, %v835
        %v1564 = vadd.f32 %v1558, %v1562
        %v1565 = vadd.f32 %v1559, %v1563
        %s1566 = sld [smem:[#allocation2 + $0x45]]
        %v1567 = vstv %s1566
        %v1568 = vmul.f32 %v1567, %v891
        %v1569 = vmul.f32 %v1567, %v888
        %v1570 = vadd.f32 %v1564, %v1568
        %v1571 = vadd.f32 %v1565, %v1569
        %s1572 = sld [smem:[#allocation2 + $0x1b]]
        %v1573 = vstv %s1572
        %v1574 = vmul.f32 %v1573, %v781
        %v1575 = vmul.f32 %v1573, %v790
        %v1576 = vadd.f32 %v1570, %v1574
        %v1577 = vadd.f32 %v1571, %v1575
        %s1578 = sld [smem:[#allocation2 + $0x4c]]
        %v1579 = vstv %s1578
        %v1580 = vmul.f32 %v1579, %v809
        %v1581 = vmul.f32 %v1579, %v810
        %v1582 = vadd.f32 %v1576, %v1580
        %v1583 = vadd.f32 %v1577, %v1581
        %s1584 = sld [smem:[#allocation2 + $0x22]]
        %v1585 = vstv %s1584
        %v1586 = vmul.f32 %v1585, %v844
        %v1587 = vmul.f32 %v1585, %v847
        %v1588 = vadd.f32 %v1582, %v1586
        %v1589 = vadd.f32 %v1583, %v1587
        %s1590 = sld [smem:[#allocation2 + $0x53]]
        %v1591 = vstv %s1590
        %v1592 = vmul.f32 %v1591, %v896
        %v1593 = vmul.f32 %v1591, %v899
        %v1594 = vadd.f32 %v1588, %v1592
        %v1595 = vadd.f32 %v1589, %v1593
        %s1596 = sld [smem:[#allocation2 + $0x29]]
        %v1597 = vstv %s1596
        %v1598 = vmul.f32 %v1597, %v853
        %v1599 = vmul.f32 %v1597, %v856
        %v1600 = vadd.f32 %v1594, %v1598
        %v1601 = vadd.f32 %v1595, %v1599
        %s1602 = sld [smem:[#allocation2 + $0x5a]]
        %v1603 = vstv %s1602
        %v1604 = vmul.f32 %v1603, %v904
        %v1605 = vmul.f32 %v1603, %v907
        %v1606 = vadd.f32 %v1600, %v1604
        %v1607 = vadd.f32 %v1601, %v1605
        %s1608 = sld [smem:[#allocation2 + $0x30]]
        %v1609 = vstv %s1608
        %v1610 = vmul.f32 %v1609, %v862
        %v1611 = vmul.f32 %v1609, %v865
        %v1612 = vadd.f32 %v1606, %v1610
        %v1613 = vadd.f32 %v1607, %v1611
        %s1614 = sld [smem:[#allocation2 + $0x61]]
        %v1615 = vstv %s1614
        %v1616 = vmul.f32 %v1615, %v912
        %v1617 = vmul.f32 %v1615, %v915
        %v1618 = vadd.f32 %v1612, %v1616
        %v1619 = vadd.f32 %v1613, %v1617
        %1622 = vrot.lane.b32.xlu0 %v1618, 125
        %v1623 = vpop.permute.xlu0 %1622
        %1624 = vrot.lane.b32.xlu0 %v1619, 125
        %v1625 = vpop.permute.xlu0 %1624
        %vm1626 = vcmask 1022976
        %v1627 = vsel %vm1626, %v1623, %v1625
        %v1630 = vsel %vm1626, %v1625, 0.0
        %v1631 = vadd.s32 %v339, 3
        %v1632 = vadd.s32 %v340, 3
        %vm1633 = vcmp.ge.s32.totalorder %v1631, 0
        %vm1634 = vcmp.ge.s32.totalorder %v1632, 0
        %vm1635 = vcmp.lt.s32.totalorder %v1631, 16
        %vm1636 = vcmp.lt.s32.totalorder %v1632, 16
        %vm1637 = vmand %vm1633, %vm1635
        %vm1638 = vmand %vm1634, %vm1636
        %v1639 = vsel %vm1637, %v1627, 0.0
        %v1640 = vsel %vm1638, %v1630, 0.0
        %v1641 = vadd.f32 %v1534, %v1639
        %v1642 = vadd.f32 %v1535, %v1640
        %s1643 = sld [smem:[#allocation5]]
        %v1644 = vstv %s1643
        %v1645 = vmul.f32 %v1641, %v1644
        %v1646 = vmul.f32 %v1642, %v1644
        %s1647 = sld [smem:[#allocation5 + $0x1]]
        %v1648 = vstv %s1647
        %v1649 = vadd.f32 %v1645, %v1648
        %v1650 = vadd.f32 %v1646, %v1648
        %v1651 = vxor.u32 %v1649, 2147483648
        %v1652 = vxor.u32 %v1650, 2147483648
        %v1653 = vmul.f32 %v1651, 1.442695
        %v1654 = vpow.pop %v1653
        %v1655 = vmul.f32 %v1652, 1.442695
        %v1656 = vpow.pop %v1655
        %v1657 = vadd.f32 %v1654, 1.0
        %v1658 = vadd.f32 %v1656, 1.0
        %v1659 = vrcp.pop %v1657
        %v1660 = vmul.f32 1.0, %v1659
        %v1661 = vrcp.pop %v1658
        %v1662 = vmul.f32 1.0, %v1661
        %v1663 = vlaneseq
        %v1664 = vshrl.u32 %v1663, 7
        %v1665 = vsub.s32 0, %v1664
        %v1666 = vrot.slane %v1660, %v1665
        %v1667 = vlaneseq
        %v1668 = vshrl.u32 %v1667, 7
        %v1669 = vsub.s32 0, %v1668
        %v1670 = vrot.slane %v1662, %v1669
        %v1671 = vmul.f32 %v765, %v1666
        %v1672 = vmul.f32 %v766, %v1670
        %v1673 = vmul.f32 %v767, %v1666
        %v1674 = vmul.f32 %v768, %v1670
        %v1675 = vmul.f32 %v769, %v1666
        %v1676 = vmul.f32 %v770, %v1670
        %v1677 = vmul.f32 %v771, %v1666
        %v1678 = vmul.f32 %v772, %v1670
        %v1679 = vpack.c.bf16 %v1673, %v1671
        %v1680 = vpack.c.bf16 %v1674, %v1672
        %v1681 = vpack.c.bf16 %v1677, %v1675
        %v1682 = vpack.c.bf16 %v1678, %v1676
        %v1687 = vunpack.c.l.b16 %v1679
        %v1688 = vunpack.c.l.b16 %v1680
        %v1689 = vunpack.c.h.b16 %v1679
        %v1690 = vunpack.c.h.b16 %v1680
        %v1691 = vunpack.c.l.b16 %v1681
        %v1692 = vunpack.c.l.b16 %v1682
        %v1693 = vunpack.c.h.b16 %v1681
        %v1694 = vunpack.c.h.b16 %v1682
        %v1695 = vpack.c.b16 %v1688, %v1687
        %v1696 = vpack.c.b16 %v1690, %v1689
        %v1697 = vpack.c.b16 %v1692, %v1691
        %v1698 = vpack.c.b16 %v1694, %v1693
        %1703 = vst [vmem:[%s298] sm:$0xff] %v1695
        %1704 = vst [vmem:[%s298 + $0x8] sm:$0xff] %v1696
        %1705 = vst [vmem:[%s298 + $0x10] sm:$0xff] %v1697
        %1706 = vst [vmem:[%s298 + $0x18] sm:$0xff] %v1698
        %s1707 = sand.u32 %s183, 1
        %s1708 = scalar_lea.sflag [#allocation3], %s1707
        %s1709 = sand.u32 %s183, 1
        %s1710 = smul.addr %s1709, 32
        %s1711 = scalar_lea.vmem [#allocation7], %s1710
        // Predicated region
        $region57: #{tpu_custom_call.1} parent=47 // pred_check
          %p1712 = pneg %p193
        $region58: #{tpu_custom_call.1} parent=47 // pred_check_branch
          %1714 = sbr.rel (%p1712) target = $region60
        $region59: #{tpu_custom_call.1} parent=47 // pred_region
          %s1716 = ssub.s32 512, 512
          %1717 = vsyncadd %s1708, %s1716
          %s1718 = smul.addr %s23, 8
          %s1719 = smul.addr %s1718, 64
          %s1720 = scalar_lea.hbm %s7, %s1719
          %s1721 = sshll.u32 %s1711, 4
          %s1722 = int_to_ptr.vmem [resolvable:$true] %s1721
          %1727 = dma.vmem_to_hbm [thread:$0]  %s1722, 512, %s1720, %s1708, 128, 128, 8
        $region60: #{tpu_custom_call.1} parent=47 // pred_fallthru
          _
      $region48: #{tpu_custom_call.1} parent=5 // pred_fallthru
        _
      %p1728 = scmp.le.s32.totalorder 2, %s18
      // Predicated region
      $region61: #{tpu_custom_call.1} parent=5 // pred_check
        %p1729 = pneg %p1728
      $region62: #{tpu_custom_call.1} parent=5 // pred_check_branch
        %1731 = sbr.rel (%p1729) target = $region64
      $region63: #{tpu_custom_call.1} parent=5 // pred_region
        %s1732 = ssub.s32 %s18, 2
        // Predicated region
        $region65: #{tpu_custom_call.1} parent=63 // pred_check
          %p1733 = pneg %p199
        $region66: #{tpu_custom_call.1} parent=63 // pred_check_branch
          %1735 = sbr.rel (%p1733) target = $region68
        $region67: #{tpu_custom_call.1} parent=63 // pred_region
          %s1736 = sand.u32 %s184, 1
          %s1737 = scalar_lea.sflag [#allocation3], %s1736
          %s1738 = sand.u32 %s184, 1
          %s1739 = smul.addr %s1738, 32
          %s1740 = scalar_lea.vmem [#allocation7], %s1739
          %1741 = dma.done %s1737, 512
        $region68: #{tpu_custom_call.1} parent=63 // pred_fallthru
          _
      $region64: #{tpu_custom_call.1} parent=5 // pred_fallthru
        _
    $region6: #{tpu_custom_call.1} parent=1 // loop_footer
      %s22 = sadd.s32 1, %s18
    $region7: #{tpu_custom_call.1} parent=1 // loop_footer_branch
      %17 = sbr.rel target = $region3
    $region8: #{tpu_custom_call.1} parent=1 // loop_exit
      _
    %1742 = vsyncpa [#allocation3], 1
    %s1743 = scalar_lea.sflag [#allocation3], 1
    %1744 = vsyncpa %s1743, 1
    %1745 = vsyncpa [#allocation4], 1
    %s1746 = scalar_lea.sflag [#allocation4], 1
    %1747 = vsyncpa %s1746, 1
    %1748 = vsyncpa [#allocation6], 1

// kernel: tpu_custom_call.1
$region0: #{tpu_custom_call.1}
  #allocation0 [shape = 'u32[]', space=smem, size = 0x4, offset = 0x4, fixed_abs, tag = 'smem constant byte address 0x4 - core index']
  #allocation1 [shape = 'u32[144,128]{1,0:T(1,128)}', space=vmem, size = 0x12000, scoped, tag = 'internal scratch']
  %s0 = inlined_call_operand.vmem [shape: bf16[2,32,256], index: 0, kind: input, shape index: {}]
  %s1 = inlined_call_operand.vmem [shape: f32[2,32], index: 1, kind: input, shape index: {}]
  %s2 = inlined_call_operand.vmem [shape: f32[2,1], index: 2, kind: input, shape index: {}]
  %s3 = inlined_call_operand.vmem [shape: f32[32,2], index: 3, kind: input, shape index: {}]
  %s4 = inlined_call_operand.vmem [shape: f32[32,1], index: 4, kind: input, shape index: {}]
  %s5 = inlined_call_operand.vmem [shape: f32[98], index: 5, kind: input, shape index: {}]
  %s6 = inlined_call_operand.vmem [shape: f32[2], index: 6, kind: input, shape index: {}]
  %s7 = inlined_call_operand.hbm [shape: bf16[2,32,256], index: 7, kind: output, shape index: {}]
  %s8 = sld [smem:[#allocation0]]
  $region69: #{tpu_custom_call.1} parent=0
    _
  %s10 = ssub.s32 1, %s8
  %s11 = scalar_select 0, %s10, %s8
  $region1: #{tpu_custom_call.1} parent=0
    #allocation2 [shape = 'u8[512]{0}', space=smem, size = 0x200, scoped, tag = 'input window, operand 5, single buffered']
    #allocation3 [shape = 's32[2]{0}', space=sflag, size = 0x8, scoped, tag = 'scoped memory for tpu_custom_call.1']
    #allocation4 [shape = 's32[2]{0}', space=sflag, size = 0x8, scoped, tag = 'scoped memory for tpu_custom_call.1']
    #allocation5 [shape = 'u8[512]{0}', space=smem, size = 0x200, scoped, tag = 'input window, operand 6, single buffered']
    #allocation6 [shape = 's32[1]{0}', space=sflag, size = 0x4, scoped, tag = 'scoped memory for tpu_custom_call.1']
    #allocation7 [shape = 'u8[32768]{0}', space=vmem, size = 0x8000, scoped, tag = 'output window, operand 0']
    %12 = vsyncpa [#allocation4], 0
    %13 = vsyncpa [#allocation6], 0
    %14 = vsyncpa [#allocation3], 0
    %s15 = scalar_lea.sflag [#allocation3], 1
    %16 = vsyncpa %s15, 0
    loop: start=0, step=1, limit=4
    $region2: #{tpu_custom_call.1} parent=1 // loop_pre_header
      _
    $region3: #{tpu_custom_call.1} parent=1 // loop_header
      %s18 = sphi 0, %s22
      %p19 = scmp.ge.s32.totalorder %s18, 4
      %s28 = sphi 0, %s30
      %s31 = sphi 0, %s28
      %s32 = sphi 0, %s31
      %s48 = sphi 0, %s32
      %s52 = sphi 0, %s52
      %s54 = sphi 0, %s52
      %s55 = sphi 0, %s54
      %s69 = sphi 0, %s55
      %s73 = sphi 0, %s73
      %s75 = sphi 0, %s73
      %s76 = sphi 0, %s75
      %s90 = sphi 0, %s76
      %s94 = sphi 0, %s94
      %s96 = sphi 0, %s94
      %s97 = sphi 0, %s96
      %s111 = sphi 0, %s97
      %s115 = sphi 0, %s115
      %s117 = sphi 0, %s115
      %s118 = sphi 0, %s117
      %s132 = sphi 0, %s118
      %s136 = sphi 0, %s136
      %s138 = sphi 0, %s136
      %s139 = sphi 0, %s138
      %s153 = sphi 0, %s139
      %s157 = sphi 0, %s157
      %s159 = sphi 0, %s157
      %s160 = sphi 0, %s159
      %s174 = sphi 0, %s160
      %s180 = sphi 0, %s182
      %s183 = sphi 0, %s180
      %s184 = sphi 0, %s183
      %s200 = sphi 0, %s184
    $region4: #{tpu_custom_call.1} parent=1 // loop_header_branch
      %21 = sbr.rel (%p19) target = $region8
    $region5: #{tpu_custom_call.1} parent=1 // loop_body
      %s23 = ssub.s32 %s18, 1
      %s24 = ssub.s32 %s18, 2
      %s25 = sadd.s32 %s18, 1
      %s26 = ssub.s32 %s18, %s25
      %p27 = scmp.eq.s32.totalorder %s26, 0
      %s29 = sadd.s32 %s28, 1
      %s30 = scalar_select %p27, %s28, %s29
      %p33 = pneg %p27
      %p34 = scmp.eq.s32.totalorder %s18, 1
      %p35 = por %p33, %p34
      %p36 = scmp.ne.s32.totalorder %s28, %s31
      %p37 = scmp.eq.s32.totalorder %s18, 0
      %p38 = por %p36, %p37
      %p39 = scmp.ne.s32.totalorder %s28, %s31
      %p40 = scmp.eq.s32.totalorder %s23, 1
      %p41 = por %p39, %p40
      %p42 = scmp.ne.s32.totalorder %s31, %s32
      %p43 = scmp.eq.s32.totalorder %s23, 0
      %p44 = por %p42, %p43
      %p45 = scmp.ne.s32.totalorder %s31, %s32
      %p46 = scmp.eq.s32.totalorder %s24, 1
      %p47 = por %p45, %p46
      %p49 = scmp.ne.s32.totalorder %s32, %s48
      %p50 = scmp.eq.s32.totalorder %s24, 0
      %p51 = por %p49, %p50
      %s53 = sadd.s32 %s52, 1
      %p56 = scmp.eq.s32.totalorder %s18, 1
      %p57 = scmp.ne.s32.totalorder %s52, %s54
      %p58 = scmp.eq.s32.totalorder %s18, 0
      %p59 = por %p57, %p58
      %p60 = scmp.ne.s32.totalorder %s52, %s54
      %p61 = scmp.eq.s32.totalorder %s23, 1
      %p62 = por %p60, %p61
      %p63 = scmp.ne.s32.totalorder %s54, %s55
      %p64 = scmp.eq.s32.totalorder %s23, 0
      %p65 = por %p63, %p64
      %p66 = scmp.ne.s32.totalorder %s54, %s55
      %p67 = scmp.eq.s32.totalorder %s24, 1
      %p68 = por %p66, %p67
      %p70 = scmp.ne.s32.totalorder %s55, %s69
      %p71 = scmp.eq.s32.totalorder %s24, 0
      %p72 = por %p70, %p71
      %s74 = sadd.s32 %s73, 1
      %p77 = scmp.eq.s32.totalorder %s18, 1
      %p78 = scmp.ne.s32.totalorder %s73, %s75
      %p79 = scmp.eq.s32.totalorder %s18, 0
      %p80 = por %p78, %p79
      %p81 = scmp.ne.s32.totalorder %s73, %s75
      %p82 = scmp.eq.s32.totalorder %s23, 1
      %p83 = por %p81, %p82
      %p84 = scmp.ne.s32.totalorder %s75, %s76
      %p85 = scmp.eq.s32.totalorder %s23, 0
      %p86 = por %p84, %p85
      %p87 = scmp.ne.s32.totalorder %s75, %s76
      %p88 = scmp.eq.s32.totalorder %s24, 1
      %p89 = por %p87, %p88
      %p91 = scmp.ne.s32.totalorder %s76, %s90
      %p92 = scmp.eq.s32.totalorder %s24, 0
      %p93 = por %p91, %p92
      %s95 = sadd.s32 %s94, 1
      %p98 = scmp.eq.s32.totalorder %s18, 1
      %p99 = scmp.ne.s32.totalorder %s94, %s96
      %p100 = scmp.eq.s32.totalorder %s18, 0
      %p101 = por %p99, %p100
      %p102 = scmp.ne.s32.totalorder %s94, %s96
      %p103 = scmp.eq.s32.totalorder %s23, 1
      %p104 = por %p102, %p103
      %p105 = scmp.ne.s32.totalorder %s96, %s97
      %p106 = scmp.eq.s32.totalorder %s23, 0
      %p107 = por %p105, %p106
      %p108 = scmp.ne.s32.totalorder %s96, %s97
      %p109 = scmp.eq.s32.totalorder %s24, 1
      %p110 = por %p108, %p109
      %p112 = scmp.ne.s32.totalorder %s97, %s111
      %p113 = scmp.eq.s32.totalorder %s24, 0
      %p114 = por %p112, %p113
      %s116 = sadd.s32 %s115, 1
      %p119 = scmp.eq.s32.totalorder %s18, 1
      %p120 = scmp.ne.s32.totalorder %s115, %s117
      %p121 = scmp.eq.s32.totalorder %s18, 0
      %p122 = por %p120, %p121
      %p123 = scmp.ne.s32.totalorder %s115, %s117
      %p124 = scmp.eq.s32.totalorder %s23, 1
      %p125 = por %p123, %p124
      %p126 = scmp.ne.s32.totalorder %s117, %s118
      %p127 = scmp.eq.s32.totalorder %s23, 0
      %p128 = por %p126, %p127
      %p129 = scmp.ne.s32.totalorder %s117, %s118
      %p130 = scmp.eq.s32.totalorder %s24, 1
      %p131 = por %p129, %p130
      %p133 = scmp.ne.s32.totalorder %s118, %s132
      %p134 = scmp.eq.s32.totalorder %s24, 0
      %p135 = por %p133, %p134
      %s137 = sadd.s32 %s136, 1
      %p140 = scmp.eq.s32.totalorder %s18, 1
      %p141 = scmp.ne.s32.totalorder %s136, %s138
      %p142 = scmp.eq.s32.totalorder %s18, 0
      %p143 = por %p141, %p142
      %p144 = scmp.ne.s32.totalorder %s136, %s138
      %p145 = scmp.eq.s32.totalorder %s23, 1
      %p146 = por %p144, %p145
      %p147 = scmp.ne.s32.totalorder %s138, %s139
      %p148 = scmp.eq.s32.totalorder %s23, 0
      %p149 = por %p147, %p148
      %p150 = scmp.ne.s32.totalorder %s138, %s139
      %p151 = scmp.eq.s32.totalorder %s24, 1
      %p152 = por %p150, %p151
      %p154 = scmp.ne.s32.totalorder %s139, %s153
      %p155 = scmp.eq.s32.totalorder %s24, 0
      %p156 = por %p154, %p155
      %s158 = sadd.s32 %s157, 1
      %p161 = scmp.eq.s32.totalorder %s18, 1
      %p162 = scmp.ne.s32.totalorder %s157, %s159
      %p163 = scmp.eq.s32.totalorder %s18, 0
      %p164 = por %p162, %p163
      %p165 = scmp.ne.s32.totalorder %s157, %s159
      %p166 = scmp.eq.s32.totalorder %s23, 1
      %p167 = por %p165, %p166
      %p168 = scmp.ne.s32.totalorder %s159, %s160
      %p169 = scmp.eq.s32.totalorder %s23, 0
      %p170 = por %p168, %p169
      %p171 = scmp.ne.s32.totalorder %s159, %s160
      %p172 = scmp.eq.s32.totalorder %s24, 1
      %p173 = por %p171, %p172
      %p175 = scmp.ne.s32.totalorder %s160, %s174
      %p176 = scmp.eq.s32.totalorder %s24, 0
      %p177 = por %p175, %p176
      %s178 = ssub.s32 %s18, %s25
      %p179 = scmp.eq.s32.totalorder %s178, 0
      %s181 = sadd.s32 %s180, 1
      %s182 = scalar_select %p179, %s180, %s181
      %p185 = pneg %p179
      %p186 = scmp.eq.s32.totalorder %s18, 1
      %p187 = por %p185, %p186
      %p188 = scmp.ne.s32.totalorder %s180, %s183
      %p189 = scmp.eq.s32.totalorder %s18, 0
      %p190 = por %p188, %p189
      %p191 = scmp.ne.s32.totalorder %s180, %s183
      %p192 = scmp.eq.s32.totalorder %s23, 1
      %p193 = por %p191, %p192
      %p194 = scmp.ne.s32.totalorder %s183, %s184
      %p195 = scmp.eq.s32.totalorder %s23, 0
      %p196 = por %p194, %p195
      %p197 = scmp.ne.s32.totalorder %s183, %s184
      %p198 = scmp.eq.s32.totalorder %s24, 1
      %p199 = por %p197, %p198
      %p201 = scmp.ne.s32.totalorder %s184, %s200
      %p202 = scmp.eq.s32.totalorder %s24, 0
      %p203 = por %p201, %p202
      %p204 = scmp.le.s32.totalorder 1, %s18
      %p205 = scmp.lt.s32.totalorder %s18, 3
      %p206 = pnand %p204, %p205
      %p207 = pneg %p206
      // Predicated region
      $region9: #{tpu_custom_call.1} parent=5 // pred_check
        _
      $region10: #{tpu_custom_call.1} parent=5 // pred_check_branch
        %209 = sbr.rel (%p206) target = $region12
      $region11: #{tpu_custom_call.1} parent=5 // pred_region
        %s210 = ssub.s32 %s18, 1
        // Predicated region
        $region13: #{tpu_custom_call.1} parent=11 // pred_check
          %p211 = pneg %p65
        $region14: #{tpu_custom_call.1} parent=11 // pred_check_branch
          %213 = sbr.rel (%p211) target = $region16
        $region15: #{tpu_custom_call.1} parent=11 // pred_region
          _
        $region16: #{tpu_custom_call.1} parent=11 // pred_fallthru
          _
        // Predicated region
        $region17: #{tpu_custom_call.1} parent=11 // pred_check
          %p214 = pneg %p86
        $region18: #{tpu_custom_call.1} parent=11 // pred_check_branch
          %216 = sbr.rel (%p214) target = $region20
        $region19: #{tpu_custom_call.1} parent=11 // pred_region
          _
        $region20: #{tpu_custom_call.1} parent=11 // pred_fallthru
          _
        // Predicated region
        $region21: #{tpu_custom_call.1} parent=11 // pred_check
          %p217 = pneg %p107
        $region22: #{tpu_custom_call.1} parent=11 // pred_check_branch
          %219 = sbr.rel (%p217) target = $region24
        $region23: #{tpu_custom_call.1} parent=11 // pred_region
          _
        $region24: #{tpu_custom_call.1} parent=11 // pred_fallthru
          _
        // Predicated region
        $region25: #{tpu_custom_call.1} parent=11 // pred_check
          %p220 = pneg %p128
        $region26: #{tpu_custom_call.1} parent=11 // pred_check_branch
          %222 = sbr.rel (%p220) target = $region28
        $region27: #{tpu_custom_call.1} parent=11 // pred_region
          _
        $region28: #{tpu_custom_call.1} parent=11 // pred_fallthru
          _
        // Predicated region
        $region29: #{tpu_custom_call.1} parent=11 // pred_check
          %p223 = pneg %p149
        $region30: #{tpu_custom_call.1} parent=11 // pred_check_branch
          %225 = sbr.rel (%p223) target = $region32
        $region31: #{tpu_custom_call.1} parent=11 // pred_region
          %s227 = ssub.s32 16, 16
          %228 = vsyncadd [#allocation4], %s227
          %s230 = sshll.u32 %s5, 4
          %s231 = int_to_ptr.vmem [resolvable:$true] %s230
          %233 = dma.vmem_to_smem %s231, 16, [#allocation2], [#allocation4]
        $region32: #{tpu_custom_call.1} parent=11 // pred_fallthru
          _
        // Predicated region
        $region33: #{tpu_custom_call.1} parent=11 // pred_check
          %p234 = pneg %p170
        $region34: #{tpu_custom_call.1} parent=11 // pred_check_branch
          %236 = sbr.rel (%p234) target = $region36
        $region35: #{tpu_custom_call.1} parent=11 // pred_region
          %s238 = ssub.s32 16, 16
          %239 = vsyncadd [#allocation6], %s238
          %s241 = sshll.u32 %s6, 4
          %s242 = int_to_ptr.vmem [resolvable:$true] %s241
          %244 = dma.vmem_to_smem %s242, 16, [#allocation5], [#allocation6]
        $region36: #{tpu_custom_call.1} parent=11 // pred_fallthru
          _
      $region12: #{tpu_custom_call.1} parent=5 // pred_fallthru
        _
      %p245 = scmp.lt.s32.totalorder %s18, 2
      // Predicated region
      $region37: #{tpu_custom_call.1} parent=5 // pred_check
        %p246 = pneg %p245
      $region38: #{tpu_custom_call.1} parent=5 // pred_check_branch
        %248 = sbr.rel (%p246) target = $region40
      $region39: #{tpu_custom_call.1} parent=5 // pred_region
        // Predicated region
        $region41: #{tpu_custom_call.1} parent=39 // pred_check
          %p249 = pneg %p38
        $region42: #{tpu_custom_call.1} parent=39 // pred_check_branch
          %251 = sbr.rel (%p249) target = $region44
        $region43: #{tpu_custom_call.1} parent=39 // pred_region
          %p252 = scmp.lt.s32.totalorder %s18, 1
          %s253 = scalar_select %p252, %s18, 1
          %s254 = smul.addr %s253, 8
          %s255 = smul.addr %s254, 4
          %s256 = scalar_lea.vmem %s0, %s255
        $region44: #{tpu_custom_call.1} parent=39 // pred_fallthru
          _
      $region40: #{tpu_custom_call.1} parent=5 // pred_fallthru
        _
      %p257 = scmp.le.s32.totalorder 1, %s18
      %p258 = scmp.lt.s32.totalorder %s18, 3
      %p259 = pnand %p257, %p258
      %p260 = pneg %p259
      // Predicated region
      $region45: #{tpu_custom_call.1} parent=5 // pred_check
        _
      $region46: #{tpu_custom_call.1} parent=5 // pred_check_branch
        %262 = sbr.rel (%p259) target = $region48
      $region47: #{tpu_custom_call.1} parent=5 // pred_region
        %s263 = ssub.s32 %s18, 1
        // Predicated region
        $region49: #{tpu_custom_call.1} parent=47 // pred_check
          %p264 = pneg %p149
        $region50: #{tpu_custom_call.1} parent=47 // pred_check_branch
          %266 = sbr.rel (%p264) target = $region52
        $region51: #{tpu_custom_call.1} parent=47 // pred_region
          %267 = dma.done [#allocation4], 16
        $region52: #{tpu_custom_call.1} parent=47 // pred_fallthru
          _
        // Predicated region
        $region53: #{tpu_custom_call.1} parent=47 // pred_check
          %p268 = pneg %p170
        $region54: #{tpu_custom_call.1} parent=47 // pred_check_branch
          %270 = sbr.rel (%p268) target = $region56
        $region55: #{tpu_custom_call.1} parent=47 // pred_region
          %271 = dma.done [#allocation6], 16
        $region56: #{tpu_custom_call.1} parent=47 // pred_fallthru
          _
        %272 = sfence
        %p273 = scmp.lt.s32.totalorder %s23, 1
        %s274 = scalar_select %p273, %s23, 1
        %s275 = smul.addr %s274, 8
        %s276 = smul.addr %s275, 4
        %s277 = scalar_lea.vmem %s0, %s276
        %p278 = pneg %p44
        %p279 = pneg %p41
        %p280 = pneg %p65
        %p281 = pneg %p62
        %p282 = pneg %p86
        %p283 = pneg %p83
        %p284 = pneg %p107
        %p285 = pneg %p104
        %p286 = pneg %p128
        %p287 = pneg %p125
        %p288 = pneg %p149
        %p289 = pneg %p146
        %p290 = pneg %p170
        %p291 = pneg %p167
        %p292 = pneg %p196
        %p293 = pneg %p193
        %s294 = sand.u32 %s183, 1
        %s295 = scalar_lea.sflag [#allocation3], %s294
        %s296 = sand.u32 %s183, 1
        %s297 = smul.addr %s296, 32
        %s298 = scalar_lea.vmem [#allocation7], %s297
        %p299 = scmp.lt.s32.totalorder %s23, 1
        %s300 = scalar_select %p299, %s23, 1
        %s301 = smul.addr %s300, 8
        %s302 = smul.addr %s301, 4
        %s303 = scalar_lea.vmem %s0, %s302
        %v304 = vld [vmem:[%s1] sm:$0x3]
        %v305 = vld [vmem:[%s2] sm:$0x3]
        %v306 = vld [vmem:[%s3] sm:$0xff]
        %v307 = vld [vmem:[%s3 + $0x8] sm:$0xff]
        %v308 = vld [vmem:[%s3 + $0x10] sm:$0xff]
        %v309 = vld [vmem:[%s3 + $0x18] sm:$0xff]
        %v310 = vld [vmem:[%s4] sm:$0xff]
        %v311 = vld [vmem:[%s4 + $0x8] sm:$0xff]
        %v312 = vld [vmem:[%s4 + $0x10] sm:$0xff]
        %v313 = vld [vmem:[%s4 + $0x18] sm:$0xff]
        %v314 = vlaneseq
        %v315 = vand.u32 %v314, 127
        %v316 = vadd.s32 %v315, 128
        %vm317 = vcmp.lt.s32.totalorder %v315, 0
        %v318 = vsub.s32 0, %v315
        %v319 = vsel %vm317, %v318, %v315
        %v320 = vshrl.u32 %v319, 4
        %v321 = vand.u32 %v319, 15
        %v322 = vsub.s32 0, %v321
        %v323 = vsel %vm317, %v322, %v321
        %vm324 = vcmp.lt.s32.totalorder %v316, 0
        %v325 = vsub.s32 0, %v316
        %v326 = vsel %vm324, %v325, %v316
        %v327 = vshrl.u32 %v326, 4
        %v328 = vand.u32 %v326, 15
        %v329 = vsub.s32 0, %v328
        %v330 = vsel %vm324, %v329, %v328
        %vm331 = vcmp.ne.s32.totalorder %v323, 0
        %vm332 = vcmp.ne.s32.totalorder %v330, 0
        %vm333 = vcmp.lt.s32.totalorder %v323, 0
        %vm334 = vcmp.lt.s32.totalorder %v330, 0
        %vm335 = vmand %vm333, %vm331
        %vm336 = vmand %vm334, %vm332
        %v337 = vadd.s32 %v323, 16
        %v338 = vadd.s32 %v330, 16
        %v339 = vsel %vm335, %v337, %v323
        %v340 = vsel %vm336, %v338, %v330
        %v341 = vld [vmem:[%s303] sm:$0xff]
        %v342 = vld [vmem:[%s303 + $0x8] sm:$0xff]
        %v343 = vld [vmem:[%s303 + $0x10] sm:$0xff]
        %v344 = vld [vmem:[%s303 + $0x18] sm:$0xff]
        %v345 = vunpack.c.l.bf16 %v341
        %v346 = vunpack.c.h.bf16 %v341
        %v347 = vunpack.c.l.bf16 %v342
        %v348 = vunpack.c.h.bf16 %v342
        %v349 = vunpack.c.l.bf16 %v343
        %v350 = vunpack.c.h.bf16 %v343
        %v351 = vunpack.c.l.bf16 %v344
        %v352 = vunpack.c.h.bf16 %v344
        %v353 = vadd.f32 %v345, %v346
        %354 = vadd.xlane.f32.xlu0 %v353
        %v355 = vpop.xlane.xlu0 %354
        %v356 = vadd.f32 %v347, %v348
        %357 = vadd.xlane.f32.xlu0 %v356
        %v358 = vpop.xlane.xlu0 %357
        %v359 = vadd.f32 %v349, %v350
        %360 = vadd.xlane.f32.xlu0 %v359
        %v361 = vpop.xlane.xlu0 %360
        %v362 = vadd.f32 %v351, %v352
        %363 = vadd.xlane.f32.xlu0 %v362
        %v364 = vpop.xlane.xlu0 %363
        %v365 = vmul.f32 %v355, 0.00390625
        %v366 = vmul.f32 %v358, 0.00390625
        %v367 = vmul.f32 %v361, 0.00390625
        %v368 = vmul.f32 %v364, 0.00390625
        %v369 = vmax.f32 %v345, %v346
        %370 = vmax.xlane.f32.xlu0 %v369
        %v371 = vpop.xlane.xlu0 %370
        %v372 = vmax.f32 %v347, %v348
        %373 = vmax.xlane.f32.xlu0 %v372
        %v374 = vpop.xlane.xlu0 %373
        %v375 = vmax.f32 %v349, %v350
        %376 = vmax.xlane.f32.xlu0 %v375
        %v377 = vpop.xlane.xlu0 %376
        %v378 = vmax.f32 %v351, %v352
        %379 = vmax.xlane.f32.xlu0 %v378
        %v380 = vpop.xlane.xlu0 %379
        %vm381 = vcmask 261120
        %v383 = vsel %vm381, %v304, 0
        %385 = vmatprep.subr.mxu0 0.0
        %386 = vmatpush1.msra.mxu0 %v365
        %387 = vmatprep.subr.mxu0 0.0
        %388 = vmatpush1.msra.mxu0 %v366
        %389 = vmatprep.subr.mxu0 0.0
        %390 = vmatpush1.msra.mxu0 %v367
        %391 = vmatprep.subr.mxu0 0.0
        %392 = vmatpush1.msra.mxu0 %v368
        %393 = vmatprep.subr.mxu0 0.0
        %394 = vmatpush1.msra.mxu0 0.0
        %395 = vmatprep.subr.mxu0 0.0
        %396 = vmatpush1.msra.mxu0 0.0
        %397 = vmatprep.subr.mxu0 0.0
        %398 = vmatpush1.msra.mxu0 0.0
        %399 = vmatprep.subr.mxu0 0.0
        %400 = vmatpush1.msra.mxu0 0.0
        %401 = vmatprep.subr.mxu0 0.0
        %402 = vmatpush1.msra.mxu0 0.0
        %403 = vmatprep.subr.mxu0 0.0
        %404 = vmatpush1.msra.mxu0 0.0
        %405 = vmatprep.subr.mxu0 0.0
        %406 = vmatpush1.msra.mxu0 0.0
        %407 = vmatprep.subr.mxu0 0.0
        %408 = vmatpush1.msra.mxu0 0.0
        %409 = vmatprep.subr.mxu0 0.0
        %410 = vmatpush1.msra.mxu0 0.0
        %411 = vmatprep.subr.mxu0 0.0
        %412 = vmatpush1.msra.mxu0 0.0
        %413 = vmatprep.subr.mxu0 0.0
        %414 = vmatpush1.msra.mxu0 0.0
        %415 = vmatprep.subr.mxu0 0.0
        %416 = vmatpush1.msra.mxu0 0.0
        %417 = vmatprep.subr.mxu0 0.0
        %418 = vmatpush1.msra.mxu0 0.0
        %419 = vmatprep.subr.mxu0 0.0
        %420 = vmatpush1.msra.mxu0 0.0
        %421 = vmatprep.subr.mxu0 0.0
        %422 = vmatpush1.msra.mxu0 0.0
        %423 = vmatprep.subr.mxu0 0.0
        %424 = vmatpush1.msra.mxu0 0.0
        %425 = vmatprep.subr.mxu0 0.0
        %426 = vmatpush1.msra.mxu0 0.0
        %427 = vmatprep.subr.mxu0 0.0
        %428 = vmatpush1.msra.mxu0 0.0
        %429 = vmatprep.subr.mxu0 0.0
        %430 = vmatpush1.msra.mxu0 0.0
        %431 = vmatprep.subr.mxu0 0.0
        %432 = vmatpush1.msra.mxu0 0.0
        %433 = vmatprep.subr.mxu0 0.0
        %434 = vmatpush1.msra.mxu0 0.0
        %435 = vmatprep.subr.mxu0 0.0
        %436 = vmatpush1.msra.mxu0 0.0
        %437 = vmatprep.subr.mxu0 0.0
        %438 = vmatpush1.msra.mxu0 0.0
        %439 = vmatprep.subr.mxu0 0.0
        %440 = vmatpush1.msra.mxu0 0.0
        %441 = vmatprep.subr.mxu0 0.0
        %442 = vmatpush1.msra.mxu0 0.0
        %443 = vmatprep.subr.mxu0 0.0
        %444 = vmatpush1.msra.mxu0 0.0
        %445 = vmatprep.subr.mxu0 0.0
        %446 = vmatpush1.msra.mxu0 0.0
        %447 = vmatprep.subr.mxu0 0.0
        %448 = vmatpush1.msra.mxu0 0.0
        %449 = vmatprep.mubr.f32.mxu0 0.0
        %450 = vmatmul.mubr.f32.gmra.mrb[0].mxu0 %v383
        %v451 = vpop.f32.mrb[0].mxu0
        %v452 = vadd.f32 %v305, %v451
        %v453 = vpop.f32.mrb[0].mxu0
        %454 = vdwg.mxu0
        %v455 = vmax.f32 %v452, 0.0
        %vm456 = vcmask 15360
        %v458 = vsel %vm456, %v306, 0
        %v461 = vsel %vm456, %v307, 0
        %v464 = vsel %vm456, %v308, 0
        %v467 = vsel %vm456, %v309, 0
        %vm469 = vcmask 1041408
        %v471 = vsel %vm469, %v455, 0
        %473 = vmatprep.subr.mxu0 0.0
        %474 = vmatpush1.msra.mxu0 %v471
        %475 = vmatprep.subr.mxu0 0.0
        %476 = vmatpush1.msra.mxu0 0.0
        %477 = vmatprep.subr.mxu0 0.0
        %478 = vmatpush1.msra.mxu0 0.0
        %479 = vmatprep.subr.mxu0 0.0
        %480 = vmatpush1.msra.mxu0 0.0
        %481 = vmatprep.subr.mxu0 0.0
        %482 = vmatpush1.msra.mxu0 0.0
        %483 = vmatprep.subr.mxu0 0.0
        %484 = vmatpush1.msra.mxu0 0.0
        %485 = vmatprep.subr.mxu0 0.0
        %486 = vmatpush1.msra.mxu0 0.0
        %487 = vmatprep.subr.mxu0 0.0
        %488 = vmatpush1.msra.mxu0 0.0
        %489 = vmatprep.subr.mxu0 0.0
        %490 = vmatpush1.msra.mxu0 0.0
        %491 = vmatprep.subr.mxu0 0.0
        %492 = vmatpush1.msra.mxu0 0.0
        %493 = vmatprep.subr.mxu0 0.0
        %494 = vmatpush1.msra.mxu0 0.0
        %495 = vmatprep.subr.mxu0 0.0
        %496 = vmatpush1.msra.mxu0 0.0
        %497 = vmatprep.subr.mxu0 0.0
        %498 = vmatpush1.msra.mxu0 0.0
        %499 = vmatprep.subr.mxu0 0.0
        %500 = vmatpush1.msra.mxu0 0.0
        %501 = vmatprep.subr.mxu0 0.0
        %502 = vmatpush1.msra.mxu0 0.0
        %503 = vmatprep.subr.mxu0 0.0
        %504 = vmatpush1.msra.mxu0 0.0
        %505 = vmatprep.subr.mxu0 0.0
        %506 = vmatpush1.msra.mxu0 0.0
        %507 = vmatprep.subr.mxu0 0.0
        %508 = vmatpush1.msra.mxu0 0.0
        %509 = vmatprep.subr.mxu0 0.0
        %510 = vmatpush1.msra.mxu0 0.0
        %511 = vmatprep.subr.mxu0 0.0
        %512 = vmatpush1.msra.mxu0 0.0
        %513 = vmatprep.subr.mxu0 0.0
        %514 = vmatpush1.msra.mxu0 0.0
        %515 = vmatprep.subr.mxu0 0.0
        %516 = vmatpush1.msra.mxu0 0.0
        %517 = vmatprep.subr.mxu0 0.0
        %518 = vmatpush1.msra.mxu0 0.0
        %519 = vmatprep.subr.mxu0 0.0
        %520 = vmatpush1.msra.mxu0 0.0
        %521 = vmatprep.subr.mxu0 0.0
        %522 = vmatpush1.msra.mxu0 0.0
        %523 = vmatprep.subr.mxu0 0.0
        %524 = vmatpush1.msra.mxu0 0.0
        %525 = vmatprep.subr.mxu0 0.0
        %526 = vmatpush1.msra.mxu0 0.0
        %527 = vmatprep.subr.mxu0 0.0
        %528 = vmatpush1.msra.mxu0 0.0
        %529 = vmatprep.subr.mxu0 0.0
        %530 = vmatpush1.msra.mxu0 0.0
        %531 = vmatprep.subr.mxu0 0.0
        %532 = vmatpush1.msra.mxu0 0.0
        %533 = vmatprep.subr.mxu0 0.0
        %534 = vmatpush1.msra.mxu0 0.0
        %535 = vmatprep.subr.mxu0 0.0
        %536 = vmatpush1.msra.mxu0 0.0
        %537 = vmatprep.mubr.f32.mxu0 0.0
        %538 = vmatmul.mubr.f32.gmra.mrb[0].mxu0 %v458
        %v539 = vpop.f32.mrb[0].mxu0
        %v540 = vadd.f32 %v310, %v539
        %v541 = vpop.f32.mrb[0].mxu0
        %542 = vmatprep.mubr.f32.mxu0 0.0
        %543 = vmatmul.mubr.f32.gmra.mrb[0].mxu0 %v461
        %v544 = vpop.f32.mrb[0].mxu0
        %v545 = vadd.f32 %v311, %v544
        %v546 = vpop.f32.mrb[0].mxu0
        %547 = vmatprep.mubr.f32.mxu0 0.0
        %548 = vmatmul.mubr.f32.gmra.mrb[0].mxu0 %v464
        %v549 = vpop.f32.mrb[0].mxu0
        %v550 = vadd.f32 %v312, %v549
        %v551 = vpop.f32.mrb[0].mxu0
        %552 = vmatprep.mubr.f32.mxu0 0.0
        %553 = vmatmul.mubr.f32.gmra.mrb[0].mxu0 %v467
        %v554 = vpop.f32.mrb[0].mxu0
        %v555 = vadd.f32 %v313, %v554
        %v556 = vpop.f32.mrb[0].mxu0
        %557 = vdwg.mxu0
        %558 = vmatprep.subr.mxu0 0.0
        %559 = vmatpush1.msra.mxu0 %v371
        %560 = vmatprep.subr.mxu0 0.0
        %561 = vmatpush1.msra.mxu0 %v374
        %562 = vmatprep.subr.mxu0 0.0
        %563 = vmatpush1.msra.mxu0 %v377
        %564 = vmatprep.subr.mxu0 0.0
        %565 = vmatpush1.msra.mxu0 %v380
        %566 = vmatprep.subr.mxu0 0.0
        %567 = vmatpush1.msra.mxu0 0.0
        %568 = vmatprep.subr.mxu0 0.0
        %569 = vmatpush1.msra.mxu0 0.0
        %570 = vmatprep.subr.mxu0 0.0
        %571 = vmatpush1.msra.mxu0 0.0
        %572 = vmatprep.subr.mxu0 0.0
        %573 = vmatpush1.msra.mxu0 0.0
        %574 = vmatprep.subr.mxu0 0.0
        %575 = vmatpush1.msra.mxu0 0.0
        %576 = vmatprep.subr.mxu0 0.0
        %577 = vmatpush1.msra.mxu0 0.0
        %578 = vmatprep.subr.mxu0 0.0
        %579 = vmatpush1.msra.mxu0 0.0
        %580 = vmatprep.subr.mxu0 0.0
        %581 = vmatpush1.msra.mxu0 0.0
        %582 = vmatprep.subr.mxu0 0.0
        %583 = vmatpush1.msra.mxu0 0.0
        %584 = vmatprep.subr.mxu0 0.0
        %585 = vmatpush1.msra.mxu0 0.0
        %586 = vmatprep.subr.mxu0 0.0
        %587 = vmatpush1.msra.mxu0 0.0
        %588 = vmatprep.subr.mxu0 0.0
        %589 = vmatpush1.msra.mxu0 0.0
        %590 = vmatprep.subr.mxu0 0.0
        %591 = vmatpush1.msra.mxu0 0.0
        %592 = vmatprep.subr.mxu0 0.0
        %593 = vmatpush1.msra.mxu0 0.0
        %594 = vmatprep.subr.mxu0 0.0
        %595 = vmatpush1.msra.mxu0 0.0
        %596 = vmatprep.subr.mxu0 0.0
        %597 = vmatpush1.msra.mxu0 0.0
        %598 = vmatprep.subr.mxu0 0.0
        %599 = vmatpush1.msra.mxu0 0.0
        %600 = vmatprep.subr.mxu0 0.0
        %601 = vmatpush1.msra.mxu0 0.0
        %602 = vmatprep.subr.mxu0 0.0
        %603 = vmatpush1.msra.mxu0 0.0
        %604 = vmatprep.subr.mxu0 0.0
        %605 = vmatpush1.msra.mxu0 0.0
        %606 = vmatprep.subr.mxu0 0.0
        %607 = vmatpush1.msra.mxu0 0.0
        %608 = vmatprep.subr.mxu0 0.0
        %609 = vmatpush1.msra.mxu0 0.0
        %610 = vmatprep.subr.mxu0 0.0
        %611 = vmatpush1.msra.mxu0 0.0
        %612 = vmatprep.subr.mxu0 0.0
        %613 = vmatpush1.msra.mxu0 0.0
        %614 = vmatprep.subr.mxu0 0.0
        %615 = vmatpush1.msra.mxu0 0.0
        %616 = vmatprep.subr.mxu0 0.0
        %617 = vmatpush1.msra.mxu0 0.0
        %618 = vmatprep.subr.mxu0 0.0
        %619 = vmatpush1.msra.mxu0 0.0
        %620 = vmatprep.subr.mxu0 0.0
        %621 = vmatpush1.msra.mxu0 0.0
        %622 = vmatprep.mubr.f32.mxu0 0.0
        %623 = vmatmul.mubr.f32.gmra.mrb[0].mxu0 %v383
        %v624 = vpop.f32.mrb[0].mxu0
        %v625 = vadd.f32 %v305, %v624
        %v626 = vpop.f32.mrb[0].mxu0
        %627 = vdwg.mxu0
        %v628 = vmax.f32 %v625, 0.0
        %v630 = vsel %vm469, %v628, 0
        %632 = vmatprep.subr.mxu0 0.0
        %633 = vmatpush1.msra.mxu0 %v630
        %634 = vmatprep.subr.mxu0 0.0
        %635 = vmatpush1.msra.mxu0 0.0
        %636 = vmatprep.subr.mxu0 0.0
        %637 = vmatpush1.msra.mxu0 0.0
        %638 = vmatprep.subr.mxu0 0.0
        %639 = vmatpush1.msra.mxu0 0.0
        %640 = vmatprep.subr.mxu0 0.0
        %641 = vmatpush1.msra.mxu0 0.0
        %642 = vmatprep.subr.mxu0 0.0
        %643 = vmatpush1.msra.mxu0 0.0
        %644 = vmatprep.subr.mxu0 0.0
        %645 = vmatpush1.msra.mxu0 0.0
        %646 = vmatprep.subr.mxu0 0.0
        %647 = vmatpush1.msra.mxu0 0.0
        %648 = vmatprep.subr.mxu0 0.0
        %649 = vmatpush1.msra.mxu0 0.0
        %650 = vmatprep.subr.mxu0 0.0
        %651 = vmatpush1.msra.mxu0 0.0
        %652 = vmatprep.subr.mxu0 0.0
        %653 = vmatpush1.msra.mxu0 0.0
        %654 = vmatprep.subr.mxu0 0.0
        %655 = vmatpush1.msra.mxu0 0.0
        %656 = vmatprep.subr.mxu0 0.0
        %657 = vmatpush1.msra.mxu0 0.0
        %658 = vmatprep.subr.mxu0 0.0
        %659 = vmatpush1.msra.mxu0 0.0
        %660 = vmatprep.subr.mxu0 0.0
        %661 = vmatpush1.msra.mxu0 0.0
        %662 = vmatprep.subr.mxu0 0.0
        %663 = vmatpush1.msra.mxu0 0.0
        %664 = vmatprep.subr.mxu0 0.0
        %665 = vmatpush1.msra.mxu0 0.0
        %666 = vmatprep.subr.mxu0 0.0
        %667 = vmatpush1.msra.mxu0 0.0
        %668 = vmatprep.subr.mxu0 0.0
        %669 = vmatpush1.msra.mxu0 0.0
        %670 = vmatprep.subr.mxu0 0.0
        %671 = vmatpush1.msra.mxu0 0.0
        %672 = vmatprep.subr.mxu0 0.0
        %673 = vmatpush1.msra.mxu0 0.0
        %674 = vmatprep.subr.mxu0 0.0
        %675 = vmatpush1.msra.mxu0 0.0
        %676 = vmatprep.subr.mxu0 0.0
        %677 = vmatpush1.msra.mxu0 0.0
        %678 = vmatprep.subr.mxu0 0.0
        %679 = vmatpush1.msra.mxu0 0.0
        %680 = vmatprep.subr.mxu0 0.0
        %681 = vmatpush1.msra.mxu0 0.0
        %682 = vmatprep.subr.mxu0 0.0
        %683 = vmatpush1.msra.mxu0 0.0
        %684 = vmatprep.subr.mxu0 0.0
        %685 = vmatpush1.msra.mxu0 0.0
        %686 = vmatprep.subr.mxu0 0.0
        %687 = vmatpush1.msra.mxu0 0.0
        %688 = vmatprep.subr.mxu0 0.0
        %689 = vmatpush1.msra.mxu0 0.0
        %690 = vmatprep.subr.mxu0 0.0
        %691 = vmatpush1.msra.mxu0 0.0
        %692 = vmatprep.subr.mxu0 0.0
        %693 = vmatpush1.msra.mxu0 0.0
        %694 = vmatprep.subr.mxu0 0.0
        %695 = vmatpush1.msra.mxu0 0.0
        %696 = vmatprep.mubr.f32.mxu0 0.0
        %697 = vmatmul.mubr.f32.gmra.mrb[0].mxu0 %v458
        %v698 = vpop.f32.mrb[0].mxu0
        %v699 = vadd.f32 %v310, %v698
        %v700 = vpop.f32.mrb[0].mxu0
        %701 = vmatprep.mubr.f32.mxu0 0.0
        %702 = vmatmul.mubr.f32.gmra.mrb[0].mxu0 %v461
        %v703 = vpop.f32.mrb[0].mxu0
        %v704 = vadd.f32 %v311, %v703
        %v705 = vpop.f32.mrb[0].mxu0
        %706 = vmatprep.mubr.f32.mxu0 0.0
        %707 = vmatmul.mubr.f32.gmra.mrb[0].mxu0 %v464
        %v708 = vpop.f32.mrb[0].mxu0
        %v709 = vadd.f32 %v312, %v708
        %v710 = vpop.f32.mrb[0].mxu0
        %711 = vmatprep.mubr.f32.mxu0 0.0
        %712 = vmatmul.mubr.f32.gmra.mrb[0].mxu0 %v467
        %v713 = vpop.f32.mrb[0].mxu0
        %v714 = vadd.f32 %v313, %v713
        %v715 = vpop.f32.mrb[0].mxu0
        %716 = vdwg.mxu0
        %v717 = vadd.f32 %v540, %v699
        %v718 = vadd.f32 %v545, %v704
        %v719 = vadd.f32 %v550, %v709
        %v720 = vadd.f32 %v555, %v714
        %v721 = vxor.u32 %v717, 2147483648
        %v722 = vxor.u32 %v718, 2147483648
        %v723 = vxor.u32 %v719, 2147483648
        %v724 = vxor.u32 %v720, 2147483648
        %v725 = vmul.f32 %v721, 1.442695
        %v726 = vpow.pop %v725
        %v727 = vmul.f32 %v722, 1.442695
        %v728 = vpow.pop %v727
        %v729 = vmul.f32 %v723, 1.442695
        %v730 = vpow.pop %v729
        %v731 = vmul.f32 %v724, 1.442695
        %v732 = vpow.pop %v731
        %v733 = vadd.f32 %v726, 1.0
        %v734 = vadd.f32 %v728, 1.0
        %v735 = vadd.f32 %v730, 1.0
        %v736 = vadd.f32 %v732, 1.0
        %v737 = vrcp.pop %v733
        %v738 = vmul.f32 1.0, %v737
        %v739 = vrcp.pop %v734
        %v740 = vmul.f32 1.0, %v739
        %v741 = vrcp.pop %v735
        %v742 = vmul.f32 1.0, %v741
        %v743 = vrcp.pop %v736
        %v744 = vmul.f32 1.0, %v743
        %746 = vset.pattern.permute.xlu0 0
        %747 = vperm.xlu0 %746, %v738
        %v748 = vpop.permute.xlu0 %747
        %751 = vset.pattern.permute.xlu0 0
        %752 = vperm.xlu0 %751, %v740
        %v753 = vpop.permute.xlu0 %752
        %756 = vset.pattern.permute.xlu0 0
        %757 = vperm.xlu0 %756, %v742
        %v758 = vpop.permute.xlu0 %757
        %761 = vset.pattern.permute.xlu0 0
        %762 = vperm.xlu0 %761, %v744
        %v763 = vpop.permute.xlu0 %762
        %v765 = vmul.f32 %v345, %v748
        %v766 = vmul.f32 %v346, %v748
        %v767 = vmul.f32 %v347, %v753
        %v768 = vmul.f32 %v348, %v753
        %v769 = vmul.f32 %v349, %v758
        %v770 = vmul.f32 %v350, %v758
        %v771 = vmul.f32 %v351, %v763
        %v772 = vmul.f32 %v352, %v763
        %v773 = vmax.f32 %v765, %v769
        %v774 = vmax.f32 %v767, %v771
        %v775 = vmax.f32 %v773, %v774
        %v776 = vrot.slane %v775, 4
        %v777 = vmax.f32 %v775, %v776
        %v778 = vrot.slane %v777, 2
        %v779 = vmax.f32 %v777, %v778
        %v780 = vrot.slane %v779, 1
        %v781 = vmax.f32 %v779, %v780
        %v782 = vmax.f32 %v766, %v770
        %v783 = vmax.f32 %v768, %v772
        %v784 = vmax.f32 %v782, %v783
        %v785 = vrot.slane %v784, 4
        %v786 = vmax.f32 %v784, %v785
        %v787 = vrot.slane %v786, 2
        %v788 = vmax.f32 %v786, %v787
        %v789 = vrot.slane %v788, 1
        %v790 = vmax.f32 %v788, %v789
        %v791 = vadd.f32 %v765, %v767
        %v792 = vadd.f32 %v791, %v769
        %v793 = vadd.f32 %v792, %v771
        %v794 = vrot.slane %v793, 4
        %v795 = vadd.f32 %v793, %v794
        %v796 = vrot.slane %v795, 2
        %v797 = vadd.f32 %v795, %v796
        %v798 = vrot.slane %v797, 1
        %v799 = vadd.f32 %v797, %v798
        %v800 = vadd.f32 %v766, %v768
        %v801 = vadd.f32 %v800, %v770
        %v802 = vadd.f32 %v801, %v772
        %v803 = vrot.slane %v802, 4
        %v804 = vadd.f32 %v802, %v803
        %v805 = vrot.slane %v804, 2
        %v806 = vadd.f32 %v804, %v805
        %v807 = vrot.slane %v806, 1
        %v808 = vadd.f32 %v806, %v807
        %v809 = vmul.f32 %v799, 0.03125
        %v810 = vmul.f32 %v808, 0.03125
        %813 = vrot.lane.b32.xlu0 %v781, 48
        %v814 = vpop.permute.xlu0 %813
        %815 = vrot.lane.b32.xlu0 %v790, 48
        %v816 = vpop.permute.xlu0 %815
        %vm817 = vcmask 392192
        %v818 = vsel %vm817, %v814, %v816
        %v821 = vsel %vm817, 0.0, %v814
        %822 = vrot.lane.b32.xlu0 %v781, 32
        %v823 = vpop.permute.xlu0 %822
        %824 = vrot.lane.b32.xlu0 %v790, 32
        %v825 = vpop.permute.xlu0 %824
        %v826 = vsel %vm381, %v823, %v825
        %v829 = vsel %vm381, 0.0, %v823
        %830 = vrot.lane.b32.xlu0 %v781, 16
        %v831 = vpop.permute.xlu0 %830
        %832 = vrot.lane.b32.xlu0 %v790, 16
        %v833 = vpop.permute.xlu0 %832
        %vm834 = vcmask 130048
        %v835 = vsel %vm834, %v831, %v833
        %v838 = vsel %vm834, 0.0, %v831
        %839 = vrot.lane.b32.xlu0 %v781, 112
        %v840 = vpop.permute.xlu0 %839
        %841 = vrot.lane.b32.xlu0 %v790, 112
        %v842 = vpop.permute.xlu0 %841
        %vm843 = vcmask 916480
        %v844 = vsel %vm843, %v840, %v842
        %v847 = vsel %vm843, %v842, 0.0
        %848 = vrot.lane.b32.xlu0 %v781, 96
        %v849 = vpop.permute.xlu0 %848
        %850 = vrot.lane.b32.xlu0 %v790, 96
        %v851 = vpop.permute.xlu0 %850
        %vm852 = vcmask 785408
        %v853 = vsel %vm852, %v849, %v851
        %v856 = vsel %vm852, %v851, 0.0
        %857 = vrot.lane.b32.xlu0 %v781, 80
        %v858 = vpop.permute.xlu0 %857
        %859 = vrot.lane.b32.xlu0 %v790, 80
        %v860 = vpop.permute.xlu0 %859
        %vm861 = vcmask 654336
        %v862 = vsel %vm861, %v858, %v860
        %v865 = vsel %vm861, %v860, 0.0
        %868 = vrot.lane.b32.xlu0 %v809, 48
        %v869 = vpop.permute.xlu0 %868
        %870 = vrot.lane.b32.xlu0 %v810, 48
        %v871 = vpop.permute.xlu0 %870
        %v872 = vsel %vm817, %v869, %v871
        %v875 = vsel %vm817, 0.0, %v869
        %876 = vrot.lane.b32.xlu0 %v809, 32
        %v877 = vpop.permute.xlu0 %876
        %878 = vrot.lane.b32.xlu0 %v810, 32
        %v879 = vpop.permute.xlu0 %878
        %v880 = vsel %vm381, %v877, %v879
        %v883 = vsel %vm381, 0.0, %v877
        %884 = vrot.lane.b32.xlu0 %v809, 16
        %v885 = vpop.permute.xlu0 %884
        %886 = vrot.lane.b32.xlu0 %v810, 16
        %v887 = vpop.permute.xlu0 %886
        %v888 = vsel %vm834, %v885, %v887
        %v891 = vsel %vm834, 0.0, %v885
        %892 = vrot.lane.b32.xlu0 %v809, 112
        %v893 = vpop.permute.xlu0 %892
        %894 = vrot.lane.b32.xlu0 %v810, 112
        %v895 = vpop.permute.xlu0 %894
        %v896 = vsel %vm843, %v893, %v895
        %v899 = vsel %vm843, %v895, 0.0
        %900 = vrot.lane.b32.xlu0 %v809, 96
        %v901 = vpop.permute.xlu0 %900
        %902 = vrot.lane.b32.xlu0 %v810, 96
        %v903 = vpop.permute.xlu0 %902
        %v904 = vsel %vm852, %v901, %v903
        %v907 = vsel %vm852, %v903, 0.0
        %908 = vrot.lane.b32.xlu0 %v809, 80
        %v909 = vpop.permute.xlu0 %908
        %910 = vrot.lane.b32.xlu0 %v810, 80
        %v911 = vpop.permute.xlu0 %910
        %v912 = vsel %vm861, %v909, %v911
        %v915 = vsel %vm861, %v911, 0.0
        %s916 = sld [smem:[#allocation2]]
        %v917 = vstv %s916
        %v918 = vmul.f32 %v917, %v821
        %v919 = vmul.f32 %v917, %v818
        %v920 = vadd.f32 %v918, 0.0
        %v921 = vadd.f32 %v919, 0.0
        %s922 = sld [smem:[#allocation2 + $0x31]]
        %v923 = vstv %s922
        %v924 = vmul.f32 %v923, %v875
        %v925 = vmul.f32 %v923, %v872
        %v926 = vadd.f32 %v920, %v924
        %v927 = vadd.f32 %v921, %v925
        %s928 = sld [smem:[#allocation2 + $0x7]]
        %v929 = vstv %s928
        %v930 = vmul.f32 %v929, %v829
        %v931 = vmul.f32 %v929, %v826
        %v932 = vadd.f32 %v926, %v930
        %v933 = vadd.f32 %v927, %v931
        %s934 = sld [smem:[#allocation2 + $0x38]]
        %v935 = vstv %s934
        %v936 = vmul.f32 %v935, %v883
        %v937 = vmul.f32 %v935, %v880
        %v938 = vadd.f32 %v932, %v936
        %v939 = vadd.f32 %v933, %v937
        %s940 = sld [smem:[#allocation2 + $0xe]]
        %v941 = vstv %s940
        %v942 = vmul.f32 %v941, %v838
        %v943 = vmul.f32 %v941, %v835
        %v944 = vadd.f32 %v938, %v942
        %v945 = vadd.f32 %v939, %v943
        %s946 = sld [smem:[#allocation2 + $0x3f]]
        %v947 = vstv %s946
        %v948 = vmul.f32 %v947, %v891
        %v949 = vmul.f32 %v947, %v888
        %v950 = vadd.f32 %v944, %v948
        %v951 = vadd.f32 %v945, %v949
        %s952 = sld [smem:[#allocation2 + $0x15]]
        %v953 = vstv %s952
        %v954 = vmul.f32 %v953, %v781
        %v955 = vmul.f32 %v953, %v790
        %v956 = vadd.f32 %v950, %v954
        %v957 = vadd.f32 %v951, %v955
        %s958 = sld [smem:[#allocation2 + $0x46]]
        %v959 = vstv %s958
        %v960 = vmul.f32 %v959, %v809
        %v961 = vmul.f32 %v959, %v810
        %v962 = vadd.f32 %v956, %v960
        %v963 = vadd.f32 %v957, %v961
        %s964 = sld [smem:[#allocation2 + $0x1c]]
        %v965 = vstv %s964
        %v966 = vmul.f32 %v965, %v844
        %v967 = vmul.f32 %v965, %v847
        %v968 = vadd.f32 %v962, %v966
        %v969 = vadd.f32 %v963, %v967
        %s970 = sld [smem:[#allocation2 + $0x4d]]
        %v971 = vstv %s970
        %v972 = vmul.f32 %v971, %v896
        %v973 = vmul.f32 %v971, %v899
        %v974 = vadd.f32 %v968, %v972
        %v975 = vadd.f32 %v969, %v973
        %s976 = sld [smem:[#allocation2 + $0x23]]
        %v977 = vstv %s976
        %v978 = vmul.f32 %v977, %v853
        %v979 = vmul.f32 %v977, %v856
        %v980 = vadd.f32 %v974, %v978
        %v981 = vadd.f32 %v975, %v979
        %s982 = sld [smem:[#allocation2 + $0x54]]
        %v983 = vstv %s982
        %v984 = vmul.f32 %v983, %v904
        %v985 = vmul.f32 %v983, %v907
        %v986 = vadd.f32 %v980, %v984
        %v987 = vadd.f32 %v981, %v985
        %s988 = sld [smem:[#allocation2 + $0x2a]]
        %v989 = vstv %s988
        %v990 = vmul.f32 %v989, %v862
        %v991 = vmul.f32 %v989, %v865
        %v992 = vadd.f32 %v986, %v990
        %v993 = vadd.f32 %v987, %v991
        %s994 = sld [smem:[#allocation2 + $0x5b]]
        %v995 = vstv %s994
        %v996 = vmul.f32 %v995, %v912
        %v997 = vmul.f32 %v995, %v915
        %v998 = vadd.f32 %v992, %v996
        %v999 = vadd.f32 %v993, %v997
        %1002 = vrot.lane.b32.xlu0 %v998, 3
        %v1003 = vpop.permute.xlu0 %1002
        %1004 = vrot.lane.b32.xlu0 %v999, 3
        %v1005 = vpop.permute.xlu0 %1004
        %vm1006 = vcmask 23552
        %v1007 = vsel %vm1006, %v1003, %v1005
        %v1010 = vsel %vm1006, 0.0, %v1003
        %v1011 = vadd.s32 %v339, 4294967293
        %v1012 = vadd.s32 %v340, 4294967293
        %vm1013 = vcmp.ge.s32.totalorder %v1011, 0
        %vm1014 = vcmp.ge.s32.totalorder %v1012, 0
        %vm1015 = vcmp.lt.s32.totalorder %v1011, 16
        %vm1016 = vcmp.lt.s32.totalorder %v1012, 16
        %vm1017 = vmand %vm1013, %vm1015
        %vm1018 = vmand %vm1014, %vm1016
        %v1019 = vsel %vm1017, %v1010, 0.0
        %v1020 = vsel %vm1018, %v1007, 0.0
        %v1021 = vadd.f32 %v1019, 0.0
        %v1022 = vadd.f32 %v1020, 0.0
        %s1023 = sld [smem:[#allocation2 + $0x1]]
        %v1024 = vstv %s1023
        %v1025 = vmul.f32 %v1024, %v821
        %v1026 = vmul.f32 %v1024, %v818
        %v1027 = vadd.f32 %v1025, 0.0
        %v1028 = vadd.f32 %v1026, 0.0
        %s1029 = sld [smem:[#allocation2 + $0x32]]
        %v1030 = vstv %s1029
        %v1031 = vmul.f32 %v1030, %v875
        %v1032 = vmul.f32 %v1030, %v872
        %v1033 = vadd.f32 %v1027, %v1031
        %v1034 = vadd.f32 %v1028, %v1032
        %s1035 = sld [smem:[#allocation2 + $0x8]]
        %v1036 = vstv %s1035
        %v1037 = vmul.f32 %v1036, %v829
        %v1038 = vmul.f32 %v1036, %v826
        %v1039 = vadd.f32 %v1033, %v1037
        %v1040 = vadd.f32 %v1034, %v1038
        %s1041 = sld [smem:[#allocation2 + $0x39]]
        %v1042 = vstv %s1041
        %v1043 = vmul.f32 %v1042, %v883
        %v1044 = vmul.f32 %v1042, %v880
        %v1045 = vadd.f32 %v1039, %v1043
        %v1046 = vadd.f32 %v1040, %v1044
        %s1047 = sld [smem:[#allocation2 + $0xf]]
        %v1048 = vstv %s1047
        %v1049 = vmul.f32 %v1048, %v838
        %v1050 = vmul.f32 %v1048, %v835
        %v1051 = vadd.f32 %v1045, %v1049
        %v1052 = vadd.f32 %v1046, %v1050
        %s1053 = sld [smem:[#allocation2 + $0x40]]
        %v1054 = vstv %s1053
        %v1055 = vmul.f32 %v1054, %v891
        %v1056 = vmul.f32 %v1054, %v888
        %v1057 = vadd.f32 %v1051, %v1055
        %v1058 = vadd.f32 %v1052, %v1056
        %s1059 = sld [smem:[#allocation2 + $0x16]]
        %v1060 = vstv %s1059
        %v1061 = vmul.f32 %v1060, %v781
        %v1062 = vmul.f32 %v1060, %v790
        %v1063 = vadd.f32 %v1057, %v1061
        %v1064 = vadd.f32 %v1058, %v1062
        %s1065 = sld [smem:[#allocation2 + $0x47]]
        %v1066 = vstv %s1065
        %v1067 = vmul.f32 %v1066, %v809
        %v1068 = vmul.f32 %v1066, %v810
        %v1069 = vadd.f32 %v1063, %v1067
        %v1070 = vadd.f32 %v1064, %v1068
        %s1071 = sld [smem:[#allocation2 + $0x1d]]
        %v1072 = vstv %s1071
        %v1073 = vmul.f32 %v1072, %v844
        %v1074 = vmul.f32 %v1072, %v847
        %v1075 = vadd.f32 %v1069, %v1073
        %v1076 = vadd.f32 %v1070, %v1074
        %s1077 = sld [smem:[#allocation2 + $0x4e]]
        %v1078 = vstv %s1077
        %v1079 = vmul.f32 %v1078, %v896
        %v1080 = vmul.f32 %v1078, %v899
        %v1081 = vadd.f32 %v1075, %v1079
        %v1082 = vadd.f32 %v1076, %v1080
        %s1083 = sld [smem:[#allocation2 + $0x24]]
        %v1084 = vstv %s1083
        %v1085 = vmul.f32 %v1084, %v853
        %v1086 = vmul.f32 %v1084, %v856
        %v1087 = vadd.f32 %v1081, %v1085
        %v1088 = vadd.f32 %v1082, %v1086
        %s1089 = sld [smem:[#allocation2 + $0x55]]
        %v1090 = vstv %s1089
        %v1091 = vmul.f32 %v1090, %v904
        %v1092 = vmul.f32 %v1090, %v907
        %v1093 = vadd.f32 %v1087, %v1091
        %v1094 = vadd.f32 %v1088, %v1092
        %s1095 = sld [smem:[#allocation2 + $0x2b]]
        %v1096 = vstv %s1095
        %v1097 = vmul.f32 %v1096, %v862
        %v1098 = vmul.f32 %v1096, %v865
        %v1099 = vadd.f32 %v1093, %v1097
        %v1100 = vadd.f32 %v1094, %v1098
        %s1101 = sld [smem:[#allocation2 + $0x5c]]
        %v1102 = vstv %s1101
        %v1103 = vmul.f32 %v1102, %v912
        %v1104 = vmul.f32 %v1102, %v915
        %v1105 = vadd.f32 %v1099, %v1103
        %v1106 = vadd.f32 %v1100, %v1104
        %1109 = vrot.lane.b32.xlu0 %v1105, 2
        %v1110 = vpop.permute.xlu0 %1109
        %1111 = vrot.lane.b32.xlu0 %v1106, 2
        %v1112 = vpop.permute.xlu0 %1111
        %v1113 = vsel %vm456, %v1110, %v1112
        %v1116 = vsel %vm456, 0.0, %v1110
        %v1117 = vadd.s32 %v339, 4294967294
        %v1118 = vadd.s32 %v340, 4294967294
        %vm1119 = vcmp.ge.s32.totalorder %v1117, 0
        %vm1120 = vcmp.ge.s32.totalorder %v1118, 0
        %vm1121 = vcmp.lt.s32.totalorder %v1117, 16
        %vm1122 = vcmp.lt.s32.totalorder %v1118, 16
        %vm1123 = vmand %vm1119, %vm1121
        %vm1124 = vmand %vm1120, %vm1122
        %v1125 = vsel %vm1123, %v1116, 0.0
        %v1126 = vsel %vm1124, %v1113, 0.0
        %v1127 = vadd.f32 %v1021, %v1125
        %v1128 = vadd.f32 %v1022, %v1126
        %s1129 = sld [smem:[#allocation2 + $0x2]]
        %v1130 = vstv %s1129
        %v1131 = vmul.f32 %v1130, %v821
        %v1132 = vmul.f32 %v1130, %v818
        %v1133 = vadd.f32 %v1131, 0.0
        %v1134 = vadd.f32 %v1132, 0.0
        %s1135 = sld [smem:[#allocation2 + $0x33]]
        %v1136 = vstv %s1135
        %v1137 = vmul.f32 %v1136, %v875
        %v1138 = vmul.f32 %v1136, %v872
        %v1139 = vadd.f32 %v1133, %v1137
        %v1140 = vadd.f32 %v1134, %v1138
        %s1141 = sld [smem:[#allocation2 + $0x9]]
        %v1142 = vstv %s1141
        %v1143 = vmul.f32 %v1142, %v829
        %v1144 = vmul.f32 %v1142, %v826
        %v1145 = vadd.f32 %v1139, %v1143
        %v1146 = vadd.f32 %v1140, %v1144
        %s1147 = sld [smem:[#allocation2 + $0x3a]]
        %v1148 = vstv %s1147
        %v1149 = vmul.f32 %v1148, %v883
        %v1150 = vmul.f32 %v1148, %v880
        %v1151 = vadd.f32 %v1145, %v1149
        %v1152 = vadd.f32 %v1146, %v1150
        %s1153 = sld [smem:[#allocation2 + $0x10]]
        %v1154 = vstv %s1153
        %v1155 = vmul.f32 %v1154, %v838
        %v1156 = vmul.f32 %v1154, %v835
        %v1157 = vadd.f32 %v1151, %v1155
        %v1158 = vadd.f32 %v1152, %v1156
        %s1159 = sld [smem:[#allocation2 + $0x41]]
        %v1160 = vstv %s1159
        %v1161 = vmul.f32 %v1160, %v891
        %v1162 = vmul.f32 %v1160, %v888
        %v1163 = vadd.f32 %v1157, %v1161
        %v1164 = vadd.f32 %v1158, %v1162
        %s1165 = sld [smem:[#allocation2 + $0x17]]
        %v1166 = vstv %s1165
        %v1167 = vmul.f32 %v1166, %v781
        %v1168 = vmul.f32 %v1166, %v790
        %v1169 = vadd.f32 %v1163, %v1167
        %v1170 = vadd.f32 %v1164, %v1168
        %s1171 = sld [smem:[#allocation2 + $0x48]]
        %v1172 = vstv %s1171
        %v1173 = vmul.f32 %v1172, %v809
        %v1174 = vmul.f32 %v1172, %v810
        %v1175 = vadd.f32 %v1169, %v1173
        %v1176 = vadd.f32 %v1170, %v1174
        %s1177 = sld [smem:[#allocation2 + $0x1e]]
        %v1178 = vstv %s1177
        %v1179 = vmul.f32 %v1178, %v844
        %v1180 = vmul.f32 %v1178, %v847
        %v1181 = vadd.f32 %v1175, %v1179
        %v1182 = vadd.f32 %v1176, %v1180
        %s1183 = sld [smem:[#allocation2 + $0x4f]]
        %v1184 = vstv %s1183
        %v1185 = vmul.f32 %v1184, %v896
        %v1186 = vmul.f32 %v1184, %v899
        %v1187 = vadd.f32 %v1181, %v1185
        %v1188 = vadd.f32 %v1182, %v1186
        %s1189 = sld [smem:[#allocation2 + $0x25]]
        %v1190 = vstv %s1189
        %v1191 = vmul.f32 %v1190, %v853
        %v1192 = vmul.f32 %v1190, %v856
        %v1193 = vadd.f32 %v1187, %v1191
        %v1194 = vadd.f32 %v1188, %v1192
        %s1195 = sld [smem:[#allocation2 + $0x56]]
        %v1196 = vstv %s1195
        %v1197 = vmul.f32 %v1196, %v904
        %v1198 = vmul.f32 %v1196, %v907
        %v1199 = vadd.f32 %v1193, %v1197
        %v1200 = vadd.f32 %v1194, %v1198
        %s1201 = sld [smem:[#allocation2 + $0x2c]]
        %v1202 = vstv %s1201
        %v1203 = vmul.f32 %v1202, %v862
        %v1204 = vmul.f32 %v1202, %v865
        %v1205 = vadd.f32 %v1199, %v1203
        %v1206 = vadd.f32 %v1200, %v1204
        %s1207 = sld [smem:[#allocation2 + $0x5d]]
        %v1208 = vstv %s1207
        %v1209 = vmul.f32 %v1208, %v912
        %v1210 = vmul.f32 %v1208, %v915
        %v1211 = vadd.f32 %v1205, %v1209
        %v1212 = vadd.f32 %v1206, %v1210
        %1215 = vrot.lane.b32.xlu0 %v1211, 1
        %v1216 = vpop.permute.xlu0 %1215
        %1217 = vrot.lane.b32.xlu0 %v1212, 1
        %v1218 = vpop.permute.xlu0 %1217
        %vm1219 = vcmask 7168
        %v1220 = vsel %vm1219, %v1216, %v1218
        %v1223 = vsel %vm1219, 0.0, %v1216
        %v1224 = vadd.s32 %v339, 4294967295
        %v1225 = vadd.s32 %v340, 4294967295
        %vm1226 = vcmp.ge.s32.totalorder %v1224, 0
        %vm1227 = vcmp.ge.s32.totalorder %v1225, 0
        %vm1228 = vcmp.lt.s32.totalorder %v1224, 16
        %vm1229 = vcmp.lt.s32.totalorder %v1225, 16
        %vm1230 = vmand %vm1226, %vm1228
        %vm1231 = vmand %vm1227, %vm1229
        %v1232 = vsel %vm1230, %v1223, 0.0
        %v1233 = vsel %vm1231, %v1220, 0.0
        %v1234 = vadd.f32 %v1127, %v1232
        %v1235 = vadd.f32 %v1128, %v1233
        %s1236 = sld [smem:[#allocation2 + $0x3]]
        %v1237 = vstv %s1236
        %v1238 = vmul.f32 %v1237, %v821
        %v1239 = vmul.f32 %v1237, %v818
        %v1240 = vadd.f32 %v1238, 0.0
        %v1241 = vadd.f32 %v1239, 0.0
        %s1242 = sld [smem:[#allocation2 + $0x34]]
        %v1243 = vstv %s1242
        %v1244 = vmul.f32 %v1243, %v875
        %v1245 = vmul.f32 %v1243, %v872
        %v1246 = vadd.f32 %v1240, %v1244
        %v1247 = vadd.f32 %v1241, %v1245
        %s1248 = sld [smem:[#allocation2 + $0xa]]
        %v1249 = vstv %s1248
        %v1250 = vmul.f32 %v1249, %v829
        %v1251 = vmul.f32 %v1249, %v826
        %v1252 = vadd.f32 %v1246, %v1250
        %v1253 = vadd.f32 %v1247, %v1251
        %s1254 = sld [smem:[#allocation2 + $0x3b]]
        %v1255 = vstv %s1254
        %v1256 = vmul.f32 %v1255, %v883
        %v1257 = vmul.f32 %v1255, %v880
        %v1258 = vadd.f32 %v1252, %v1256
        %v1259 = vadd.f32 %v1253, %v1257
        %s1260 = sld [smem:[#allocation2 + $0x11]]
        %v1261 = vstv %s1260
        %v1262 = vmul.f32 %v1261, %v838
        %v1263 = vmul.f32 %v1261, %v835
        %v1264 = vadd.f32 %v1258, %v1262
        %v1265 = vadd.f32 %v1259, %v1263
        %s1266 = sld [smem:[#allocation2 + $0x42]]
        %v1267 = vstv %s1266
        %v1268 = vmul.f32 %v1267, %v891
        %v1269 = vmul.f32 %v1267, %v888
        %v1270 = vadd.f32 %v1264, %v1268
        %v1271 = vadd.f32 %v1265, %v1269
        %s1272 = sld [smem:[#allocation2 + $0x18]]
        %v1273 = vstv %s1272
        %v1274 = vmul.f32 %v1273, %v781
        %v1275 = vmul.f32 %v1273, %v790
        %v1276 = vadd.f32 %v1270, %v1274
        %v1277 = vadd.f32 %v1271, %v1275
        %s1278 = sld [smem:[#allocation2 + $0x49]]
        %v1279 = vstv %s1278
        %v1280 = vmul.f32 %v1279, %v809
        %v1281 = vmul.f32 %v1279, %v810
        %v1282 = vadd.f32 %v1276, %v1280
        %v1283 = vadd.f32 %v1277, %v1281
        %s1284 = sld [smem:[#allocation2 + $0x1f]]
        %v1285 = vstv %s1284
        %v1286 = vmul.f32 %v1285, %v844
        %v1287 = vmul.f32 %v1285, %v847
        %v1288 = vadd.f32 %v1282, %v1286
        %v1289 = vadd.f32 %v1283, %v1287
        %s1290 = sld [smem:[#allocation2 + $0x50]]
        %v1291 = vstv %s1290
        %v1292 = vmul.f32 %v1291, %v896
        %v1293 = vmul.f32 %v1291, %v899
        %v1294 = vadd.f32 %v1288, %v1292
        %v1295 = vadd.f32 %v1289, %v1293
        %s1296 = sld [smem:[#allocation2 + $0x26]]
        %v1297 = vstv %s1296
        %v1298 = vmul.f32 %v1297, %v853
        %v1299 = vmul.f32 %v1297, %v856
        %v1300 = vadd.f32 %v1294, %v1298
        %v1301 = vadd.f32 %v1295, %v1299
        %s1302 = sld [smem:[#allocation2 + $0x57]]
        %v1303 = vstv %s1302
        %v1304 = vmul.f32 %v1303, %v904
        %v1305 = vmul.f32 %v1303, %v907
        %v1306 = vadd.f32 %v1300, %v1304
        %v1307 = vadd.f32 %v1301, %v1305
        %s1308 = sld [smem:[#allocation2 + $0x2d]]
        %v1309 = vstv %s1308
        %v1310 = vmul.f32 %v1309, %v862
        %v1311 = vmul.f32 %v1309, %v865
        %v1312 = vadd.f32 %v1306, %v1310
        %v1313 = vadd.f32 %v1307, %v1311
        %s1314 = sld [smem:[#allocation2 + $0x5e]]
        %v1315 = vstv %s1314
        %v1316 = vmul.f32 %v1315, %v912
        %v1317 = vmul.f32 %v1315, %v915
        %v1318 = vadd.f32 %v1312, %v1316
        %v1319 = vadd.f32 %v1313, %v1317
        %v1320 = vadd.f32 %v1234, %v1318
        %v1321 = vadd.f32 %v1235, %v1319
        %s1322 = sld [smem:[#allocation2 + $0x4]]
        %v1323 = vstv %s1322
        %v1324 = vmul.f32 %v1323, %v821
        %v1325 = vmul.f32 %v1323, %v818
        %v1326 = vadd.f32 %v1324, 0.0
        %v1327 = vadd.f32 %v1325, 0.0
        %s1328 = sld [smem:[#allocation2 + $0x35]]
        %v1329 = vstv %s1328
        %v1330 = vmul.f32 %v1329, %v875
        %v1331 = vmul.f32 %v1329, %v872
        %v1332 = vadd.f32 %v1326, %v1330
        %v1333 = vadd.f32 %v1327, %v1331
        %s1334 = sld [smem:[#allocation2 + $0xb]]
        %v1335 = vstv %s1334
        %v1336 = vmul.f32 %v1335, %v829
        %v1337 = vmul.f32 %v1335, %v826
        %v1338 = vadd.f32 %v1332, %v1336
        %v1339 = vadd.f32 %v1333, %v1337
        %s1340 = sld [smem:[#allocation2 + $0x3c]]
        %v1341 = vstv %s1340
        %v1342 = vmul.f32 %v1341, %v883
        %v1343 = vmul.f32 %v1341, %v880
        %v1344 = vadd.f32 %v1338, %v1342
        %v1345 = vadd.f32 %v1339, %v1343
        %s1346 = sld [smem:[#allocation2 + $0x12]]
        %v1347 = vstv %s1346
        %v1348 = vmul.f32 %v1347, %v838
        %v1349 = vmul.f32 %v1347, %v835
        %v1350 = vadd.f32 %v1344, %v1348
        %v1351 = vadd.f32 %v1345, %v1349
        %s1352 = sld [smem:[#allocation2 + $0x43]]
        %v1353 = vstv %s1352
        %v1354 = vmul.f32 %v1353, %v891
        %v1355 = vmul.f32 %v1353, %v888
        %v1356 = vadd.f32 %v1350, %v1354
        %v1357 = vadd.f32 %v1351, %v1355
        %s1358 = sld [smem:[#allocation2 + $0x19]]
        %v1359 = vstv %s1358
        %v1360 = vmul.f32 %v1359, %v781
        %v1361 = vmul.f32 %v1359, %v790
        %v1362 = vadd.f32 %v1356, %v1360
        %v1363 = vadd.f32 %v1357, %v1361
        %s1364 = sld [smem:[#allocation2 + $0x4a]]
        %v1365 = vstv %s1364
        %v1366 = vmul.f32 %v1365, %v809
        %v1367 = vmul.f32 %v1365, %v810
        %v1368 = vadd.f32 %v1362, %v1366
        %v1369 = vadd.f32 %v1363, %v1367
        %s1370 = sld [smem:[#allocation2 + $0x20]]
        %v1371 = vstv %s1370
        %v1372 = vmul.f32 %v1371, %v844
        %v1373 = vmul.f32 %v1371, %v847
        %v1374 = vadd.f32 %v1368, %v1372
        %v1375 = vadd.f32 %v1369, %v1373
        %s1376 = sld [smem:[#allocation2 + $0x51]]
        %v1377 = vstv %s1376
        %v1378 = vmul.f32 %v1377, %v896
        %v1379 = vmul.f32 %v1377, %v899
        %v1380 = vadd.f32 %v1374, %v1378
        %v1381 = vadd.f32 %v1375, %v1379
        %s1382 = sld [smem:[#allocation2 + $0x27]]
        %v1383 = vstv %s1382
        %v1384 = vmul.f32 %v1383, %v853
        %v1385 = vmul.f32 %v1383, %v856
        %v1386 = vadd.f32 %v1380, %v1384
        %v1387 = vadd.f32 %v1381, %v1385
        %s1388 = sld [smem:[#allocation2 + $0x58]]
        %v1389 = vstv %s1388
        %v1390 = vmul.f32 %v1389, %v904
        %v1391 = vmul.f32 %v1389, %v907
        %v1392 = vadd.f32 %v1386, %v1390
        %v1393 = vadd.f32 %v1387, %v1391
        %s1394 = sld [smem:[#allocation2 + $0x2e]]
        %v1395 = vstv %s1394
        %v1396 = vmul.f32 %v1395, %v862
        %v1397 = vmul.f32 %v1395, %v865
        %v1398 = vadd.f32 %v1392, %v1396
        %v1399 = vadd.f32 %v1393, %v1397
        %s1400 = sld [smem:[#allocation2 + $0x5f]]
        %v1401 = vstv %s1400
        %v1402 = vmul.f32 %v1401, %v912
        %v1403 = vmul.f32 %v1401, %v915
        %v1404 = vadd.f32 %v1398, %v1402
        %v1405 = vadd.f32 %v1399, %v1403
        %1408 = vrot.lane.b32.xlu0 %v1404, 127
        %v1409 = vpop.permute.xlu0 %1408
        %1410 = vrot.lane.b32.xlu0 %v1405, 127
        %v1411 = vpop.permute.xlu0 %1410
        %vm1412 = vcmask 1039360
        %v1413 = vsel %vm1412, %v1409, %v1411
        %v1416 = vsel %vm1412, %v1411, 0.0
        %v1417 = vadd.s32 %v339, 1
        %v1418 = vadd.s32 %v340, 1
        %vm1419 = vcmp.ge.s32.totalorder %v1417, 0
        %vm1420 = vcmp.ge.s32.totalorder %v1418, 0
        %vm1421 = vcmp.lt.s32.totalorder %v1417, 16
        %vm1422 = vcmp.lt.s32.totalorder %v1418, 16
        %vm1423 = vmand %vm1419, %vm1421
        %vm1424 = vmand %vm1420, %vm1422
        %v1425 = vsel %vm1423, %v1413, 0.0
        %v1426 = vsel %vm1424, %v1416, 0.0
        %v1427 = vadd.f32 %v1320, %v1425
        %v1428 = vadd.f32 %v1321, %v1426
        %s1429 = sld [smem:[#allocation2 + $0x5]]
        %v1430 = vstv %s1429
        %v1431 = vmul.f32 %v1430, %v821
        %v1432 = vmul.f32 %v1430, %v818
        %v1433 = vadd.f32 %v1431, 0.0
        %v1434 = vadd.f32 %v1432, 0.0
        %s1435 = sld [smem:[#allocation2 + $0x36]]
        %v1436 = vstv %s1435
        %v1437 = vmul.f32 %v1436, %v875
        %v1438 = vmul.f32 %v1436, %v872
        %v1439 = vadd.f32 %v1433, %v1437
        %v1440 = vadd.f32 %v1434, %v1438
        %s1441 = sld [smem:[#allocation2 + $0xc]]
        %v1442 = vstv %s1441
        %v1443 = vmul.f32 %v1442, %v829
        %v1444 = vmul.f32 %v1442, %v826
        %v1445 = vadd.f32 %v1439, %v1443
        %v1446 = vadd.f32 %v1440, %v1444
        %s1447 = sld [smem:[#allocation2 + $0x3d]]
        %v1448 = vstv %s1447
        %v1449 = vmul.f32 %v1448, %v883
        %v1450 = vmul.f32 %v1448, %v880
        %v1451 = vadd.f32 %v1445, %v1449
        %v1452 = vadd.f32 %v1446, %v1450
        %s1453 = sld [smem:[#allocation2 + $0x13]]
        %v1454 = vstv %s1453
        %v1455 = vmul.f32 %v1454, %v838
        %v1456 = vmul.f32 %v1454, %v835
        %v1457 = vadd.f32 %v1451, %v1455
        %v1458 = vadd.f32 %v1452, %v1456
        %s1459 = sld [smem:[#allocation2 + $0x44]]
        %v1460 = vstv %s1459
        %v1461 = vmul.f32 %v1460, %v891
        %v1462 = vmul.f32 %v1460, %v888
        %v1463 = vadd.f32 %v1457, %v1461
        %v1464 = vadd.f32 %v1458, %v1462
        %s1465 = sld [smem:[#allocation2 + $0x1a]]
        %v1466 = vstv %s1465
        %v1467 = vmul.f32 %v1466, %v781
        %v1468 = vmul.f32 %v1466, %v790
        %v1469 = vadd.f32 %v1463, %v1467
        %v1470 = vadd.f32 %v1464, %v1468
        %s1471 = sld [smem:[#allocation2 + $0x4b]]
        %v1472 = vstv %s1471
        %v1473 = vmul.f32 %v1472, %v809
        %v1474 = vmul.f32 %v1472, %v810
        %v1475 = vadd.f32 %v1469, %v1473
        %v1476 = vadd.f32 %v1470, %v1474
        %s1477 = sld [smem:[#allocation2 + $0x21]]
        %v1478 = vstv %s1477
        %v1479 = vmul.f32 %v1478, %v844
        %v1480 = vmul.f32 %v1478, %v847
        %v1481 = vadd.f32 %v1475, %v1479
        %v1482 = vadd.f32 %v1476, %v1480
        %s1483 = sld [smem:[#allocation2 + $0x52]]
        %v1484 = vstv %s1483
        %v1485 = vmul.f32 %v1484, %v896
        %v1486 = vmul.f32 %v1484, %v899
        %v1487 = vadd.f32 %v1481, %v1485
        %v1488 = vadd.f32 %v1482, %v1486
        %s1489 = sld [smem:[#allocation2 + $0x28]]
        %v1490 = vstv %s1489
        %v1491 = vmul.f32 %v1490, %v853
        %v1492 = vmul.f32 %v1490, %v856
        %v1493 = vadd.f32 %v1487, %v1491
        %v1494 = vadd.f32 %v1488, %v1492
        %s1495 = sld [smem:[#allocation2 + $0x59]]
        %v1496 = vstv %s1495
        %v1497 = vmul.f32 %v1496, %v904
        %v1498 = vmul.f32 %v1496, %v907
        %v1499 = vadd.f32 %v1493, %v1497
        %v1500 = vadd.f32 %v1494, %v1498
        %s1501 = sld [smem:[#allocation2 + $0x2f]]
        %v1502 = vstv %s1501
        %v1503 = vmul.f32 %v1502, %v862
        %v1504 = vmul.f32 %v1502, %v865
        %v1505 = vadd.f32 %v1499, %v1503
        %v1506 = vadd.f32 %v1500, %v1504
        %s1507 = sld [smem:[#allocation2 + $0x60]]
        %v1508 = vstv %s1507
        %v1509 = vmul.f32 %v1508, %v912
        %v1510 = vmul.f32 %v1508, %v915
        %v1511 = vadd.f32 %v1505, %v1509
        %v1512 = vadd.f32 %v1506, %v1510
        %1515 = vrot.lane.b32.xlu0 %v1511, 126
        %v1516 = vpop.permute.xlu0 %1515
        %1517 = vrot.lane.b32.xlu0 %v1512, 126
        %v1518 = vpop.permute.xlu0 %1517
        %vm1519 = vcmask 1031168
        %v1520 = vsel %vm1519, %v1516, %v1518
        %v1523 = vsel %vm1519, %v1518, 0.0
        %v1524 = vadd.s32 %v339, 2
        %v1525 = vadd.s32 %v340, 2
        %vm1526 = vcmp.ge.s32.totalorder %v1524, 0
        %vm1527 = vcmp.ge.s32.totalorder %v1525, 0
        %vm1528 = vcmp.lt.s32.totalorder %v1524, 16
        %vm1529 = vcmp.lt.s32.totalorder %v1525, 16
        %vm1530 = vmand %vm1526, %vm1528
        %vm1531 = vmand %vm1527, %vm1529
        %v1532 = vsel %vm1530, %v1520, 0.0
        %v1533 = vsel %vm1531, %v1523, 0.0
        %v1534 = vadd.f32 %v1427, %v1532
        %v1535 = vadd.f32 %v1428, %v1533
        %s1536 = sld [smem:[#allocation2 + $0x6]]
        %v1537 = vstv %s1536
        %v1538 = vmul.f32 %v1537, %v821
        %v1539 = vmul.f32 %v1537, %v818
        %v1540 = vadd.f32 %v1538, 0.0
        %v1541 = vadd.f32 %v1539, 0.0
        %s1542 = sld [smem:[#allocation2 + $0x37]]
        %v1543 = vstv %s1542
        %v1544 = vmul.f32 %v1543, %v875
        %v1545 = vmul.f32 %v1543, %v872
        %v1546 = vadd.f32 %v1540, %v1544
        %v1547 = vadd.f32 %v1541, %v1545
        %s1548 = sld [smem:[#allocation2 + $0xd]]
        %v1549 = vstv %s1548
        %v1550 = vmul.f32 %v1549, %v829
        %v1551 = vmul.f32 %v1549, %v826
        %v1552 = vadd.f32 %v1546, %v1550
        %v1553 = vadd.f32 %v1547, %v1551
        %s1554 = sld [smem:[#allocation2 + $0x3e]]
        %v1555 = vstv %s1554
        %v1556 = vmul.f32 %v1555, %v883
        %v1557 = vmul.f32 %v1555, %v880
        %v1558 = vadd.f32 %v1552, %v1556
        %v1559 = vadd.f32 %v1553, %v1557
        %s1560 = sld [smem:[#allocation2 + $0x14]]
        %v1561 = vstv %s1560
        %v1562 = vmul.f32 %v1561, %v838
        %v1563 = vmul.f32 %v1561, %v835
        %v1564 = vadd.f32 %v1558, %v1562
        %v1565 = vadd.f32 %v1559, %v1563
        %s1566 = sld [smem:[#allocation2 + $0x45]]
        %v1567 = vstv %s1566
        %v1568 = vmul.f32 %v1567, %v891
        %v1569 = vmul.f32 %v1567, %v888
        %v1570 = vadd.f32 %v1564, %v1568
        %v1571 = vadd.f32 %v1565, %v1569
        %s1572 = sld [smem:[#allocation2 + $0x1b]]
        %v1573 = vstv %s1572
        %v1574 = vmul.f32 %v1573, %v781
        %v1575 = vmul.f32 %v1573, %v790
        %v1576 = vadd.f32 %v1570, %v1574
        %v1577 = vadd.f32 %v1571, %v1575
        %s1578 = sld [smem:[#allocation2 + $0x4c]]
        %v1579 = vstv %s1578
        %v1580 = vmul.f32 %v1579, %v809
        %v1581 = vmul.f32 %v1579, %v810
        %v1582 = vadd.f32 %v1576, %v1580
        %v1583 = vadd.f32 %v1577, %v1581
        %s1584 = sld [smem:[#allocation2 + $0x22]]
        %v1585 = vstv %s1584
        %v1586 = vmul.f32 %v1585, %v844
        %v1587 = vmul.f32 %v1585, %v847
        %v1588 = vadd.f32 %v1582, %v1586
        %v1589 = vadd.f32 %v1583, %v1587
        %s1590 = sld [smem:[#allocation2 + $0x53]]
        %v1591 = vstv %s1590
        %v1592 = vmul.f32 %v1591, %v896
        %v1593 = vmul.f32 %v1591, %v899
        %v1594 = vadd.f32 %v1588, %v1592
        %v1595 = vadd.f32 %v1589, %v1593
        %s1596 = sld [smem:[#allocation2 + $0x29]]
        %v1597 = vstv %s1596
        %v1598 = vmul.f32 %v1597, %v853
        %v1599 = vmul.f32 %v1597, %v856
        %v1600 = vadd.f32 %v1594, %v1598
        %v1601 = vadd.f32 %v1595, %v1599
        %s1602 = sld [smem:[#allocation2 + $0x5a]]
        %v1603 = vstv %s1602
        %v1604 = vmul.f32 %v1603, %v904
        %v1605 = vmul.f32 %v1603, %v907
        %v1606 = vadd.f32 %v1600, %v1604
        %v1607 = vadd.f32 %v1601, %v1605
        %s1608 = sld [smem:[#allocation2 + $0x30]]
        %v1609 = vstv %s1608
        %v1610 = vmul.f32 %v1609, %v862
        %v1611 = vmul.f32 %v1609, %v865
        %v1612 = vadd.f32 %v1606, %v1610
        %v1613 = vadd.f32 %v1607, %v1611
        %s1614 = sld [smem:[#allocation2 + $0x61]]
        %v1615 = vstv %s1614
        %v1616 = vmul.f32 %v1615, %v912
        %v1617 = vmul.f32 %v1615, %v915
        %v1618 = vadd.f32 %v1612, %v1616
        %v1619 = vadd.f32 %v1613, %v1617
        %1622 = vrot.lane.b32.xlu0 %v1618, 125
        %v1623 = vpop.permute.xlu0 %1622
        %1624 = vrot.lane.b32.xlu0 %v1619, 125
        %v1625 = vpop.permute.xlu0 %1624
        %vm1626 = vcmask 1022976
        %v1627 = vsel %vm1626, %v1623, %v1625
        %v1630 = vsel %vm1626, %v1625, 0.0
        %v1631 = vadd.s32 %v339, 3
        %v1632 = vadd.s32 %v340, 3
        %vm1633 = vcmp.ge.s32.totalorder %v1631, 0
        %vm1634 = vcmp.ge.s32.totalorder %v1632, 0
        %vm1635 = vcmp.lt.s32.totalorder %v1631, 16
        %vm1636 = vcmp.lt.s32.totalorder %v1632, 16
        %vm1637 = vmand %vm1633, %vm1635
        %vm1638 = vmand %vm1634, %vm1636
        %v1639 = vsel %vm1637, %v1627, 0.0
        %v1640 = vsel %vm1638, %v1630, 0.0
        %v1641 = vadd.f32 %v1534, %v1639
        %v1642 = vadd.f32 %v1535, %v1640
        %s1643 = sld [smem:[#allocation5]]
        %v1644 = vstv %s1643
        %v1645 = vmul.f32 %v1641, %v1644
        %v1646 = vmul.f32 %v1642, %v1644
        %s1647 = sld [smem:[#allocation5 + $0x1]]
        %v1648 = vstv %s1647
        %v1649 = vadd.f32 %v1645, %v1648
        %v1650 = vadd.f32 %v1646, %v1648
        %v1651 = vxor.u32 %v1649, 2147483648
        %v1652 = vxor.u32 %v1650, 2147483648
        %v1653 = vmul.f32 %v1651, 1.442695
        %v1654 = vpow.pop %v1653
        %v1655 = vmul.f32 %v1652, 1.442695
        %v1656 = vpow.pop %v1655
        %v1657 = vadd.f32 %v1654, 1.0
        %v1658 = vadd.f32 %v1656, 1.0
        %v1659 = vrcp.pop %v1657
        %v1660 = vmul.f32 1.0, %v1659
        %v1661 = vrcp.pop %v1658
        %v1662 = vmul.f32 1.0, %v1661
        %v1663 = vlaneseq
        %v1664 = vshrl.u32 %v1663, 7
        %v1665 = vsub.s32 0, %v1664
        %v1666 = vrot.slane %v1660, %v1665
        %v1667 = vlaneseq
        %v1668 = vshrl.u32 %v1667, 7
        %v1669 = vsub.s32 0, %v1668
        %v1670 = vrot.slane %v1662, %v1669
        %v1671 = vmul.f32 %v765, %v1666
        %v1672 = vmul.f32 %v766, %v1670
        %v1673 = vmul.f32 %v767, %v1666
        %v1674 = vmul.f32 %v768, %v1670
        %v1675 = vmul.f32 %v769, %v1666
        %v1676 = vmul.f32 %v770, %v1670
        %v1677 = vmul.f32 %v771, %v1666
        %v1678 = vmul.f32 %v772, %v1670
        %v1679 = vpack.c.bf16 %v1673, %v1671
        %v1680 = vpack.c.bf16 %v1674, %v1672
        %v1681 = vpack.c.bf16 %v1677, %v1675
        %v1682 = vpack.c.bf16 %v1678, %v1676
        %v1687 = vunpack.c.l.b16 %v1679
        %v1688 = vunpack.c.l.b16 %v1680
        %v1689 = vunpack.c.h.b16 %v1679
        %v1690 = vunpack.c.h.b16 %v1680
        %v1691 = vunpack.c.l.b16 %v1681
        %v1692 = vunpack.c.l.b16 %v1682
        %v1693 = vunpack.c.h.b16 %v1681
        %v1694 = vunpack.c.h.b16 %v1682
        %v1695 = vpack.c.b16 %v1688, %v1687
        %v1696 = vpack.c.b16 %v1690, %v1689
        %v1697 = vpack.c.b16 %v1692, %v1691
        %v1698 = vpack.c.b16 %v1694, %v1693
        %1703 = vst [vmem:[%s298] sm:$0xff] %v1695
        %1704 = vst [vmem:[%s298 + $0x8] sm:$0xff] %v1696
        %1705 = vst [vmem:[%s298 + $0x10] sm:$0xff] %v1697
        %1706 = vst [vmem:[%s298 + $0x18] sm:$0xff] %v1698
        %s1707 = sand.u32 %s183, 1
        %s1708 = scalar_lea.sflag [#allocation3], %s1707
        %s1709 = sand.u32 %s183, 1
        %s1710 = smul.addr %s1709, 32
        %s1711 = scalar_lea.vmem [#allocation7], %s1710
        // Predicated region
        $region57: #{tpu_custom_call.1} parent=47 // pred_check
          %p1712 = pneg %p193
        $region58: #{tpu_custom_call.1} parent=47 // pred_check_branch
          %1714 = sbr.rel (%p1712) target = $region60
        $region59: #{tpu_custom_call.1} parent=47 // pred_region
          %s1716 = ssub.s32 512, 512
          %1717 = vsyncadd %s1708, %s1716
          %s1718 = smul.addr %s23, 8
          %s1719 = smul.addr %s1718, 64
          %s1720 = scalar_lea.hbm %s7, %s1719
          %s1721 = sshll.u32 %s1711, 4
          %s1722 = int_to_ptr.vmem [resolvable:$true] %s1721
          %1727 = dma.vmem_to_hbm [thread:$0]  %s1722, 512, %s1720, %s1708, 128, 128, 8
        $region60: #{tpu_custom_call.1} parent=47 // pred_fallthru
          _
      $region48: #{tpu_custom_call.1} parent=5 // pred_fallthru
        _
      %p1728 = scmp.le.s32.totalorder 2, %s18
      // Predicated region
      $region61: #{tpu_custom_call.1} parent=5 // pred_check
        %p1729 = pneg %p1728
      $region62: #{tpu_custom_call.1} parent=5 // pred_check_branch
        %1731 = sbr.rel (%p1729) target = $region64
      $region63: #{tpu_custom_call.1} parent=5 // pred_region
        %s1732 = ssub.s32 %s18, 2
        // Predicated region
        $region65: #{tpu_custom_call.1} parent=63 // pred_check
          %p1733 = pneg %p199
        $region66: #{tpu_custom_call.1} parent=63 // pred_check_branch
          %1735 = sbr.rel (%p1733) target = $region68
        $region67: #{tpu_custom_call.1} parent=63 // pred_region
          %s1736 = sand.u32 %s184, 1
          %s1737 = scalar_lea.sflag [#allocation3], %s1736
          %s1738 = sand.u32 %s184, 1
          %s1739 = smul.addr %s1738, 32
          %s1740 = scalar_lea.vmem [#allocation7], %s1739
          %1741 = dma.done %s1737, 512
        $region68: #{tpu_custom_call.1} parent=63 // pred_fallthru
          _
      $region64: #{tpu_custom_call.1} parent=5 // pred_fallthru
        _
    $region6: #{tpu_custom_call.1} parent=1 // loop_footer
      %s22 = sadd.s32 1, %s18
    $region7: #{tpu_custom_call.1} parent=1 // loop_footer_branch
      %17 = sbr.rel target = $region3
    $region8: #{tpu_custom_call.1} parent=1 // loop_exit
      _
    %1742 = vsyncpa [#allocation3], 1
    %s1743 = scalar_lea.sflag [#allocation3], 1
    %1744 = vsyncpa %s1743, 1
    %1745 = vsyncpa [#allocation4], 1
    %s1746 = scalar_lea.sflag [#allocation4], 1
    %1747 = vsyncpa %s1746, 1
    %1748 = vsyncpa [#allocation6], 1

</llo_original>
